<compile_context>
chip_gen: v7x
topology: tpu7x:2x2x1
jax: 0.10.0
libtpu: 0.0.40
codegen_flags: <defaults>
</compile_context>

<pallas_src>
import jax
import jax.numpy as jnp
from jax.experimental import pallas as pl
from jax.experimental.pallas import tpu as pltpu

# ----------------------------- model dimensions ------------------------------
B = 2                                     # batch size (fixed for this script)
IMG = 16                                  # image side (reduced analog of 224)
MAMBA_PATCH = 4                           # mamba stem patch size
NPM = (IMG // MAMBA_PATCH) ** 2           # 16 mamba patches
D_M = 32                                  # mamba feature dim (analog of 768)
M_HID = 64                                # hidden of the gated block
VIT_PATCH = 4                             # vit patch size (analog of 16)
NPV = (IMG // VIT_PATCH) ** 2             # 16 vit patches
D_V = 32                                  # vit embed dim (analog of 192)
N_HEADS = 2
HEAD_DIM = D_V // N_HEADS
T = NPV + 1                               # tokens incl. CLS
VIT_DEPTH = 2
OUT_DIMS = (1, 3, 4)
N_OUT = sum(OUT_DIMS)
OUT_PAD = 128                             # lane-dense output width
IMG_VEC = 3 * IMG * IMG                   # 768
NEG = -1e9                                # additive mask for cross-batch attention


# ------------------------------ in-kernel helpers -----------------------------
def _mm(a, b):
    return jnp.dot(a, b, preferred_element_type=jnp.float32)


def _ln(x, g, b, eps):
    x = x.astype(jnp.float32)
    mu = jnp.mean(x, axis=-1, keepdims=True)
    var = jnp.mean((x - mu) ** 2, axis=-1, keepdims=True)
    return (x - mu) * jax.lax.rsqrt(var + eps) * g + b


# ------------------------------- fused kernel ---------------------------------
def _fused_kernel(xp_ref, sw_ref, sb_ref, mlg_ref, mlb_ref,
                  f1w_ref, f1b_ref, f2w_ref, f2b_ref, pool_ref,
                  rep_ref, tile_ref, bmask_ref, wstk_ref, base_ref, amask_ref,
                  l1g_ref, l1b_ref, qkvw_ref, qkvb_ref, pw_ref, pb_ref,
                  l2g_ref, l2b_ref, m1w_ref, m1b_ref, m2w_ref, m2b_ref,
                  lfg_ref, lfb_ref, csel_ref, hw_ref, hb_ref, o_ref):
    # ---- mamba stand-in stage: raw 1-channel patches -> pooled feature ----
    # TODO(synk): reduced gated-MLP stand-in for timm 'mambaout_base_plus_rw'
    x = xp_ref[...].astype(jnp.float32)                        # (B*NPM, P*P)
    t = _mm(x, sw_ref[...]) + sb_ref[...]                      # (B*NPM, D_M)
    h = _ln(t, mlg_ref[...], mlb_ref[...], 1e-5)
    z = _mm(h, f1w_ref[...]) + f1b_ref[...]                    # (B*NPM, 2*M_HID)
    # gelu(gate)*val in lanes [0:M_HID]; lanes [M_HID:] killed by zero-padded fc2
    gated = jax.nn.gelu(z, approximate=True) * pltpu.roll(z, shift=M_HID, axis=1)
    t = t + _mm(gated, f2w_ref[...]) + f2b_ref[...]            # (B*NPM, D_M)
    feat = _mm(pool_ref[...], t)                               # (B, D_M) mean-pool

    # ---- reshape_to_image + ViT patch embed (folded) + CLS/pos -> tokens ----
    # feat replicated to token rows and block-masked so row (b, 1+p) picks
    # W_fold[:, p-th D_V block]; CLS rows come purely from `base` (cls+pos).
    feat_big = _mm(rep_ref[...], _mm(feat, tile_ref[...]))     # (B*T, NPV*D_M)
    xx = base_ref[...] + _mm(feat_big * bmask_ref[...], wstk_ref[...])  # (B*T, D_V)

    # ---- ViT encoder (batch folded into rows; block-diag attention mask) ----
    scale = 1.0 / (HEAD_DIM ** 0.5)
    amask = amask_ref[...]                                     # (B*T, B*T)
    for d in range(VIT_DEPTH):
        h1 = _ln(xx, l1g_ref[d], l1b_ref[d], 1e-6)
        qkv = _mm(h1, qkvw_ref[d]) + qkvb_ref[d]               # (B*T, 3*D_V)
        attn = pb_ref[d]                                       # proj bias (1, D_V)
        for hh in range(N_HEADS):
            qh = qkv[:, hh * HEAD_DIM:(hh + 1) * HEAD_DIM]
            kh = qkv[:, D_V + hh * HEAD_DIM:D_V + (hh + 1) * HEAD_DIM]
            vh = qkv[:, 2 * D_V + hh * HEAD_DIM:2 * D_V + (hh + 1) * HEAD_DIM]
            s = jnp.einsum("qd,kd->qk", qh, kh,
                           preferred_element_type=jnp.float32) * scale + amask
            s = s - jnp.max(s, axis=-1, keepdims=True)
            pr = jnp.exp(s)
            pr = pr * pl.reciprocal(jnp.sum(pr, axis=-1, keepdims=True), approx=True)
            attn = attn + _mm(_mm(pr, vh), pw_ref[d * N_HEADS + hh])
        xx = xx + attn
        h2 = _ln(xx, l2g_ref[d], l2b_ref[d], 1e-6)
        # TODO(synk): timm ViT uses exact erf GELU; tanh approximation used here
        g2 = jax.nn.gelu(_mm(h2, m1w_ref[d]) + m1b_ref[d], approximate=True)
        xx = xx + _mm(g2, m2w_ref[d]) + m2b_ref[d]

    xx = _ln(xx, lfg_ref[...], lfb_ref[...], 1e-6)
    cls = _mm(csel_ref[...], xx)                               # (B, D_V) CLS rows
    out = _mm(cls, hw_ref[...]) + hb_ref[...]                  # (B, OUT_PAD) lane-dense
    o_ref[...] = out.astype(o_ref.dtype)


# ------------------------------ kernel wrapper --------------------------------
def fused_forward(q, xp):
    args = (xp,
            q["m_stem_w"], q["m_stem_b"], q["m_ln_g"], q["m_ln_b"],
            q["m_fc1_w"], q["m_fc1_b"], q["m_fc2_w"], q["m_fc2_b"], q["pool"],
            q["rep"], q["tile"], q["bmask"], q["wstack"], q["base"], q["amask"],
            q["ln1_g"], q["ln1_b"], q["qkv_w"], q["qkv_b"], q["proj_w"], q["proj_b"],
            q["ln2_g"], q["ln2_b"], q["fc1_w"], q["fc1_b"], q["fc2_w"], q["fc2_b"],
            q["v_ln_g"], q["v_ln_b"], q["csel"], q["head_w"], q["head_b"])
    vspec = pl.BlockSpec(memory_space=pltpu.MemorySpace.VMEM)
    return pl.pallas_call(
        _fused_kernel,
        out_shape=jax.ShapeDtypeStruct((B, OUT_PAD), jnp.float32),
        in_specs=[vspec] * len(args),
        out_specs=vspec,
        compiler_params=pltpu.CompilerParams(vmem_limit_bytes=8 * 1024 * 1024),
        cost_estimate=pl.CostEstimate(flops=4_000_000, transcendentals=20_000,
                                      bytes_accessed=450_000),
    )(*args)


# ------------------------------ parameter setup -------------------------------
def init_params(key):
    """Raw (PyTorch-shaped) parameters for the reduced stand-in model."""
    def nrm(k, shape, scale=0.02):
        return scale * jax.random.normal(k, shape, jnp.float32)

    keys = iter(jax.random.split(key, 64))
    p = {}
    # input_proj: Conv2d(1, 3, kernel_size=1)
    p["proj_w"] = nrm(next(keys), (1, 3))
    p["proj_b"] = nrm(next(keys), (3,))

    # mamba stand-in: patch stem + one gated block
    k_stem = MAMBA_PATCH * MAMBA_PATCH * 3
    p["m_stem_w"] = nrm(next(keys), (k_stem, D_M))
    p["m_stem_b"] = jnp.zeros((D_M,), jnp.float32)
    p["m_ln_g"] = jnp.ones((D_M,), jnp.float32)
    p["m_ln_b"] = jnp.zeros((D_M,), jnp.float32)
    p["m_fc1_w"] = nrm(next(keys), (D_M, 2 * M_HID))      # [gate | val]
    p["m_fc1_b"] = jnp.zeros((2 * M_HID,), jnp.float32)
    p["m_fc2_w"] = nrm(next(keys), (M_HID, D_M))
    p["m_fc2_b"] = jnp.zeros((D_M,), jnp.float32)

    # reshape_to_image: Linear(D_M, 3*IMG*IMG) + Unflatten(1, (3, IMG, IMG))
    p["r_w"] = nrm(next(keys), (D_M, IMG_VEC))
    p["r_b"] = jnp.zeros((IMG_VEC,), jnp.float32)

    # ViT stand-in
    k_vp = VIT_PATCH * VIT_PATCH * 3
    p["v_patch_w"] = nrm(next(keys), (k_vp, D_V))
    p["v_patch_b"] = jnp.zeros((D_V,), jnp.float32)
    p["v_cls"] = nrm(next(keys), (1, 1, D_V))
    p["v_pos"] = nrm(next(keys), (1, T, D_V))
    blocks = []
    for _ in range(VIT_DEPTH):
        blocks.append({
            "ln1_g": jnp.ones((D_V,), jnp.float32),
            "ln1_b": jnp.zeros((D_V,), jnp.float32),
            "qkv_w": nrm(next(keys), (D_V, 3 * D_V)),
            "qkv_b": jnp.zeros((3 * D_V,), jnp.float32),
            "proj_w": nrm(next(keys), (D_V, D_V)),
            "proj_b": jnp.zeros((D_V,), jnp.float32),
            "ln2_g": jnp.ones((D_V,), jnp.float32),
            "ln2_b": jnp.zeros((D_V,), jnp.float32),
            "fc1_w": nrm(next(keys), (D_V, 4 * D_V)),
            "fc1_b": jnp.zeros((4 * D_V,), jnp.float32),
            "fc2_w": nrm(next(keys), (4 * D_V, D_V)),
            "fc2_b": jnp.zeros((D_V,), jnp.float32),
        })
    p["v_blocks"] = blocks
    p["v_ln_g"] = jnp.ones((D_V,), jnp.float32)
    p["v_ln_b"] = jnp.zeros((D_V,), jnp.float32)

    # three heads fused into one matmul (identical math to 3 separate nn.Linear)
    p["head_w"] = nrm(next(keys), (D_V, N_OUT))
    p["head_b"] = nrm(next(keys), (N_OUT,))
    return p


def prepare_params(p, batch=B):
    """One-time init-side folding into kernel-ready slabs (exact linear transforms)."""
    f32 = jnp.float32
    q = {}

    # --- fold Conv2d(1,3,1) into the mamba patch-stem linear (48->D_M becomes 16->D_M)
    W3 = p["m_stem_w"].reshape(MAMBA_PATCH, MAMBA_PATCH, 3, D_M)
    q["m_stem_w"] = jnp.einsum("c,pqcd->pqd", p["proj_w"][0], W3).reshape(
        MAMBA_PATCH * MAMBA_PATCH, D_M)
    q["m_stem_b"] = (p["m_stem_b"]
                     + jnp.einsum("c,pqcd->d", p["proj_b"], W3)).reshape(1, D_M)
    q["m_ln_g"] = p["m_ln_g"].reshape(1, D_M)
    q["m_ln_b"] = p["m_ln_b"].reshape(1, D_M)
    q["m_fc1_w"] = p["m_fc1_w"]                                # (D_M, 2*M_HID)
    q["m_fc1_b"] = p["m_fc1_b"].reshape(1, 2 * M_HID)
    # fc2 zero-padded to K = 2*M_HID (lanes [M_HID:] of gelu(z)*roll(z) discarded)
    q["m_fc2_w"] = jnp.concatenate(
        [p["m_fc2_w"], jnp.zeros((M_HID, D_M), f32)], axis=0)  # (2*M_HID, D_M)
    q["m_fc2_b"] = p["m_fc2_b"].reshape(1, D_M)
    # mean-pool over mamba patches as a block-diagonal matmul
    q["pool"] = jnp.repeat(jnp.eye(batch, dtype=f32), NPM, axis=1) / NPM  # (B, B*NPM)

    # --- fold the (C,H,W)->patch permutation into the ViT patch embed ---
    G = IMG // VIT_PATCH
    Ph = jnp.arange(G).reshape(G, 1, 1, 1, 1)
    Pw = jnp.arange(G).reshape(1, G, 1, 1, 1)
    ph = jnp.arange(VIT_PATCH).reshape(1, 1, VIT_PATCH, 1, 1)
    pw = jnp.arange(VIT_PATCH).reshape(1, 1, 1, VIT_PATCH, 1)
    c = jnp.arange(3).reshape(1, 1, 1, 1, 3)
    perm = (c * (IMG * IMG) + (Ph * VIT_PATCH + ph) * IMG
            + (Pw * VIT_PATCH + pw)).reshape(NPV, VIT_PATCH * VIT_PATCH * 3)
    E = jax.nn.one_hot(perm, IMG_VEC, dtype=f32)               # (NPV, 48, 768)
    pe_w = jnp.einsum("pki,kj->ipj", E, p["v_patch_w"]).reshape(IMG_VEC, NPV * D_V)
    pe_b = jnp.tile(p["v_patch_b"], NPV)                       # (NPV*D_V,)

    # --- fold reshape_to_image into the patch embed: W_fold = r_w @ pe_w ---
    w_fold = p["r_w"] @ pe_w                                   # (D_M, NPV*D_V)
    b_fold = p["r_b"] @ pe_w + pe_b                            # (NPV*D_V,)
    # patch index moved to (block-)rows of the weight: wstack[p*D_M+k, d] = w_fold[k, p*D_V+d]
    q["wstack"] = w_fold.reshape(D_M, NPV, D_V).transpose(1, 0, 2).reshape(
        NPV * D_M, D_V)
    # replicate feature to all D_M-blocks via [I I ... I]
    q["tile"] = jnp.tile(jnp.eye(D_M, dtype=f32), (1, NPV))    # (D_M, NPV*D_M)

    # token construction constants: replicate-to-rows, block mask, cls+pos+bias base
    rep = jnp.zeros((batch * T, batch), f32)
    bmask = jnp.zeros((batch * T, NPV * D_M), f32)
    base = jnp.zeros((batch * T, D_V), f32)
    pos = p["v_pos"][0]
    cls = p["v_cls"][0, 0]
    for b in range(batch):
        rep = rep.at[b * T + 1:(b + 1) * T, b].set(1.0)
        base = base.at[b * T, :].set(cls + pos[0])
        for pp in range(NPV):
            r = b * T + 1 + pp
            bmask = bmask.at[r, pp * D_M:(pp + 1) * D_M].set(1.0)
            base = base.at[r, :].set(pos[1 + pp] + b_fold[pp * D_V:(pp + 1) * D_V])
    q["rep"], q["bmask"], q["base"] = rep, bmask, base

    # block-diagonal additive attention mask keeps folded batches independent
    bid = jnp.repeat(jnp.arange(batch), T)
    q["amask"] = jnp.where(bid[:, None] == bid[None, :], 0.0, NEG).astype(f32)

    # CLS-row selection matrix
    csel = jnp.zeros((batch, batch * T), f32)
    for b in range(batch):
        csel = csel.at[b, b * T].set(1.0)
    q["csel"] = csel

    # --- stack ViT block weights (fused QKV; proj split per head) ---
    st = lambda name: jnp.stack([blk[name] for blk in p["v_blocks"]])
    q["ln1_g"] = st("ln1_g").reshape(VIT_DEPTH, 1, D_V)
    q["ln1_b"] = st("ln1_b").reshape(VIT_DEPTH, 1, D_V)
    q["qkv_w"] = st("qkv_w")                                   # (depth, D_V, 3*D_V)
    q["qkv_b"] = st("qkv_b").reshape(VIT_DEPTH, 1, 3 * D_V)
    q["proj_w"] = st("proj_w").reshape(VIT_DEPTH * N_HEADS, HEAD_DIM, D_V)
    q["proj_b"] = st("proj_b").reshape(VIT_DEPTH, 1, D_V)
    q["ln2_g"] = st("ln2_g").reshape(VIT_DEPTH, 1, D_V)
    q["ln2_b"] = st("ln2_b").reshape(VIT_DEPTH, 1, D_V)
    q["fc1_w"] = st("fc1_w")
    q["fc1_b"] = st("fc1_b").reshape(VIT_DEPTH, 1, 4 * D_V)
    q["fc2_w"] = st("fc2_w")
    q["fc2_b"] = st("fc2_b").reshape(VIT_DEPTH, 1, D_V)
    q["v_ln_g"] = p["v_ln_g"].reshape(1, D_V)
    q["v_ln_b"] = p["v_ln_b"].reshape(1, D_V)

    # lane-dense padded fused heads (real N_OUT lanes sliced in the wrapper)
    q["head_w"] = jnp.zeros((D_V, OUT_PAD), f32).at[:, :N_OUT].set(p["head_w"])
    q["head_b"] = jnp.zeros((1, OUT_PAD), f32).at[0, :N_OUT].set(p["head_b"])
    return q


# --------------------------------- forward ------------------------------------
def forward(q, x_nchw):
    # Patchify the raw 1-channel image (the 1x1 conv is folded into the stem weights).
    g = IMG // MAMBA_PATCH
    xp = x_nchw[:, 0].reshape(B, g, MAMBA_PATCH, g, MAMBA_PATCH)
    xp = xp.transpose(0, 1, 3, 2, 4).reshape(B * NPM, MAMBA_PATCH * MAMBA_PATCH)

    heads = fused_forward(q, xp)[:, :N_OUT]                    # (B, N_OUT)
    d0, d1, d2 = OUT_DIMS
    return {
        "energy_loss_output": heads[:, :d0],
        "alpha_output": heads[:, d0:d0 + d1],
        "q0_output": heads[:, d0 + d1:d0 + d1 + d2],
    }


# ----------------------------------- main --------------------------------------
if __name__ == "__main__":
    key = jax.random.PRNGKey(0)
    pkey, xkey = jax.random.split(key)
    raw_params = init_params(pkey)
    params = prepare_params(raw_params)
    x = jax.random.normal(xkey, (B, 1, IMG, IMG), jnp.float32)  # NCHW, like PyTorch

    out = jax.jit(forward)(params, x)
    out = jax.block_until_ready(out)

    assert out["energy_loss_output"].shape == (B, OUT_DIMS[0])
    assert out["alpha_output"].shape == (B, OUT_DIMS[1])
    assert out["q0_output"].shape == (B, OUT_DIMS[2])
    assert all(bool(jnp.all(jnp.isfinite(v))) for v in out.values())
    print("KERNEL_OK")
</pallas_src>

<mosaic_0001>
module attributes {stable_mosaic.version = 11 : i64} {
  func.func @_fused_kernel(%arg0: memref<32x16xf32, #tpu.memory_space<vmem>>, %arg1: memref<16x32xf32, #tpu.memory_space<vmem>>, %arg2: memref<1x32xf32, #tpu.memory_space<vmem>>, %arg3: memref<1x32xf32, #tpu.memory_space<vmem>>, %arg4: memref<1x32xf32, #tpu.memory_space<vmem>>, %arg5: memref<32x128xf32, #tpu.memory_space<vmem>>, %arg6: memref<1x128xf32, #tpu.memory_space<vmem>>, %arg7: memref<128x32xf32, #tpu.memory_space<vmem>>, %arg8: memref<1x32xf32, #tpu.memory_space<vmem>>, %arg9: memref<2x32xf32, #tpu.memory_space<vmem>>, %arg10: memref<34x2xf32, #tpu.memory_space<vmem>>, %arg11: memref<32x512xf32, #tpu.memory_space<vmem>>, %arg12: memref<34x512xf32, #tpu.memory_space<vmem>>, %arg13: memref<512x32xf32, #tpu.memory_space<vmem>>, %arg14: memref<34x32xf32, #tpu.memory_space<vmem>>, %arg15: memref<34x34xf32, #tpu.memory_space<vmem>>, %arg16: memref<2x1x32xf32, #tpu.memory_space<vmem>>, %arg17: memref<2x1x32xf32, #tpu.memory_space<vmem>>, %arg18: memref<2x32x96xf32, #tpu.memory_space<vmem>>, %arg19: memref<2x1x96xf32, #tpu.memory_space<vmem>>, %arg20: memref<4x16x32xf32, #tpu.memory_space<vmem>>, %arg21: memref<2x1x32xf32, #tpu.memory_space<vmem>>, %arg22: memref<2x1x32xf32, #tpu.memory_space<vmem>>, %arg23: memref<2x1x32xf32, #tpu.memory_space<vmem>>, %arg24: memref<2x32x128xf32, #tpu.memory_space<vmem>>, %arg25: memref<2x1x128xf32, #tpu.memory_space<vmem>>, %arg26: memref<2x128x32xf32, #tpu.memory_space<vmem>>, %arg27: memref<2x1x32xf32, #tpu.memory_space<vmem>>, %arg28: memref<1x32xf32, #tpu.memory_space<vmem>>, %arg29: memref<1x32xf32, #tpu.memory_space<vmem>>, %arg30: memref<2x34xf32, #tpu.memory_space<vmem>>, %arg31: memref<32x128xf32, #tpu.memory_space<vmem>>, %arg32: memref<1x128xf32, #tpu.memory_space<vmem>>, %arg33: memref<2x128xf32, #tpu.memory_space<vmem>>) attributes {dimension_semantics = [], scalar_prefetch = 0 : i64, scratch_operands = 0 : i64, tpu.core_type = #tpu.core_type<tc>} {
    %c0 = arith.constant 0 : index
    %c0_0 = arith.constant 0 : index
    %0 = vector.load %arg0[%c0, %c0_0] : memref<32x16xf32, #tpu.memory_space<vmem>>, vector<32x16xf32>
    %c0_1 = arith.constant 0 : index
    %c0_2 = arith.constant 0 : index
    %1 = vector.load %arg1[%c0_1, %c0_2] : memref<16x32xf32, #tpu.memory_space<vmem>>, vector<16x32xf32>
    %cst = arith.constant dense<0.000000e+00> : vector<32x32xf32>
    %2 = tpu.matmul %0, %1, %cst {dimension_numbers = #tpu.dot_dimension_numbers<[1], [0], [0], [1], [0, 0, 1, 1], [], []>} : vector<32x16xf32>, vector<16x32xf32>, vector<32x32xf32> -> vector<32x32xf32>
    %c0_3 = arith.constant 0 : index
    %c0_4 = arith.constant 0 : index
    %3 = vector.load %arg2[%c0_3, %c0_4] : memref<1x32xf32, #tpu.memory_space<vmem>>, vector<1x32xf32>
    %4 = vector.broadcast %3 : vector<1x32xf32> to vector<32x32xf32>
    %5 = arith.addf %2, %4 : vector<32x32xf32>
    %c0_5 = arith.constant 0 : index
    %c0_6 = arith.constant 0 : index
    %6 = vector.load %arg3[%c0_5, %c0_6] : memref<1x32xf32, #tpu.memory_space<vmem>>, vector<1x32xf32>
    %c0_7 = arith.constant 0 : index
    %c0_8 = arith.constant 0 : index
    %7 = vector.load %arg4[%c0_7, %c0_8] : memref<1x32xf32, #tpu.memory_space<vmem>>, vector<1x32xf32>
    %cst_9 = arith.constant dense<0.000000e+00> : vector<32xf32>
    %8 = vector.multi_reduction <add>, %5, %cst_9 [1] : vector<32x32xf32> to vector<32xf32>
    %9 = vector.shape_cast %8 : vector<32xf32> to vector<32x1xf32>
    %cst_10 = arith.constant 3.200000e+01 : f32
    %10 = vector.broadcast %cst_10 : f32 to vector<32x1xf32>
    %11 = arith.divf %9, %10 : vector<32x1xf32>
    %12 = vector.broadcast %11 : vector<32x1xf32> to vector<32x32xf32>
    %13 = arith.subf %5, %12 : vector<32x32xf32>
    %14 = arith.mulf %13, %13 : vector<32x32xf32>
    %cst_11 = arith.constant dense<0.000000e+00> : vector<32xf32>
    %15 = vector.multi_reduction <add>, %14, %cst_11 [1] : vector<32x32xf32> to vector<32xf32>
    %16 = vector.shape_cast %15 : vector<32xf32> to vector<32x1xf32>
    %cst_12 = arith.constant 3.200000e+01 : f32
    %17 = vector.broadcast %cst_12 : f32 to vector<32x1xf32>
    %18 = arith.divf %16, %17 : vector<32x1xf32>
    %19 = vector.broadcast %11 : vector<32x1xf32> to vector<32x32xf32>
    %20 = arith.subf %5, %19 : vector<32x32xf32>
    %cst_13 = arith.constant 9.99999974E-6 : f32
    %21 = vector.broadcast %cst_13 : f32 to vector<32x1xf32>
    %22 = arith.addf %18, %21 : vector<32x1xf32>
    %23 = math.rsqrt %22 : vector<32x1xf32>
    %24 = vector.broadcast %23 : vector<32x1xf32> to vector<32x32xf32>
    %25 = arith.mulf %20, %24 : vector<32x32xf32>
    %26 = vector.broadcast %6 : vector<1x32xf32> to vector<32x32xf32>
    %27 = arith.mulf %25, %26 : vector<32x32xf32>
    %28 = vector.broadcast %7 : vector<1x32xf32> to vector<32x32xf32>
    %29 = arith.addf %27, %28 : vector<32x32xf32>
    %c0_14 = arith.constant 0 : index
    %c0_15 = arith.constant 0 : index
    %30 = vector.load %arg5[%c0_14, %c0_15] : memref<32x128xf32, #tpu.memory_space<vmem>>, vector<32x128xf32>
    %cst_16 = arith.constant dense<0.000000e+00> : vector<32x128xf32>
    %31 = tpu.matmul %29, %30, %cst_16 {dimension_numbers = #tpu.dot_dimension_numbers<[1], [0], [0], [1], [0, 0, 1, 1], [], []>} : vector<32x32xf32>, vector<32x128xf32>, vector<32x128xf32> -> vector<32x128xf32>
    %c0_17 = arith.constant 0 : index
    %c0_18 = arith.constant 0 : index
    %32 = vector.load %arg6[%c0_17, %c0_18] : memref<1x128xf32, #tpu.memory_space<vmem>>, vector<1x128xf32>
    %33 = vector.broadcast %32 : vector<1x128xf32> to vector<32x128xf32>
    %34 = arith.addf %31, %33 : vector<32x128xf32>
    %35 = arith.mulf %34, %34 : vector<32x128xf32>
    %36 = arith.mulf %34, %35 : vector<32x128xf32>
    %cst_19 = arith.constant 4.471500e-02 : f32
    %37 = vector.broadcast %cst_19 : f32 to vector<32x128xf32>
    %38 = arith.mulf %37, %36 : vector<32x128xf32>
    %39 = arith.addf %34, %38 : vector<32x128xf32>
    %cst_20 = arith.constant 0.797884583 : f32
    %40 = vector.broadcast %cst_20 : f32 to vector<32x128xf32>
    %41 = arith.mulf %40, %39 : vector<32x128xf32>
    %42 = math.tanh %41 : vector<32x128xf32>
    %cst_21 = arith.constant 1.000000e+00 : f32
    %43 = vector.broadcast %cst_21 : f32 to vector<32x128xf32>
    %44 = arith.addf %43, %42 : vector<32x128xf32>
    %cst_22 = arith.constant 5.000000e-01 : f32
    %45 = vector.broadcast %cst_22 : f32 to vector<32x128xf32>
    %46 = arith.mulf %45, %44 : vector<32x128xf32>
    %47 = arith.mulf %34, %46 : vector<32x128xf32>
    %c64_i32 = arith.constant 64 : i32
    %48 = tpu.dynamic_rotate %34 by %c64_i32 dim 1 : vector<32x128xf32>, i32 -> vector<32x128xf32>
    %49 = arith.mulf %47, %48 : vector<32x128xf32>
    %c0_23 = arith.constant 0 : index
    %c0_24 = arith.constant 0 : index
    %50 = vector.load %arg7[%c0_23, %c0_24] : memref<128x32xf32, #tpu.memory_space<vmem>>, vector<128x32xf32>
    %cst_25 = arith.constant dense<0.000000e+00> : vector<32x32xf32>
    %51 = tpu.matmul %49, %50, %cst_25 {dimension_numbers = #tpu.dot_dimension_numbers<[1], [0], [0], [1], [0, 0, 1, 1], [], []>} : vector<32x128xf32>, vector<128x32xf32>, vector<32x32xf32> -> vector<32x32xf32>
    %52 = arith.addf %5, %51 : vector<32x32xf32>
    %c0_26 = arith.constant 0 : index
    %c0_27 = arith.constant 0 : index
    %53 = vector.load %arg8[%c0_26, %c0_27] : memref<1x32xf32, #tpu.memory_space<vmem>>, vector<1x32xf32>
    %54 = vector.broadcast %53 : vector<1x32xf32> to vector<32x32xf32>
    %55 = arith.addf %52, %54 : vector<32x32xf32>
    %c0_28 = arith.constant 0 : index
    %c0_29 = arith.constant 0 : index
    %56 = vector.load %arg9[%c0_28, %c0_29] : memref<2x32xf32, #tpu.memory_space<vmem>>, vector<2x32xf32>
    %cst_30 = arith.constant dense<0.000000e+00> : vector<2x32xf32>
    %57 = tpu.matmul %56, %55, %cst_30 {dimension_numbers = #tpu.dot_dimension_numbers<[1], [0], [0], [1], [0, 0, 1, 1], [], []>} : vector<2x32xf32>, vector<32x32xf32>, vector<2x32xf32> -> vector<2x32xf32>
    %c0_31 = arith.constant 0 : index
    %c0_32 = arith.constant 0 : index
    %58 = vector.load %arg10[%c0_31, %c0_32] : memref<34x2xf32, #tpu.memory_space<vmem>>, vector<34x2xf32>
    %c0_33 = arith.constant 0 : index
    %c0_34 = arith.constant 0 : index
    %59 = vector.load %arg11[%c0_33, %c0_34] : memref<32x512xf32, #tpu.memory_space<vmem>>, vector<32x512xf32>
    %cst_35 = arith.constant dense<0.000000e+00> : vector<2x512xf32>
    %60 = tpu.matmul %57, %59, %cst_35 {dimension_numbers = #tpu.dot_dimension_numbers<[1], [0], [0], [1], [0, 0, 1, 1], [], []>} : vector<2x32xf32>, vector<32x512xf32>, vector<2x512xf32> -> vector<2x512xf32>
    %cst_36 = arith.constant dense<0.000000e+00> : vector<34x512xf32>
    %61 = tpu.matmul %58, %60, %cst_36 {dimension_numbers = #tpu.dot_dimension_numbers<[1], [0], [0], [1], [0, 0, 1, 1], [], []>} : vector<34x2xf32>, vector<2x512xf32>, vector<34x512xf32> -> vector<34x512xf32>
    %c0_37 = arith.constant 0 : index
    %c0_38 = arith.constant 0 : index
    %62 = vector.load %arg14[%c0_37, %c0_38] : memref<34x32xf32, #tpu.memory_space<vmem>>, vector<34x32xf32>
    %c0_39 = arith.constant 0 : index
    %c0_40 = arith.constant 0 : index
    %63 = vector.load %arg12[%c0_39, %c0_40] : memref<34x512xf32, #tpu.memory_space<vmem>>, vector<34x512xf32>
    %64 = arith.mulf %61, %63 : vector<34x512xf32>
    %c0_41 = arith.constant 0 : index
    %c0_42 = arith.constant 0 : index
    %65 = vector.load %arg13[%c0_41, %c0_42] : memref<512x32xf32, #tpu.memory_space<vmem>>, vector<512x32xf32>
    %cst_43 = arith.constant dense<0.000000e+00> : vector<34x32xf32>
    %66 = tpu.matmul %64, %65, %cst_43 {dimension_numbers = #tpu.dot_dimension_numbers<[1], [0], [0], [1], [0, 0, 1, 1], [], []>} : vector<34x512xf32>, vector<512x32xf32>, vector<34x32xf32> -> vector<34x32xf32>
    %67 = arith.addf %62, %66 : vector<34x32xf32>
    %c0_44 = arith.constant 0 : index
    %c0_45 = arith.constant 0 : index
    %68 = vector.load %arg15[%c0_44, %c0_45] : memref<34x34xf32, #tpu.memory_space<vmem>>, vector<34x34xf32>
    %c0_46 = arith.constant 0 : index
    %c0_47 = arith.constant 0 : index
    %c0_48 = arith.constant 0 : index
    %69 = vector.load %arg16[%c0_46, %c0_47, %c0_48] : memref<2x1x32xf32, #tpu.memory_space<vmem>>, vector<1x1x32xf32>
    %70 = vector.shape_cast %69 : vector<1x1x32xf32> to vector<1x32xf32>
    %c0_49 = arith.constant 0 : index
    %c0_50 = arith.constant 0 : index
    %c0_51 = arith.constant 0 : index
    %71 = vector.load %arg17[%c0_49, %c0_50, %c0_51] : memref<2x1x32xf32, #tpu.memory_space<vmem>>, vector<1x1x32xf32>
    %72 = vector.shape_cast %71 : vector<1x1x32xf32> to vector<1x32xf32>
    %cst_52 = arith.constant dense<0.000000e+00> : vector<34xf32>
    %73 = vector.multi_reduction <add>, %67, %cst_52 [1] : vector<34x32xf32> to vector<34xf32>
    %74 = vector.shape_cast %73 : vector<34xf32> to vector<34x1xf32>
    %cst_53 = arith.constant 3.200000e+01 : f32
    %75 = vector.broadcast %cst_53 : f32 to vector<34x1xf32>
    %76 = arith.divf %74, %75 : vector<34x1xf32>
    %77 = vector.broadcast %76 : vector<34x1xf32> to vector<34x32xf32>
    %78 = arith.subf %67, %77 : vector<34x32xf32>
    %79 = arith.mulf %78, %78 : vector<34x32xf32>
    %cst_54 = arith.constant dense<0.000000e+00> : vector<34xf32>
    %80 = vector.multi_reduction <add>, %79, %cst_54 [1] : vector<34x32xf32> to vector<34xf32>
    %81 = vector.shape_cast %80 : vector<34xf32> to vector<34x1xf32>
    %cst_55 = arith.constant 3.200000e+01 : f32
    %82 = vector.broadcast %cst_55 : f32 to vector<34x1xf32>
    %83 = arith.divf %81, %82 : vector<34x1xf32>
    %84 = vector.broadcast %76 : vector<34x1xf32> to vector<34x32xf32>
    %85 = arith.subf %67, %84 : vector<34x32xf32>
    %cst_56 = arith.constant 9.99999997E-7 : f32
    %86 = vector.broadcast %cst_56 : f32 to vector<34x1xf32>
    %87 = arith.addf %83, %86 : vector<34x1xf32>
    %88 = math.rsqrt %87 : vector<34x1xf32>
    %89 = vector.broadcast %88 : vector<34x1xf32> to vector<34x32xf32>
    %90 = arith.mulf %85, %89 : vector<34x32xf32>
    %91 = vector.broadcast %70 : vector<1x32xf32> to vector<34x32xf32>
    %92 = arith.mulf %90, %91 : vector<34x32xf32>
    %93 = vector.broadcast %72 : vector<1x32xf32> to vector<34x32xf32>
    %94 = arith.addf %92, %93 : vector<34x32xf32>
    %c0_57 = arith.constant 0 : index
    %c0_58 = arith.constant 0 : index
    %c0_59 = arith.constant 0 : index
    %95 = vector.load %arg18[%c0_57, %c0_58, %c0_59] : memref<2x32x96xf32, #tpu.memory_space<vmem>>, vector<1x32x96xf32>
    %96 = vector.shape_cast %95 : vector<1x32x96xf32> to vector<32x96xf32>
    %cst_60 = arith.constant dense<0.000000e+00> : vector<34x96xf32>
    %97 = tpu.matmul %94, %96, %cst_60 {dimension_numbers = #tpu.dot_dimension_numbers<[1], [0], [0], [1], [0, 0, 1, 1], [], []>} : vector<34x32xf32>, vector<32x96xf32>, vector<34x96xf32> -> vector<34x96xf32>
    %c0_61 = arith.constant 0 : index
    %c0_62 = arith.constant 0 : index
    %c0_63 = arith.constant 0 : index
    %98 = vector.load %arg19[%c0_61, %c0_62, %c0_63] : memref<2x1x96xf32, #tpu.memory_space<vmem>>, vector<1x1x96xf32>
    %99 = vector.shape_cast %98 : vector<1x1x96xf32> to vector<1x96xf32>
    %100 = vector.broadcast %99 : vector<1x96xf32> to vector<34x96xf32>
    %101 = arith.addf %97, %100 : vector<34x96xf32>
    %c0_64 = arith.constant 0 : index
    %c0_65 = arith.constant 0 : index
    %c0_66 = arith.constant 0 : index
    %102 = vector.load %arg21[%c0_64, %c0_65, %c0_66] : memref<2x1x32xf32, #tpu.memory_space<vmem>>, vector<1x1x32xf32>
    %103 = vector.shape_cast %102 : vector<1x1x32xf32> to vector<1x32xf32>
    %104 = vector.extract_strided_slice %101 {offsets = [0, 0], sizes = [34, 16], strides = [1, 1]} : vector<34x96xf32> to vector<34x16xf32>
    %105 = vector.extract_strided_slice %101 {offsets = [0, 32], sizes = [34, 16], strides = [1, 1]} : vector<34x96xf32> to vector<34x16xf32>
    %106 = vector.extract_strided_slice %101 {offsets = [0, 64], sizes = [34, 16], strides = [1, 1]} : vector<34x96xf32> to vector<34x16xf32>
    "tpu.trace_start"() <{level = 10 : i32, message = "qd,kd->qk"}> : () -> ()
    %cst_67 = arith.constant dense<0.000000e+00> : vector<34x34xf32>
    %107 = tpu.matmul %104, %105, %cst_67 {dimension_numbers = #tpu.dot_dimension_numbers<[1], [1], [0], [0], [0, 0, 1, 0], [], []>} : vector<34x16xf32>, vector<34x16xf32>, vector<34x34xf32> -> vector<34x34xf32>
    "tpu.trace_stop"() : () -> ()
    %cst_68 = arith.constant 2.500000e-01 : f32
    %108 = vector.broadcast %cst_68 : f32 to vector<34x34xf32>
    %109 = arith.mulf %107, %108 : vector<34x34xf32>
    %110 = arith.addf %109, %68 : vector<34x34xf32>
    %cst_69 = arith.constant dense<0xFF800000> : vector<34xf32>
    %111 = vector.multi_reduction <maximumf>, %110, %cst_69 [1] : vector<34x34xf32> to vector<34xf32>
    %112 = vector.shape_cast %111 : vector<34xf32> to vector<34x1xf32>
    %113 = vector.broadcast %112 : vector<34x1xf32> to vector<34x34xf32>
    %114 = arith.subf %110, %113 : vector<34x34xf32>
    %115 = math.exp %114 : vector<34x34xf32>
    %cst_70 = arith.constant dense<0.000000e+00> : vector<34xf32>
    %116 = vector.multi_reduction <add>, %115, %cst_70 [1] : vector<34x34xf32> to vector<34xf32>
    %117 = vector.shape_cast %116 : vector<34xf32> to vector<34x1xf32>
    %118 = tpu.reciprocal %117 {approx = true} : vector<34x1xf32> -> vector<34x1xf32>
    %119 = vector.broadcast %118 : vector<34x1xf32> to vector<34x34xf32>
    %120 = arith.mulf %115, %119 : vector<34x34xf32>
    %cst_71 = arith.constant dense<0.000000e+00> : vector<34x16xf32>
    %121 = tpu.matmul %120, %106, %cst_71 {dimension_numbers = #tpu.dot_dimension_numbers<[1], [0], [0], [1], [0, 0, 1, 1], [], []>} : vector<34x34xf32>, vector<34x16xf32>, vector<34x16xf32> -> vector<34x16xf32>
    %c0_72 = arith.constant 0 : index
    %c0_73 = arith.constant 0 : index
    %c0_74 = arith.constant 0 : index
    %122 = vector.load %arg20[%c0_72, %c0_73, %c0_74] : memref<4x16x32xf32, #tpu.memory_space<vmem>>, vector<1x16x32xf32>
    %123 = vector.shape_cast %122 : vector<1x16x32xf32> to vector<16x32xf32>
    %cst_75 = arith.constant dense<0.000000e+00> : vector<34x32xf32>
    %124 = tpu.matmul %121, %123, %cst_75 {dimension_numbers = #tpu.dot_dimension_numbers<[1], [0], [0], [1], [0, 0, 1, 1], [], []>} : vector<34x16xf32>, vector<16x32xf32>, vector<34x32xf32> -> vector<34x32xf32>
    %125 = vector.broadcast %103 : vector<1x32xf32> to vector<34x32xf32>
    %126 = arith.addf %125, %124 : vector<34x32xf32>
    %127 = vector.extract_strided_slice %101 {offsets = [0, 16], sizes = [34, 16], strides = [1, 1]} : vector<34x96xf32> to vector<34x16xf32>
    %128 = vector.extract_strided_slice %101 {offsets = [0, 48], sizes = [34, 16], strides = [1, 1]} : vector<34x96xf32> to vector<34x16xf32>
    %129 = vector.extract_strided_slice %101 {offsets = [0, 80], sizes = [34, 16], strides = [1, 1]} : vector<34x96xf32> to vector<34x16xf32>
    "tpu.trace_start"() <{level = 10 : i32, message = "qd,kd->qk"}> : () -> ()
    %cst_76 = arith.constant dense<0.000000e+00> : vector<34x34xf32>
    %130 = tpu.matmul %127, %128, %cst_76 {dimension_numbers = #tpu.dot_dimension_numbers<[1], [1], [0], [0], [0, 0, 1, 0], [], []>} : vector<34x16xf32>, vector<34x16xf32>, vector<34x34xf32> -> vector<34x34xf32>
    "tpu.trace_stop"() : () -> ()
    %cst_77 = arith.constant 2.500000e-01 : f32
    %131 = vector.broadcast %cst_77 : f32 to vector<34x34xf32>
    %132 = arith.mulf %130, %131 : vector<34x34xf32>
    %133 = arith.addf %132, %68 : vector<34x34xf32>
    %cst_78 = arith.constant dense<0xFF800000> : vector<34xf32>
    %134 = vector.multi_reduction <maximumf>, %133, %cst_78 [1] : vector<34x34xf32> to vector<34xf32>
    %135 = vector.shape_cast %134 : vector<34xf32> to vector<34x1xf32>
    %136 = vector.broadcast %135 : vector<34x1xf32> to vector<34x34xf32>
    %137 = arith.subf %133, %136 : vector<34x34xf32>
    %138 = math.exp %137 : vector<34x34xf32>
    %cst_79 = arith.constant dense<0.000000e+00> : vector<34xf32>
    %139 = vector.multi_reduction <add>, %138, %cst_79 [1] : vector<34x34xf32> to vector<34xf32>
    %140 = vector.shape_cast %139 : vector<34xf32> to vector<34x1xf32>
    %141 = tpu.reciprocal %140 {approx = true} : vector<34x1xf32> -> vector<34x1xf32>
    %142 = vector.broadcast %141 : vector<34x1xf32> to vector<34x34xf32>
    %143 = arith.mulf %138, %142 : vector<34x34xf32>
    %cst_80 = arith.constant dense<0.000000e+00> : vector<34x16xf32>
    %144 = tpu.matmul %143, %129, %cst_80 {dimension_numbers = #tpu.dot_dimension_numbers<[1], [0], [0], [1], [0, 0, 1, 1], [], []>} : vector<34x34xf32>, vector<34x16xf32>, vector<34x16xf32> -> vector<34x16xf32>
    %c1 = arith.constant 1 : index
    %c0_81 = arith.constant 0 : index
    %c0_82 = arith.constant 0 : index
    %145 = vector.load %arg20[%c1, %c0_81, %c0_82] : memref<4x16x32xf32, #tpu.memory_space<vmem>>, vector<1x16x32xf32>
    %146 = vector.shape_cast %145 : vector<1x16x32xf32> to vector<16x32xf32>
    %cst_83 = arith.constant dense<0.000000e+00> : vector<34x32xf32>
    %147 = tpu.matmul %144, %146, %cst_83 {dimension_numbers = #tpu.dot_dimension_numbers<[1], [0], [0], [1], [0, 0, 1, 1], [], []>} : vector<34x16xf32>, vector<16x32xf32>, vector<34x32xf32> -> vector<34x32xf32>
    %148 = arith.addf %126, %147 : vector<34x32xf32>
    %149 = arith.addf %67, %148 : vector<34x32xf32>
    %c0_84 = arith.constant 0 : index
    %c0_85 = arith.constant 0 : index
    %c0_86 = arith.constant 0 : index
    %150 = vector.load %arg22[%c0_84, %c0_85, %c0_86] : memref<2x1x32xf32, #tpu.memory_space<vmem>>, vector<1x1x32xf32>
    %151 = vector.shape_cast %150 : vector<1x1x32xf32> to vector<1x32xf32>
    %c0_87 = arith.constant 0 : index
    %c0_88 = arith.constant 0 : index
    %c0_89 = arith.constant 0 : index
    %152 = vector.load %arg23[%c0_87, %c0_88, %c0_89] : memref<2x1x32xf32, #tpu.memory_space<vmem>>, vector<1x1x32xf32>
    %153 = vector.shape_cast %152 : vector<1x1x32xf32> to vector<1x32xf32>
    %cst_90 = arith.constant dense<0.000000e+00> : vector<34xf32>
    %154 = vector.multi_reduction <add>, %149, %cst_90 [1] : vector<34x32xf32> to vector<34xf32>
    %155 = vector.shape_cast %154 : vector<34xf32> to vector<34x1xf32>
    %cst_91 = arith.constant 3.200000e+01 : f32
    %156 = vector.broadcast %cst_91 : f32 to vector<34x1xf32>
    %157 = arith.divf %155, %156 : vector<34x1xf32>
    %158 = vector.broadcast %157 : vector<34x1xf32> to vector<34x32xf32>
    %159 = arith.subf %149, %158 : vector<34x32xf32>
    %160 = arith.mulf %159, %159 : vector<34x32xf32>
    %cst_92 = arith.constant dense<0.000000e+00> : vector<34xf32>
    %161 = vector.multi_reduction <add>, %160, %cst_92 [1] : vector<34x32xf32> to vector<34xf32>
    %162 = vector.shape_cast %161 : vector<34xf32> to vector<34x1xf32>
    %cst_93 = arith.constant 3.200000e+01 : f32
    %163 = vector.broadcast %cst_93 : f32 to vector<34x1xf32>
    %164 = arith.divf %162, %163 : vector<34x1xf32>
    %165 = vector.broadcast %157 : vector<34x1xf32> to vector<34x32xf32>
    %166 = arith.subf %149, %165 : vector<34x32xf32>
    %cst_94 = arith.constant 9.99999997E-7 : f32
    %167 = vector.broadcast %cst_94 : f32 to vector<34x1xf32>
    %168 = arith.addf %164, %167 : vector<34x1xf32>
    %169 = math.rsqrt %168 : vector<34x1xf32>
    %170 = vector.broadcast %169 : vector<34x1xf32> to vector<34x32xf32>
    %171 = arith.mulf %166, %170 : vector<34x32xf32>
    %172 = vector.broadcast %151 : vector<1x32xf32> to vector<34x32xf32>
    %173 = arith.mulf %171, %172 : vector<34x32xf32>
    %174 = vector.broadcast %153 : vector<1x32xf32> to vector<34x32xf32>
    %175 = arith.addf %173, %174 : vector<34x32xf32>
    %c0_95 = arith.constant 0 : index
    %c0_96 = arith.constant 0 : index
    %c0_97 = arith.constant 0 : index
    %176 = vector.load %arg24[%c0_95, %c0_96, %c0_97] : memref<2x32x128xf32, #tpu.memory_space<vmem>>, vector<1x32x128xf32>
    %177 = vector.shape_cast %176 : vector<1x32x128xf32> to vector<32x128xf32>
    %cst_98 = arith.constant dense<0.000000e+00> : vector<34x128xf32>
    %178 = tpu.matmul %175, %177, %cst_98 {dimension_numbers = #tpu.dot_dimension_numbers<[1], [0], [0], [1], [0, 0, 1, 1], [], []>} : vector<34x32xf32>, vector<32x128xf32>, vector<34x128xf32> -> vector<34x128xf32>
    %c0_99 = arith.constant 0 : index
    %c0_100 = arith.constant 0 : index
    %c0_101 = arith.constant 0 : index
    %179 = vector.load %arg25[%c0_99, %c0_100, %c0_101] : memref<2x1x128xf32, #tpu.memory_space<vmem>>, vector<1x1x128xf32>
    %180 = vector.shape_cast %179 : vector<1x1x128xf32> to vector<1x128xf32>
    %181 = vector.broadcast %180 : vector<1x128xf32> to vector<34x128xf32>
    %182 = arith.addf %178, %181 : vector<34x128xf32>
    %183 = arith.mulf %182, %182 : vector<34x128xf32>
    %184 = arith.mulf %182, %183 : vector<34x128xf32>
    %cst_102 = arith.constant 4.471500e-02 : f32
    %185 = vector.broadcast %cst_102 : f32 to vector<34x128xf32>
    %186 = arith.mulf %185, %184 : vector<34x128xf32>
    %187 = arith.addf %182, %186 : vector<34x128xf32>
    %cst_103 = arith.constant 0.797884583 : f32
    %188 = vector.broadcast %cst_103 : f32 to vector<34x128xf32>
    %189 = arith.mulf %188, %187 : vector<34x128xf32>
    %190 = math.tanh %189 : vector<34x128xf32>
    %cst_104 = arith.constant 1.000000e+00 : f32
    %191 = vector.broadcast %cst_104 : f32 to vector<34x128xf32>
    %192 = arith.addf %191, %190 : vector<34x128xf32>
    %cst_105 = arith.constant 5.000000e-01 : f32
    %193 = vector.broadcast %cst_105 : f32 to vector<34x128xf32>
    %194 = arith.mulf %193, %192 : vector<34x128xf32>
    %195 = arith.mulf %182, %194 : vector<34x128xf32>
    %c0_106 = arith.constant 0 : index
    %c0_107 = arith.constant 0 : index
    %c0_108 = arith.constant 0 : index
    %196 = vector.load %arg26[%c0_106, %c0_107, %c0_108] : memref<2x128x32xf32, #tpu.memory_space<vmem>>, vector<1x128x32xf32>
    %197 = vector.shape_cast %196 : vector<1x128x32xf32> to vector<128x32xf32>
    %cst_109 = arith.constant dense<0.000000e+00> : vector<34x32xf32>
    %198 = tpu.matmul %195, %197, %cst_109 {dimension_numbers = #tpu.dot_dimension_numbers<[1], [0], [0], [1], [0, 0, 1, 1], [], []>} : vector<34x128xf32>, vector<128x32xf32>, vector<34x32xf32> -> vector<34x32xf32>
    %199 = arith.addf %149, %198 : vector<34x32xf32>
    %c0_110 = arith.constant 0 : index
    %c0_111 = arith.constant 0 : index
    %c0_112 = arith.constant 0 : index
    %200 = vector.load %arg27[%c0_110, %c0_111, %c0_112] : memref<2x1x32xf32, #tpu.memory_space<vmem>>, vector<1x1x32xf32>
    %201 = vector.shape_cast %200 : vector<1x1x32xf32> to vector<1x32xf32>
    %202 = vector.broadcast %201 : vector<1x32xf32> to vector<34x32xf32>
    %203 = arith.addf %199, %202 : vector<34x32xf32>
    %c1_113 = arith.constant 1 : index
    %c0_114 = arith.constant 0 : index
    %c0_115 = arith.constant 0 : index
    %204 = vector.load %arg16[%c1_113, %c0_114, %c0_115] : memref<2x1x32xf32, #tpu.memory_space<vmem>>, vector<1x1x32xf32>
    %205 = vector.shape_cast %204 : vector<1x1x32xf32> to vector<1x32xf32>
    %c1_116 = arith.constant 1 : index
    %c0_117 = arith.constant 0 : index
    %c0_118 = arith.constant 0 : index
    %206 = vector.load %arg17[%c1_116, %c0_117, %c0_118] : memref<2x1x32xf32, #tpu.memory_space<vmem>>, vector<1x1x32xf32>
    %207 = vector.shape_cast %206 : vector<1x1x32xf32> to vector<1x32xf32>
    %cst_119 = arith.constant dense<0.000000e+00> : vector<34xf32>
    %208 = vector.multi_reduction <add>, %203, %cst_119 [1] : vector<34x32xf32> to vector<34xf32>
    %209 = vector.shape_cast %208 : vector<34xf32> to vector<34x1xf32>
    %cst_120 = arith.constant 3.200000e+01 : f32
    %210 = vector.broadcast %cst_120 : f32 to vector<34x1xf32>
    %211 = arith.divf %209, %210 : vector<34x1xf32>
    %212 = vector.broadcast %211 : vector<34x1xf32> to vector<34x32xf32>
    %213 = arith.subf %203, %212 : vector<34x32xf32>
    %214 = arith.mulf %213, %213 : vector<34x32xf32>
    %cst_121 = arith.constant dense<0.000000e+00> : vector<34xf32>
    %215 = vector.multi_reduction <add>, %214, %cst_121 [1] : vector<34x32xf32> to vector<34xf32>
    %216 = vector.shape_cast %215 : vector<34xf32> to vector<34x1xf32>
    %cst_122 = arith.constant 3.200000e+01 : f32
    %217 = vector.broadcast %cst_122 : f32 to vector<34x1xf32>
    %218 = arith.divf %216, %217 : vector<34x1xf32>
    %219 = vector.broadcast %211 : vector<34x1xf32> to vector<34x32xf32>
    %220 = arith.subf %203, %219 : vector<34x32xf32>
    %cst_123 = arith.constant 9.99999997E-7 : f32
    %221 = vector.broadcast %cst_123 : f32 to vector<34x1xf32>
    %222 = arith.addf %218, %221 : vector<34x1xf32>
    %223 = math.rsqrt %222 : vector<34x1xf32>
    %224 = vector.broadcast %223 : vector<34x1xf32> to vector<34x32xf32>
    %225 = arith.mulf %220, %224 : vector<34x32xf32>
    %226 = vector.broadcast %205 : vector<1x32xf32> to vector<34x32xf32>
    %227 = arith.mulf %225, %226 : vector<34x32xf32>
    %228 = vector.broadcast %207 : vector<1x32xf32> to vector<34x32xf32>
    %229 = arith.addf %227, %228 : vector<34x32xf32>
    %c1_124 = arith.constant 1 : index
    %c0_125 = arith.constant 0 : index
    %c0_126 = arith.constant 0 : index
    %230 = vector.load %arg18[%c1_124, %c0_125, %c0_126] : memref<2x32x96xf32, #tpu.memory_space<vmem>>, vector<1x32x96xf32>
    %231 = vector.shape_cast %230 : vector<1x32x96xf32> to vector<32x96xf32>
    %cst_127 = arith.constant dense<0.000000e+00> : vector<34x96xf32>
    %232 = tpu.matmul %229, %231, %cst_127 {dimension_numbers = #tpu.dot_dimension_numbers<[1], [0], [0], [1], [0, 0, 1, 1], [], []>} : vector<34x32xf32>, vector<32x96xf32>, vector<34x96xf32> -> vector<34x96xf32>
    %c1_128 = arith.constant 1 : index
    %c0_129 = arith.constant 0 : index
    %c0_130 = arith.constant 0 : index
    %233 = vector.load %arg19[%c1_128, %c0_129, %c0_130] : memref<2x1x96xf32, #tpu.memory_space<vmem>>, vector<1x1x96xf32>
    %234 = vector.shape_cast %233 : vector<1x1x96xf32> to vector<1x96xf32>
    %235 = vector.broadcast %234 : vector<1x96xf32> to vector<34x96xf32>
    %236 = arith.addf %232, %235 : vector<34x96xf32>
    %c1_131 = arith.constant 1 : index
    %c0_132 = arith.constant 0 : index
    %c0_133 = arith.constant 0 : index
    %237 = vector.load %arg21[%c1_131, %c0_132, %c0_133] : memref<2x1x32xf32, #tpu.memory_space<vmem>>, vector<1x1x32xf32>
    %238 = vector.shape_cast %237 : vector<1x1x32xf32> to vector<1x32xf32>
    %239 = vector.extract_strided_slice %236 {offsets = [0, 0], sizes = [34, 16], strides = [1, 1]} : vector<34x96xf32> to vector<34x16xf32>
    %240 = vector.extract_strided_slice %236 {offsets = [0, 32], sizes = [34, 16], strides = [1, 1]} : vector<34x96xf32> to vector<34x16xf32>
    %241 = vector.extract_strided_slice %236 {offsets = [0, 64], sizes = [34, 16], strides = [1, 1]} : vector<34x96xf32> to vector<34x16xf32>
    "tpu.trace_start"() <{level = 10 : i32, message = "qd,kd->qk"}> : () -> ()
    %cst_134 = arith.constant dense<0.000000e+00> : vector<34x34xf32>
    %242 = tpu.matmul %239, %240, %cst_134 {dimension_numbers = #tpu.dot_dimension_numbers<[1], [1], [0], [0], [0, 0, 1, 0], [], []>} : vector<34x16xf32>, vector<34x16xf32>, vector<34x34xf32> -> vector<34x34xf32>
    "tpu.trace_stop"() : () -> ()
    %cst_135 = arith.constant 2.500000e-01 : f32
    %243 = vector.broadcast %cst_135 : f32 to vector<34x34xf32>
    %244 = arith.mulf %242, %243 : vector<34x34xf32>
    %245 = arith.addf %244, %68 : vector<34x34xf32>
    %cst_136 = arith.constant dense<0xFF800000> : vector<34xf32>
    %246 = vector.multi_reduction <maximumf>, %245, %cst_136 [1] : vector<34x34xf32> to vector<34xf32>
    %247 = vector.shape_cast %246 : vector<34xf32> to vector<34x1xf32>
    %248 = vector.broadcast %247 : vector<34x1xf32> to vector<34x34xf32>
    %249 = arith.subf %245, %248 : vector<34x34xf32>
    %250 = math.exp %249 : vector<34x34xf32>
    %cst_137 = arith.constant dense<0.000000e+00> : vector<34xf32>
    %251 = vector.multi_reduction <add>, %250, %cst_137 [1] : vector<34x34xf32> to vector<34xf32>
    %252 = vector.shape_cast %251 : vector<34xf32> to vector<34x1xf32>
    %253 = tpu.reciprocal %252 {approx = true} : vector<34x1xf32> -> vector<34x1xf32>
    %254 = vector.broadcast %253 : vector<34x1xf32> to vector<34x34xf32>
    %255 = arith.mulf %250, %254 : vector<34x34xf32>
    %cst_138 = arith.constant dense<0.000000e+00> : vector<34x16xf32>
    %256 = tpu.matmul %255, %241, %cst_138 {dimension_numbers = #tpu.dot_dimension_numbers<[1], [0], [0], [1], [0, 0, 1, 1], [], []>} : vector<34x34xf32>, vector<34x16xf32>, vector<34x16xf32> -> vector<34x16xf32>
    %c2 = arith.constant 2 : index
    %c0_139 = arith.constant 0 : index
    %c0_140 = arith.constant 0 : index
    %257 = vector.load %arg20[%c2, %c0_139, %c0_140] : memref<4x16x32xf32, #tpu.memory_space<vmem>>, vector<1x16x32xf32>
    %258 = vector.shape_cast %257 : vector<1x16x32xf32> to vector<16x32xf32>
    %cst_141 = arith.constant dense<0.000000e+00> : vector<34x32xf32>
    %259 = tpu.matmul %256, %258, %cst_141 {dimension_numbers = #tpu.dot_dimension_numbers<[1], [0], [0], [1], [0, 0, 1, 1], [], []>} : vector<34x16xf32>, vector<16x32xf32>, vector<34x32xf32> -> vector<34x32xf32>
    %260 = vector.broadcast %238 : vector<1x32xf32> to vector<34x32xf32>
    %261 = arith.addf %260, %259 : vector<34x32xf32>
    %262 = vector.extract_strided_slice %236 {offsets = [0, 16], sizes = [34, 16], strides = [1, 1]} : vector<34x96xf32> to vector<34x16xf32>
    %263 = vector.extract_strided_slice %236 {offsets = [0, 48], sizes = [34, 16], strides = [1, 1]} : vector<34x96xf32> to vector<34x16xf32>
    %264 = vector.extract_strided_slice %236 {offsets = [0, 80], sizes = [34, 16], strides = [1, 1]} : vector<34x96xf32> to vector<34x16xf32>
    "tpu.trace_start"() <{level = 10 : i32, message = "qd,kd->qk"}> : () -> ()
    %cst_142 = arith.constant dense<0.000000e+00> : vector<34x34xf32>
    %265 = tpu.matmul %262, %263, %cst_142 {dimension_numbers = #tpu.dot_dimension_numbers<[1], [1], [0], [0], [0, 0, 1, 0], [], []>} : vector<34x16xf32>, vector<34x16xf32>, vector<34x34xf32> -> vector<34x34xf32>
    "tpu.trace_stop"() : () -> ()
    %cst_143 = arith.constant 2.500000e-01 : f32
    %266 = vector.broadcast %cst_143 : f32 to vector<34x34xf32>
    %267 = arith.mulf %265, %266 : vector<34x34xf32>
    %268 = arith.addf %267, %68 : vector<34x34xf32>
    %cst_144 = arith.constant dense<0xFF800000> : vector<34xf32>
    %269 = vector.multi_reduction <maximumf>, %268, %cst_144 [1] : vector<34x34xf32> to vector<34xf32>
    %270 = vector.shape_cast %269 : vector<34xf32> to vector<34x1xf32>
    %271 = vector.broadcast %270 : vector<34x1xf32> to vector<34x34xf32>
    %272 = arith.subf %268, %271 : vector<34x34xf32>
    %273 = math.exp %272 : vector<34x34xf32>
    %cst_145 = arith.constant dense<0.000000e+00> : vector<34xf32>
    %274 = vector.multi_reduction <add>, %273, %cst_145 [1] : vector<34x34xf32> to vector<34xf32>
    %275 = vector.shape_cast %274 : vector<34xf32> to vector<34x1xf32>
    %276 = tpu.reciprocal %275 {approx = true} : vector<34x1xf32> -> vector<34x1xf32>
    %277 = vector.broadcast %276 : vector<34x1xf32> to vector<34x34xf32>
    %278 = arith.mulf %273, %277 : vector<34x34xf32>
    %cst_146 = arith.constant dense<0.000000e+00> : vector<34x16xf32>
    %279 = tpu.matmul %278, %264, %cst_146 {dimension_numbers = #tpu.dot_dimension_numbers<[1], [0], [0], [1], [0, 0, 1, 1], [], []>} : vector<34x34xf32>, vector<34x16xf32>, vector<34x16xf32> -> vector<34x16xf32>
    %c3 = arith.constant 3 : index
    %c0_147 = arith.constant 0 : index
    %c0_148 = arith.constant 0 : index
    %280 = vector.load %arg20[%c3, %c0_147, %c0_148] : memref<4x16x32xf32, #tpu.memory_space<vmem>>, vector<1x16x32xf32>
    %281 = vector.shape_cast %280 : vector<1x16x32xf32> to vector<16x32xf32>
    %cst_149 = arith.constant dense<0.000000e+00> : vector<34x32xf32>
    %282 = tpu.matmul %279, %281, %cst_149 {dimension_numbers = #tpu.dot_dimension_numbers<[1], [0], [0], [1], [0, 0, 1, 1], [], []>} : vector<34x16xf32>, vector<16x32xf32>, vector<34x32xf32> -> vector<34x32xf32>
    %283 = arith.addf %261, %282 : vector<34x32xf32>
    %284 = arith.addf %203, %283 : vector<34x32xf32>
    %c1_150 = arith.constant 1 : index
    %c0_151 = arith.constant 0 : index
    %c0_152 = arith.constant 0 : index
    %285 = vector.load %arg22[%c1_150, %c0_151, %c0_152] : memref<2x1x32xf32, #tpu.memory_space<vmem>>, vector<1x1x32xf32>
    %286 = vector.shape_cast %285 : vector<1x1x32xf32> to vector<1x32xf32>
    %c1_153 = arith.constant 1 : index
    %c0_154 = arith.constant 0 : index
    %c0_155 = arith.constant 0 : index
    %287 = vector.load %arg23[%c1_153, %c0_154, %c0_155] : memref<2x1x32xf32, #tpu.memory_space<vmem>>, vector<1x1x32xf32>
    %288 = vector.shape_cast %287 : vector<1x1x32xf32> to vector<1x32xf32>
    %cst_156 = arith.constant dense<0.000000e+00> : vector<34xf32>
    %289 = vector.multi_reduction <add>, %284, %cst_156 [1] : vector<34x32xf32> to vector<34xf32>
    %290 = vector.shape_cast %289 : vector<34xf32> to vector<34x1xf32>
    %cst_157 = arith.constant 3.200000e+01 : f32
    %291 = vector.broadcast %cst_157 : f32 to vector<34x1xf32>
    %292 = arith.divf %290, %291 : vector<34x1xf32>
    %293 = vector.broadcast %292 : vector<34x1xf32> to vector<34x32xf32>
    %294 = arith.subf %284, %293 : vector<34x32xf32>
    %295 = arith.mulf %294, %294 : vector<34x32xf32>
    %cst_158 = arith.constant dense<0.000000e+00> : vector<34xf32>
    %296 = vector.multi_reduction <add>, %295, %cst_158 [1] : vector<34x32xf32> to vector<34xf32>
    %297 = vector.shape_cast %296 : vector<34xf32> to vector<34x1xf32>
    %cst_159 = arith.constant 3.200000e+01 : f32
    %298 = vector.broadcast %cst_159 : f32 to vector<34x1xf32>
    %299 = arith.divf %297, %298 : vector<34x1xf32>
    %300 = vector.broadcast %292 : vector<34x1xf32> to vector<34x32xf32>
    %301 = arith.subf %284, %300 : vector<34x32xf32>
    %cst_160 = arith.constant 9.99999997E-7 : f32
    %302 = vector.broadcast %cst_160 : f32 to vector<34x1xf32>
    %303 = arith.addf %299, %302 : vector<34x1xf32>
    %304 = math.rsqrt %303 : vector<34x1xf32>
    %305 = vector.broadcast %304 : vector<34x1xf32> to vector<34x32xf32>
    %306 = arith.mulf %301, %305 : vector<34x32xf32>
    %307 = vector.broadcast %286 : vector<1x32xf32> to vector<34x32xf32>
    %308 = arith.mulf %306, %307 : vector<34x32xf32>
    %309 = vector.broadcast %288 : vector<1x32xf32> to vector<34x32xf32>
    %310 = arith.addf %308, %309 : vector<34x32xf32>
    %c1_161 = arith.constant 1 : index
    %c0_162 = arith.constant 0 : index
    %c0_163 = arith.constant 0 : index
    %311 = vector.load %arg24[%c1_161, %c0_162, %c0_163] : memref<2x32x128xf32, #tpu.memory_space<vmem>>, vector<1x32x128xf32>
    %312 = vector.shape_cast %311 : vector<1x32x128xf32> to vector<32x128xf32>
    %cst_164 = arith.constant dense<0.000000e+00> : vector<34x128xf32>
    %313 = tpu.matmul %310, %312, %cst_164 {dimension_numbers = #tpu.dot_dimension_numbers<[1], [0], [0], [1], [0, 0, 1, 1], [], []>} : vector<34x32xf32>, vector<32x128xf32>, vector<34x128xf32> -> vector<34x128xf32>
    %c1_165 = arith.constant 1 : index
    %c0_166 = arith.constant 0 : index
    %c0_167 = arith.constant 0 : index
    %314 = vector.load %arg25[%c1_165, %c0_166, %c0_167] : memref<2x1x128xf32, #tpu.memory_space<vmem>>, vector<1x1x128xf32>
    %315 = vector.shape_cast %314 : vector<1x1x128xf32> to vector<1x128xf32>
    %316 = vector.broadcast %315 : vector<1x128xf32> to vector<34x128xf32>
    %317 = arith.addf %313, %316 : vector<34x128xf32>
    %318 = arith.mulf %317, %317 : vector<34x128xf32>
    %319 = arith.mulf %317, %318 : vector<34x128xf32>
    %cst_168 = arith.constant 4.471500e-02 : f32
    %320 = vector.broadcast %cst_168 : f32 to vector<34x128xf32>
    %321 = arith.mulf %320, %319 : vector<34x128xf32>
    %322 = arith.addf %317, %321 : vector<34x128xf32>
    %cst_169 = arith.constant 0.797884583 : f32
    %323 = vector.broadcast %cst_169 : f32 to vector<34x128xf32>
    %324 = arith.mulf %323, %322 : vector<34x128xf32>
    %325 = math.tanh %324 : vector<34x128xf32>
    %cst_170 = arith.constant 1.000000e+00 : f32
    %326 = vector.broadcast %cst_170 : f32 to vector<34x128xf32>
    %327 = arith.addf %326, %325 : vector<34x128xf32>
    %cst_171 = arith.constant 5.000000e-01 : f32
    %328 = vector.broadcast %cst_171 : f32 to vector<34x128xf32>
    %329 = arith.mulf %328, %327 : vector<34x128xf32>
    %330 = arith.mulf %317, %329 : vector<34x128xf32>
    %c1_172 = arith.constant 1 : index
    %c0_173 = arith.constant 0 : index
    %c0_174 = arith.constant 0 : index
    %331 = vector.load %arg26[%c1_172, %c0_173, %c0_174] : memref<2x128x32xf32, #tpu.memory_space<vmem>>, vector<1x128x32xf32>
    %332 = vector.shape_cast %331 : vector<1x128x32xf32> to vector<128x32xf32>
    %cst_175 = arith.constant dense<0.000000e+00> : vector<34x32xf32>
    %333 = tpu.matmul %330, %332, %cst_175 {dimension_numbers = #tpu.dot_dimension_numbers<[1], [0], [0], [1], [0, 0, 1, 1], [], []>} : vector<34x128xf32>, vector<128x32xf32>, vector<34x32xf32> -> vector<34x32xf32>
    %334 = arith.addf %284, %333 : vector<34x32xf32>
    %c1_176 = arith.constant 1 : index
    %c0_177 = arith.constant 0 : index
    %c0_178 = arith.constant 0 : index
    %335 = vector.load %arg27[%c1_176, %c0_177, %c0_178] : memref<2x1x32xf32, #tpu.memory_space<vmem>>, vector<1x1x32xf32>
    %336 = vector.shape_cast %335 : vector<1x1x32xf32> to vector<1x32xf32>
    %337 = vector.broadcast %336 : vector<1x32xf32> to vector<34x32xf32>
    %338 = arith.addf %334, %337 : vector<34x32xf32>
    %c0_179 = arith.constant 0 : index
    %c0_180 = arith.constant 0 : index
    %339 = vector.load %arg28[%c0_179, %c0_180] : memref<1x32xf32, #tpu.memory_space<vmem>>, vector<1x32xf32>
    %c0_181 = arith.constant 0 : index
    %c0_182 = arith.constant 0 : index
    %340 = vector.load %arg29[%c0_181, %c0_182] : memref<1x32xf32, #tpu.memory_space<vmem>>, vector<1x32xf32>
    %cst_183 = arith.constant dense<0.000000e+00> : vector<34xf32>
    %341 = vector.multi_reduction <add>, %338, %cst_183 [1] : vector<34x32xf32> to vector<34xf32>
    %342 = vector.shape_cast %341 : vector<34xf32> to vector<34x1xf32>
    %cst_184 = arith.constant 3.200000e+01 : f32
    %343 = vector.broadcast %cst_184 : f32 to vector<34x1xf32>
    %344 = arith.divf %342, %343 : vector<34x1xf32>
    %345 = vector.broadcast %344 : vector<34x1xf32> to vector<34x32xf32>
    %346 = arith.subf %338, %345 : vector<34x32xf32>
    %347 = arith.mulf %346, %346 : vector<34x32xf32>
    %cst_185 = arith.constant dense<0.000000e+00> : vector<34xf32>
    %348 = vector.multi_reduction <add>, %347, %cst_185 [1] : vector<34x32xf32> to vector<34xf32>
    %349 = vector.shape_cast %348 : vector<34xf32> to vector<34x1xf32>
    %cst_186 = arith.constant 3.200000e+01 : f32
    %350 = vector.broadcast %cst_186 : f32 to vector<34x1xf32>
    %351 = arith.divf %349, %350 : vector<34x1xf32>
    %352 = vector.broadcast %344 : vector<34x1xf32> to vector<34x32xf32>
    %353 = arith.subf %338, %352 : vector<34x32xf32>
    %cst_187 = arith.constant 9.99999997E-7 : f32
    %354 = vector.broadcast %cst_187 : f32 to vector<34x1xf32>
    %355 = arith.addf %351, %354 : vector<34x1xf32>
    %356 = math.rsqrt %355 : vector<34x1xf32>
    %357 = vector.broadcast %356 : vector<34x1xf32> to vector<34x32xf32>
    %358 = arith.mulf %353, %357 : vector<34x32xf32>
    %359 = vector.broadcast %339 : vector<1x32xf32> to vector<34x32xf32>
    %360 = arith.mulf %358, %359 : vector<34x32xf32>
    %361 = vector.broadcast %340 : vector<1x32xf32> to vector<34x32xf32>
    %362 = arith.addf %360, %361 : vector<34x32xf32>
    %c0_188 = arith.constant 0 : index
    %c0_189 = arith.constant 0 : index
    %363 = vector.load %arg30[%c0_188, %c0_189] : memref<2x34xf32, #tpu.memory_space<vmem>>, vector<2x34xf32>
    %cst_190 = arith.constant dense<0.000000e+00> : vector<2x32xf32>
    %364 = tpu.matmul %363, %362, %cst_190 {dimension_numbers = #tpu.dot_dimension_numbers<[1], [0], [0], [1], [0, 0, 1, 1], [], []>} : vector<2x34xf32>, vector<34x32xf32>, vector<2x32xf32> -> vector<2x32xf32>
    %c0_191 = arith.constant 0 : index
    %c0_192 = arith.constant 0 : index
    %365 = vector.load %arg31[%c0_191, %c0_192] : memref<32x128xf32, #tpu.memory_space<vmem>>, vector<32x128xf32>
    %cst_193 = arith.constant dense<0.000000e+00> : vector<2x128xf32>
    %366 = tpu.matmul %364, %365, %cst_193 {dimension_numbers = #tpu.dot_dimension_numbers<[1], [0], [0], [1], [0, 0, 1, 1], [], []>} : vector<2x32xf32>, vector<32x128xf32>, vector<2x128xf32> -> vector<2x128xf32>
    %c0_194 = arith.constant 0 : index
    %c0_195 = arith.constant 0 : index
    %367 = vector.load %arg32[%c0_194, %c0_195] : memref<1x128xf32, #tpu.memory_space<vmem>>, vector<1x128xf32>
    %368 = vector.broadcast %367 : vector<1x128xf32> to vector<2x128xf32>
    %369 = arith.addf %366, %368 : vector<2x128xf32>
    %c0_196 = arith.constant 0 : index
    %c0_197 = arith.constant 0 : index
    %370 = vector.load %arg33[%c0_196, %c0_197] : memref<2x128xf32, #tpu.memory_space<vmem>>, vector<2x128xf32>
    tpu.vector_store %arg33[%c0_196, %c0_197], %369 {strides = array<i32>} : memref<2x128xf32, #tpu.memory_space<vmem>>, vector<2x128xf32>,
    return
  }
}

</mosaic_0001>

<llo_original>
// kernel: squeeze.1
$region0: #{squeeze.1}
  %s0 = inlined_call_operand.vmem [shape: f32[2,1,16,16], index: 0, kind: input, shape index: {}]
  %s1 = inlined_call_operand.vmem [shape: f32[2,4,4,4,4], index: 1, kind: output, shape index: {}]
  $region1: #{squeeze.1} parent=0
    #allocation0 [shape = 'u8[131072]{0}', space=vmem, size = 0x20000, scoped, tag = 'scoped mem for output reshape']
    %v2 = vld [vmem:[%s0] sm:$0xff]
    %vm3 = vcmask 31744
    %4 = vst.msk [vmem:[#allocation0] ss:$8 sm:$0xf] %vm3, %v2
    %5 = vst.msk [vmem:[#allocation0] ss:$8 sm:$0xf0] %vm3, %v2
    %s6 = scalar_lea.vmem %s0, 8
    %v7 = vld [vmem:[%s6] sm:$0xff]
    %vm8 = vcmask 31744
    %s9 = scalar_lea.vmem [#allocation0], 64
    %10 = vst.msk [vmem:[%s9] ss:$8 sm:$0xf] %vm8, %v7
    %s11 = scalar_lea.vmem [#allocation0], 64
    %12 = vst.msk [vmem:[%s11] ss:$8 sm:$0xf0] %vm8, %v7
    %s13 = scalar_lea.vmem %s0, 16
    %v14 = vld [vmem:[%s13] sm:$0xff]
    %vm15 = vcmask 31744
    %s16 = scalar_lea.vmem [#allocation0], 128
    %17 = vst.msk [vmem:[%s16] ss:$8 sm:$0xf] %vm15, %v14
    %s18 = scalar_lea.vmem [#allocation0], 128
    %19 = vst.msk [vmem:[%s18] ss:$8 sm:$0xf0] %vm15, %v14
    %s20 = scalar_lea.vmem %s0, 24
    %v21 = vld [vmem:[%s20] sm:$0xff]
    %vm22 = vcmask 31744
    %s23 = scalar_lea.vmem [#allocation0], 192
    %24 = vst.msk [vmem:[%s23] ss:$8 sm:$0xf] %vm22, %v21
    %s25 = scalar_lea.vmem [#allocation0], 192
    %26 = vst.msk [vmem:[%s25] ss:$8 sm:$0xf0] %vm22, %v21
    %v27 = vld [vmem:[%s0] sm:$0xff]
    %28 = vrot.lane.b32.xlu0 %v27, 124
    %v29 = vpop.permute.xlu0 %28
    %vm30 = vcmask 31744
    %s31 = scalar_lea.vmem [#allocation0], 1
    %32 = vst.msk [vmem:[%s31] ss:$8 sm:$0xf] %vm30, %v29
    %s33 = scalar_lea.vmem [#allocation0], 1
    %34 = vst.msk [vmem:[%s33] ss:$8 sm:$0xf0] %vm30, %v29
    %s35 = scalar_lea.vmem %s0, 8
    %v36 = vld [vmem:[%s35] sm:$0xff]
    %37 = vrot.lane.b32.xlu0 %v36, 124
    %v38 = vpop.permute.xlu0 %37
    %vm39 = vcmask 31744
    %s40 = scalar_lea.vmem [#allocation0], 65
    %41 = vst.msk [vmem:[%s40] ss:$8 sm:$0xf] %vm39, %v38
    %s42 = scalar_lea.vmem [#allocation0], 65
    %43 = vst.msk [vmem:[%s42] ss:$8 sm:$0xf0] %vm39, %v38
    %s44 = scalar_lea.vmem %s0, 16
    %v45 = vld [vmem:[%s44] sm:$0xff]
    %46 = vrot.lane.b32.xlu0 %v45, 124
    %v47 = vpop.permute.xlu0 %46
    %vm48 = vcmask 31744
    %s49 = scalar_lea.vmem [#allocation0], 129
    %50 = vst.msk [vmem:[%s49] ss:$8 sm:$0xf] %vm48, %v47
    %s51 = scalar_lea.vmem [#allocation0], 129
    %52 = vst.msk [vmem:[%s51] ss:$8 sm:$0xf0] %vm48, %v47
    %s53 = scalar_lea.vmem %s0, 24
    %v54 = vld [vmem:[%s53] sm:$0xff]
    %55 = vrot.lane.b32.xlu0 %v54, 124
    %v56 = vpop.permute.xlu0 %55
    %vm57 = vcmask 31744
    %s58 = scalar_lea.vmem [#allocation0], 193
    %59 = vst.msk [vmem:[%s58] ss:$8 sm:$0xf] %vm57, %v56
    %s60 = scalar_lea.vmem [#allocation0], 193
    %61 = vst.msk [vmem:[%s60] ss:$8 sm:$0xf0] %vm57, %v56
    %v62 = vld [vmem:[%s0] sm:$0xff]
    %63 = vrot.lane.b32.xlu0 %v62, 120
    %v64 = vpop.permute.xlu0 %63
    %vm65 = vcmask 31744
    %s66 = scalar_lea.vmem [#allocation0], 2
    %67 = vst.msk [vmem:[%s66] ss:$8 sm:$0xf] %vm65, %v64
    %s68 = scalar_lea.vmem [#allocation0], 2
    %69 = vst.msk [vmem:[%s68] ss:$8 sm:$0xf0] %vm65, %v64
    %s70 = scalar_lea.vmem %s0, 8
    %v71 = vld [vmem:[%s70] sm:$0xff]
    %72 = vrot.lane.b32.xlu0 %v71, 120
    %v73 = vpop.permute.xlu0 %72
    %vm74 = vcmask 31744
    %s75 = scalar_lea.vmem [#allocation0], 66
    %76 = vst.msk [vmem:[%s75] ss:$8 sm:$0xf] %vm74, %v73
    %s77 = scalar_lea.vmem [#allocation0], 66
    %78 = vst.msk [vmem:[%s77] ss:$8 sm:$0xf0] %vm74, %v73
    %s79 = scalar_lea.vmem %s0, 16
    %v80 = vld [vmem:[%s79] sm:$0xff]
    %81 = vrot.lane.b32.xlu0 %v80, 120
    %v82 = vpop.permute.xlu0 %81
    %vm83 = vcmask 31744
    %s84 = scalar_lea.vmem [#allocation0], 130
    %85 = vst.msk [vmem:[%s84] ss:$8 sm:$0xf] %vm83, %v82
    %s86 = scalar_lea.vmem [#allocation0], 130
    %87 = vst.msk [vmem:[%s86] ss:$8 sm:$0xf0] %vm83, %v82
    %s88 = scalar_lea.vmem %s0, 24
    %v89 = vld [vmem:[%s88] sm:$0xff]
    %90 = vrot.lane.b32.xlu0 %v89, 120
    %v91 = vpop.permute.xlu0 %90
    %vm92 = vcmask 31744
    %s93 = scalar_lea.vmem [#allocation0], 194
    %94 = vst.msk [vmem:[%s93] ss:$8 sm:$0xf] %vm92, %v91
    %s95 = scalar_lea.vmem [#allocation0], 194
    %96 = vst.msk [vmem:[%s95] ss:$8 sm:$0xf0] %vm92, %v91
    %v97 = vld [vmem:[%s0] sm:$0xff]
    %98 = vrot.lane.b32.xlu0 %v97, 116
    %v99 = vpop.permute.xlu0 %98
    %vm100 = vcmask 31744
    %s101 = scalar_lea.vmem [#allocation0], 3
    %102 = vst.msk [vmem:[%s101] ss:$8 sm:$0xf] %vm100, %v99
    %s103 = scalar_lea.vmem [#allocation0], 3
    %104 = vst.msk [vmem:[%s103] ss:$8 sm:$0xf0] %vm100, %v99
    %s105 = scalar_lea.vmem %s0, 8
    %v106 = vld [vmem:[%s105] sm:$0xff]
    %107 = vrot.lane.b32.xlu0 %v106, 116
    %v108 = vpop.permute.xlu0 %107
    %vm109 = vcmask 31744
    %s110 = scalar_lea.vmem [#allocation0], 67
    %111 = vst.msk [vmem:[%s110] ss:$8 sm:$0xf] %vm109, %v108
    %s112 = scalar_lea.vmem [#allocation0], 67
    %113 = vst.msk [vmem:[%s112] ss:$8 sm:$0xf0] %vm109, %v108
    %s114 = scalar_lea.vmem %s0, 16
    %v115 = vld [vmem:[%s114] sm:$0xff]
    %116 = vrot.lane.b32.xlu0 %v115, 116
    %v117 = vpop.permute.xlu0 %116
    %vm118 = vcmask 31744
    %s119 = scalar_lea.vmem [#allocation0], 131
    %120 = vst.msk [vmem:[%s119] ss:$8 sm:$0xf] %vm118, %v117
    %s121 = scalar_lea.vmem [#allocation0], 131
    %122 = vst.msk [vmem:[%s121] ss:$8 sm:$0xf0] %vm118, %v117
    %s123 = scalar_lea.vmem %s0, 24
    %v124 = vld [vmem:[%s123] sm:$0xff]
    %125 = vrot.lane.b32.xlu0 %v124, 116
    %v126 = vpop.permute.xlu0 %125
    %vm127 = vcmask 31744
    %s128 = scalar_lea.vmem [#allocation0], 195
    %129 = vst.msk [vmem:[%s128] ss:$8 sm:$0xf] %vm127, %v126
    %s130 = scalar_lea.vmem [#allocation0], 195
    %131 = vst.msk [vmem:[%s130] ss:$8 sm:$0xf0] %vm127, %v126
    %s133 = sshllo.u32 0, 4
    %v135 = vld [vmem:[#allocation0] sm:%s133]
    %s136 = sshllo.u32 0, 4
    %137 = vst [vmem:[%s1] sm:%s136] %v135
    %s138 = scalar_lea.vmem [#allocation0], 8
    %v139 = vld [vmem:[%s138] sm:%s133]
    %s140 = sshllo.u32 0, 4
    %s141 = scalar_lea.vmem %s1, 4
    %142 = vst [vmem:[%s141] sm:%s140] %v139
    %s143 = scalar_lea.vmem [#allocation0], 16
    %v144 = vld [vmem:[%s143] sm:%s133]
    %s145 = sshllo.u32 0, 4
    %s146 = smul.addr 4, 2
    %s147 = scalar_lea.vmem %s1, %s146
    %148 = vst [vmem:[%s147] sm:%s145] %v144
    %s149 = scalar_lea.vmem [#allocation0], 24
    %v150 = vld [vmem:[%s149] sm:%s133]
    %s151 = sshllo.u32 0, 4
    %s152 = smul.addr 4, 3
    %s153 = scalar_lea.vmem %s1, %s152
    %154 = vst [vmem:[%s153] sm:%s151] %v150
    %s155 = scalar_lea.vmem [#allocation0], 32
    %v156 = vld [vmem:[%s155] sm:%s133]
    %s157 = sshllo.u32 0, 4
    %s158 = smul.addr 4, 4
    %s159 = scalar_lea.vmem %s1, %s158
    %160 = vst [vmem:[%s159] sm:%s157] %v156
    %s161 = scalar_lea.vmem [#allocation0], 40
    %v162 = vld [vmem:[%s161] sm:%s133]
    %s163 = sshllo.u32 0, 4
    %s164 = smul.addr 4, 5
    %s165 = scalar_lea.vmem %s1, %s164
    %166 = vst [vmem:[%s165] sm:%s163] %v162
    %s167 = scalar_lea.vmem [#allocation0], 48
    %v168 = vld [vmem:[%s167] sm:%s133]
    %s169 = sshllo.u32 0, 4
    %s170 = smul.addr 4, 6
    %s171 = scalar_lea.vmem %s1, %s170
    %172 = vst [vmem:[%s171] sm:%s169] %v168
    %s173 = scalar_lea.vmem [#allocation0], 56
    %v174 = vld [vmem:[%s173] sm:%s133]
    %s175 = sshllo.u32 0, 4
    %s176 = smul.addr 4, 7
    %s177 = scalar_lea.vmem %s1, %s176
    %178 = vst [vmem:[%s177] sm:%s175] %v174
    %s179 = scalar_lea.vmem [#allocation0], 64
    %v180 = vld [vmem:[%s179] sm:%s133]
    %s181 = sshllo.u32 0, 4
    %s182 = smul.addr 4, 8
    %s183 = scalar_lea.vmem %s1, %s182
    %184 = vst [vmem:[%s183] sm:%s181] %v180
    %s185 = scalar_lea.vmem [#allocation0], 72
    %v186 = vld [vmem:[%s185] sm:%s133]
    %s187 = sshllo.u32 0, 4
    %s188 = smul.addr 4, 9
    %s189 = scalar_lea.vmem %s1, %s188
    %190 = vst [vmem:[%s189] sm:%s187] %v186
    %s191 = scalar_lea.vmem [#allocation0], 80
    %v192 = vld [vmem:[%s191] sm:%s133]
    %s193 = sshllo.u32 0, 4
    %s194 = smul.addr 4, 10
    %s195 = scalar_lea.vmem %s1, %s194
    %196 = vst [vmem:[%s195] sm:%s193] %v192
    %s197 = scalar_lea.vmem [#allocation0], 88
    %v198 = vld [vmem:[%s197] sm:%s133]
    %s199 = sshllo.u32 0, 4
    %s200 = smul.addr 4, 11
    %s201 = scalar_lea.vmem %s1, %s200
    %202 = vst [vmem:[%s201] sm:%s199] %v198
    %s203 = scalar_lea.vmem [#allocation0], 96
    %v204 = vld [vmem:[%s203] sm:%s133]
    %s205 = sshllo.u32 0, 4
    %s206 = smul.addr 4, 12
    %s207 = scalar_lea.vmem %s1, %s206
    %208 = vst [vmem:[%s207] sm:%s205] %v204
    %s209 = scalar_lea.vmem [#allocation0], 104
    %v210 = vld [vmem:[%s209] sm:%s133]
    %s211 = sshllo.u32 0, 4
    %s212 = smul.addr 4, 13
    %s213 = scalar_lea.vmem %s1, %s212
    %214 = vst [vmem:[%s213] sm:%s211] %v210
    %s215 = scalar_lea.vmem [#allocation0], 112
    %v216 = vld [vmem:[%s215] sm:%s133]
    %s217 = sshllo.u32 0, 4
    %s218 = smul.addr 4, 14
    %s219 = scalar_lea.vmem %s1, %s218
    %220 = vst [vmem:[%s219] sm:%s217] %v216
    %s221 = scalar_lea.vmem [#allocation0], 120
    %v222 = vld [vmem:[%s221] sm:%s133]
    %s223 = sshllo.u32 0, 4
    %s224 = smul.addr 4, 15
    %s225 = scalar_lea.vmem %s1, %s224
    %226 = vst [vmem:[%s225] sm:%s223] %v222
    %s227 = scalar_lea.vmem [#allocation0], 128
    %v228 = vld [vmem:[%s227] sm:%s133]
    %s229 = sshllo.u32 0, 4
    %s230 = smul.addr 4, 16
    %s231 = scalar_lea.vmem %s1, %s230
    %232 = vst [vmem:[%s231] sm:%s229] %v228
    %s233 = scalar_lea.vmem [#allocation0], 136
    %v234 = vld [vmem:[%s233] sm:%s133]
    %s235 = sshllo.u32 0, 4
    %s236 = smul.addr 4, 17
    %s237 = scalar_lea.vmem %s1, %s236
    %238 = vst [vmem:[%s237] sm:%s235] %v234
    %s239 = scalar_lea.vmem [#allocation0], 144
    %v240 = vld [vmem:[%s239] sm:%s133]
    %s241 = sshllo.u32 0, 4
    %s242 = smul.addr 4, 18
    %s243 = scalar_lea.vmem %s1, %s242
    %244 = vst [vmem:[%s243] sm:%s241] %v240
    %s245 = scalar_lea.vmem [#allocation0], 152
    %v246 = vld [vmem:[%s245] sm:%s133]
    %s247 = sshllo.u32 0, 4
    %s248 = smul.addr 4, 19
    %s249 = scalar_lea.vmem %s1, %s248
    %250 = vst [vmem:[%s249] sm:%s247] %v246
    %s251 = scalar_lea.vmem [#allocation0], 160
    %v252 = vld [vmem:[%s251] sm:%s133]
    %s253 = sshllo.u32 0, 4
    %s254 = smul.addr 4, 20
    %s255 = scalar_lea.vmem %s1, %s254
    %256 = vst [vmem:[%s255] sm:%s253] %v252
    %s257 = scalar_lea.vmem [#allocation0], 168
    %v258 = vld [vmem:[%s257] sm:%s133]
    %s259 = sshllo.u32 0, 4
    %s260 = smul.addr 4, 21
    %s261 = scalar_lea.vmem %s1, %s260
    %262 = vst [vmem:[%s261] sm:%s259] %v258
    %s263 = scalar_lea.vmem [#allocation0], 176
    %v264 = vld [vmem:[%s263] sm:%s133]
    %s265 = sshllo.u32 0, 4
    %s266 = smul.addr 4, 22
    %s267 = scalar_lea.vmem %s1, %s266
    %268 = vst [vmem:[%s267] sm:%s265] %v264
    %s269 = scalar_lea.vmem [#allocation0], 184
    %v270 = vld [vmem:[%s269] sm:%s133]
    %s271 = sshllo.u32 0, 4
    %s272 = smul.addr 4, 23
    %s273 = scalar_lea.vmem %s1, %s272
    %274 = vst [vmem:[%s273] sm:%s271] %v270
    %s275 = scalar_lea.vmem [#allocation0], 192
    %v276 = vld [vmem:[%s275] sm:%s133]
    %s277 = sshllo.u32 0, 4
    %s278 = smul.addr 4, 24
    %s279 = scalar_lea.vmem %s1, %s278
    %280 = vst [vmem:[%s279] sm:%s277] %v276
    %s281 = scalar_lea.vmem [#allocation0], 200
    %v282 = vld [vmem:[%s281] sm:%s133]
    %s283 = sshllo.u32 0, 4
    %s284 = smul.addr 4, 25
    %s285 = scalar_lea.vmem %s1, %s284
    %286 = vst [vmem:[%s285] sm:%s283] %v282
    %s287 = scalar_lea.vmem [#allocation0], 208
    %v288 = vld [vmem:[%s287] sm:%s133]
    %s289 = sshllo.u32 0, 4
    %s290 = smul.addr 4, 26
    %s291 = scalar_lea.vmem %s1, %s290
    %292 = vst [vmem:[%s291] sm:%s289] %v288
    %s293 = scalar_lea.vmem [#allocation0], 216
    %v294 = vld [vmem:[%s293] sm:%s133]
    %s295 = sshllo.u32 0, 4
    %s296 = smul.addr 4, 27
    %s297 = scalar_lea.vmem %s1, %s296
    %298 = vst [vmem:[%s297] sm:%s295] %v294
    %s299 = scalar_lea.vmem [#allocation0], 224
    %v300 = vld [vmem:[%s299] sm:%s133]
    %s301 = sshllo.u32 0, 4
    %s302 = smul.addr 4, 28
    %s303 = scalar_lea.vmem %s1, %s302
    %304 = vst [vmem:[%s303] sm:%s301] %v300
    %s305 = scalar_lea.vmem [#allocation0], 232
    %v306 = vld [vmem:[%s305] sm:%s133]
    %s307 = sshllo.u32 0, 4
    %s308 = smul.addr 4, 29
    %s309 = scalar_lea.vmem %s1, %s308
    %310 = vst [vmem:[%s309] sm:%s307] %v306
    %s311 = scalar_lea.vmem [#allocation0], 240
    %v312 = vld [vmem:[%s311] sm:%s133]
    %s313 = sshllo.u32 0, 4
    %s314 = smul.addr 4, 30
    %s315 = scalar_lea.vmem %s1, %s314
    %316 = vst [vmem:[%s315] sm:%s313] %v312
    %s317 = scalar_lea.vmem [#allocation0], 248
    %v318 = vld [vmem:[%s317] sm:%s133]
    %s319 = sshllo.u32 0, 4
    %s320 = smul.addr 4, 31
    %s321 = scalar_lea.vmem %s1, %s320
    %322 = vst [vmem:[%s321] sm:%s319] %v318

// kernel: forward.1
$region0: #{forward.1}
  #allocation0 [shape = 'u32[]', space=smem, size = 0x4, offset = 0x4, fixed_abs, tag = 'smem constant byte address 0x4 - core index']
  #allocation1 [shape = 'u32[144,128]{1,0:T(1,128)}', space=vmem, size = 0x12000, scoped, tag = 'internal scratch']
  %s0 = inlined_call_operand.smem [shape: u32[34], index: -1, kind: input, shape index: {}]
  %s1 = sld [smem:[%s0]]
  %s2 = scalar_lea.smem %s0, 1
  %s3 = sld [smem:[%s2]]
  %s4 = scalar_lea.smem %s0, 2
  %s5 = sld [smem:[%s4]]
  %s6 = scalar_lea.smem %s0, 3
  %s7 = sld [smem:[%s6]]
  %s8 = scalar_lea.smem %s0, 4
  %s9 = sld [smem:[%s8]]
  %s10 = scalar_lea.smem %s0, 5
  %s11 = sld [smem:[%s10]]
  %s12 = scalar_lea.smem %s0, 6
  %s13 = sld [smem:[%s12]]
  %s14 = scalar_lea.smem %s0, 7
  %s15 = sld [smem:[%s14]]
  %s16 = scalar_lea.smem %s0, 8
  %s17 = sld [smem:[%s16]]
  %s18 = scalar_lea.smem %s0, 9
  %s19 = sld [smem:[%s18]]
  %s20 = scalar_lea.smem %s0, 10
  %s21 = sld [smem:[%s20]]
  %s22 = scalar_lea.smem %s0, 11
  %s23 = sld [smem:[%s22]]
  %s24 = scalar_lea.smem %s0, 12
  %s25 = sld [smem:[%s24]]
  %s26 = scalar_lea.smem %s0, 13
  %s27 = sld [smem:[%s26]]
  %s28 = scalar_lea.smem %s0, 14
  %s29 = sld [smem:[%s28]]
  %s30 = scalar_lea.smem %s0, 15
  %s31 = sld [smem:[%s30]]
  %s32 = scalar_lea.smem %s0, 16
  %s33 = sld [smem:[%s32]]
  %s34 = scalar_lea.smem %s0, 17
  %s35 = sld [smem:[%s34]]
  %s36 = scalar_lea.smem %s0, 18
  %s37 = sld [smem:[%s36]]
  %s38 = scalar_lea.smem %s0, 19
  %s39 = sld [smem:[%s38]]
  %s40 = scalar_lea.smem %s0, 20
  %s41 = sld [smem:[%s40]]
  %s42 = scalar_lea.smem %s0, 21
  %s43 = sld [smem:[%s42]]
  %s44 = scalar_lea.smem %s0, 22
  %s45 = sld [smem:[%s44]]
  %s46 = scalar_lea.smem %s0, 23
  %s47 = sld [smem:[%s46]]
  %s48 = scalar_lea.smem %s0, 24
  %s49 = sld [smem:[%s48]]
  %s50 = scalar_lea.smem %s0, 25
  %s51 = sld [smem:[%s50]]
  %s52 = scalar_lea.smem %s0, 26
  %s53 = sld [smem:[%s52]]
  %s54 = scalar_lea.smem %s0, 27
  %s55 = sld [smem:[%s54]]
  %s56 = scalar_lea.smem %s0, 28
  %s57 = sld [smem:[%s56]]
  %s58 = scalar_lea.smem %s0, 29
  %s59 = sld [smem:[%s58]]
  %s60 = scalar_lea.smem %s0, 30
  %s61 = sld [smem:[%s60]]
  %s62 = scalar_lea.smem %s0, 31
  %s63 = sld [smem:[%s62]]
  %s64 = scalar_lea.smem %s0, 32
  %s65 = sld [smem:[%s64]]
  %s66 = scalar_lea.smem %s0, 33
  %s67 = sld [smem:[%s66]]
  %s68 = sld [smem:[#allocation0]]
  $region142: #{forward.1} parent=0
    _
  %s70 = ssub.s32 1, %s68
  %s71 = scalar_select 0, %s70, %s68
  // Predicated region
  $region2: #{forward.1} parent=0 // pred_check
    _
  $region3: #{forward.1} parent=0 // pred_check_branch
    %73 = sbr.rel (0) target = $region5
  $region4: #{forward.1} parent=0 // pred_region
    _
  $region5: #{forward.1} parent=0 // pred_fallthru
    _
  // Predicated region
  $region6: #{forward.1} parent=0 // pred_check
    _
  $region7: #{forward.1} parent=0 // pred_check_branch
    %75 = sbr.rel (0) target = $region9
  $region8: #{forward.1} parent=0 // pred_region
    _
  $region9: #{forward.1} parent=0 // pred_fallthru
    _
  // Predicated region
  $region10: #{forward.1} parent=0 // pred_check
    _
  $region11: #{forward.1} parent=0 // pred_check_branch
    %77 = sbr.rel (0) target = $region13
  $region12: #{forward.1} parent=0 // pred_region
    _
  $region13: #{forward.1} parent=0 // pred_fallthru
    _
  // Predicated region
  $region14: #{forward.1} parent=0 // pred_check
    _
  $region15: #{forward.1} parent=0 // pred_check_branch
    %79 = sbr.rel (0) target = $region17
  $region16: #{forward.1} parent=0 // pred_region
    _
  $region17: #{forward.1} parent=0 // pred_fallthru
    _
  // Predicated region
  $region18: #{forward.1} parent=0 // pred_check
    _
  $region19: #{forward.1} parent=0 // pred_check_branch
    %81 = sbr.rel (0) target = $region21
  $region20: #{forward.1} parent=0 // pred_region
    _
  $region21: #{forward.1} parent=0 // pred_fallthru
    _
  // Predicated region
  $region22: #{forward.1} parent=0 // pred_check
    _
  $region23: #{forward.1} parent=0 // pred_check_branch
    %83 = sbr.rel (0) target = $region25
  $region24: #{forward.1} parent=0 // pred_region
    _
  $region25: #{forward.1} parent=0 // pred_fallthru
    _
  // Predicated region
  $region26: #{forward.1} parent=0 // pred_check
    _
  $region27: #{forward.1} parent=0 // pred_check_branch
    %85 = sbr.rel (0) target = $region29
  $region28: #{forward.1} parent=0 // pred_region
    _
  $region29: #{forward.1} parent=0 // pred_fallthru
    _
  // Predicated region
  $region30: #{forward.1} parent=0 // pred_check
    _
  $region31: #{forward.1} parent=0 // pred_check_branch
    %87 = sbr.rel (0) target = $region33
  $region32: #{forward.1} parent=0 // pred_region
    _
  $region33: #{forward.1} parent=0 // pred_fallthru
    _
  // Predicated region
  $region34: #{forward.1} parent=0 // pred_check
    _
  $region35: #{forward.1} parent=0 // pred_check_branch
    %89 = sbr.rel (0) target = $region37
  $region36: #{forward.1} parent=0 // pred_region
    _
  $region37: #{forward.1} parent=0 // pred_fallthru
    _
  // Predicated region
  $region38: #{forward.1} parent=0 // pred_check
    _
  $region39: #{forward.1} parent=0 // pred_check_branch
    %91 = sbr.rel (0) target = $region41
  $region40: #{forward.1} parent=0 // pred_region
    _
  $region41: #{forward.1} parent=0 // pred_fallthru
    _
  // Predicated region
  $region42: #{forward.1} parent=0 // pred_check
    _
  $region43: #{forward.1} parent=0 // pred_check_branch
    %93 = sbr.rel (0) target = $region45
  $region44: #{forward.1} parent=0 // pred_region
    _
  $region45: #{forward.1} parent=0 // pred_fallthru
    _
  // Predicated region
  $region46: #{forward.1} parent=0 // pred_check
    _
  $region47: #{forward.1} parent=0 // pred_check_branch
    %95 = sbr.rel (0) target = $region49
  $region48: #{forward.1} parent=0 // pred_region
    _
  $region49: #{forward.1} parent=0 // pred_fallthru
    _
  // Predicated region
  $region50: #{forward.1} parent=0 // pred_check
    _
  $region51: #{forward.1} parent=0 // pred_check_branch
    %97 = sbr.rel (0) target = $region53
  $region52: #{forward.1} parent=0 // pred_region
    _
  $region53: #{forward.1} parent=0 // pred_fallthru
    _
  // Predicated region
  $region54: #{forward.1} parent=0 // pred_check
    _
  $region55: #{forward.1} parent=0 // pred_check_branch
    %99 = sbr.rel (0) target = $region57
  $region56: #{forward.1} parent=0 // pred_region
    _
  $region57: #{forward.1} parent=0 // pred_fallthru
    _
  // Predicated region
  $region58: #{forward.1} parent=0 // pred_check
    _
  $region59: #{forward.1} parent=0 // pred_check_branch
    %101 = sbr.rel (0) target = $region61
  $region60: #{forward.1} parent=0 // pred_region
    _
  $region61: #{forward.1} parent=0 // pred_fallthru
    _
  // Predicated region
  $region62: #{forward.1} parent=0 // pred_check
    _
  $region63: #{forward.1} parent=0 // pred_check_branch
    %103 = sbr.rel (0) target = $region65
  $region64: #{forward.1} parent=0 // pred_region
    _
  $region65: #{forward.1} parent=0 // pred_fallthru
    _
  // Predicated region
  $region66: #{forward.1} parent=0 // pred_check
    _
  $region67: #{forward.1} parent=0 // pred_check_branch
    %105 = sbr.rel (0) target = $region69
  $region68: #{forward.1} parent=0 // pred_region
    _
  $region69: #{forward.1} parent=0 // pred_fallthru
    _
  // Predicated region
  $region70: #{forward.1} parent=0 // pred_check
    _
  $region71: #{forward.1} parent=0 // pred_check_branch
    %107 = sbr.rel (0) target = $region73
  $region72: #{forward.1} parent=0 // pred_region
    _
  $region73: #{forward.1} parent=0 // pred_fallthru
    _
  // Predicated region
  $region74: #{forward.1} parent=0 // pred_check
    _
  $region75: #{forward.1} parent=0 // pred_check_branch
    %109 = sbr.rel (0) target = $region77
  $region76: #{forward.1} parent=0 // pred_region
    _
  $region77: #{forward.1} parent=0 // pred_fallthru
    _
  // Predicated region
  $region78: #{forward.1} parent=0 // pred_check
    _
  $region79: #{forward.1} parent=0 // pred_check_branch
    %111 = sbr.rel (0) target = $region81
  $region80: #{forward.1} parent=0 // pred_region
    _
  $region81: #{forward.1} parent=0 // pred_fallthru
    _
  // Predicated region
  $region82: #{forward.1} parent=0 // pred_check
    _
  $region83: #{forward.1} parent=0 // pred_check_branch
    %113 = sbr.rel (0) target = $region85
  $region84: #{forward.1} parent=0 // pred_region
    _
  $region85: #{forward.1} parent=0 // pred_fallthru
    _
  // Predicated region
  $region86: #{forward.1} parent=0 // pred_check
    _
  $region87: #{forward.1} parent=0 // pred_check_branch
    %115 = sbr.rel (0) target = $region89
  $region88: #{forward.1} parent=0 // pred_region
    _
  $region89: #{forward.1} parent=0 // pred_fallthru
    _
  // Predicated region
  $region90: #{forward.1} parent=0 // pred_check
    _
  $region91: #{forward.1} parent=0 // pred_check_branch
    %117 = sbr.rel (0) target = $region93
  $region92: #{forward.1} parent=0 // pred_region
    _
  $region93: #{forward.1} parent=0 // pred_fallthru
    _
  // Predicated region
  $region94: #{forward.1} parent=0 // pred_check
    _
  $region95: #{forward.1} parent=0 // pred_check_branch
    %119 = sbr.rel (0) target = $region97
  $region96: #{forward.1} parent=0 // pred_region
    _
  $region97: #{forward.1} parent=0 // pred_fallthru
    _
  // Predicated region
  $region98: #{forward.1} parent=0 // pred_check
    _
  $region99: #{forward.1} parent=0 // pred_check_branch
    %121 = sbr.rel (0) target = $region101
  $region100: #{forward.1} parent=0 // pred_region
    _
  $region101: #{forward.1} parent=0 // pred_fallthru
    _
  // Predicated region
  $region102: #{forward.1} parent=0 // pred_check
    _
  $region103: #{forward.1} parent=0 // pred_check_branch
    %123 = sbr.rel (0) target = $region105
  $region104: #{forward.1} parent=0 // pred_region
    _
  $region105: #{forward.1} parent=0 // pred_fallthru
    _
  // Predicated region
  $region106: #{forward.1} parent=0 // pred_check
    _
  $region107: #{forward.1} parent=0 // pred_check_branch
    %125 = sbr.rel (0) target = $region109
  $region108: #{forward.1} parent=0 // pred_region
    _
  $region109: #{forward.1} parent=0 // pred_fallthru
    _
  // Predicated region
  $region110: #{forward.1} parent=0 // pred_check
    _
  $region111: #{forward.1} parent=0 // pred_check_branch
    %127 = sbr.rel (0) target = $region113
  $region112: #{forward.1} parent=0 // pred_region
    _
  $region113: #{forward.1} parent=0 // pred_fallthru
    _
  // Predicated region
  $region114: #{forward.1} parent=0 // pred_check
    _
  $region115: #{forward.1} parent=0 // pred_check_branch
    %129 = sbr.rel (0) target = $region117
  $region116: #{forward.1} parent=0 // pred_region
    _
  $region117: #{forward.1} parent=0 // pred_fallthru
    _
  // Predicated region
  $region118: #{forward.1} parent=0 // pred_check
    _
  $region119: #{forward.1} parent=0 // pred_check_branch
    %131 = sbr.rel (0) target = $region121
  $region120: #{forward.1} parent=0 // pred_region
    _
  $region121: #{forward.1} parent=0 // pred_fallthru
    _
  // Predicated region
  $region122: #{forward.1} parent=0 // pred_check
    _
  $region123: #{forward.1} parent=0 // pred_check_branch
    %133 = sbr.rel (0) target = $region125
  $region124: #{forward.1} parent=0 // pred_region
    _
  $region125: #{forward.1} parent=0 // pred_fallthru
    _
  // Predicated region
  $region126: #{forward.1} parent=0 // pred_check
    _
  $region127: #{forward.1} parent=0 // pred_check_branch
    %135 = sbr.rel (0) target = $region129
  $region128: #{forward.1} parent=0 // pred_region
    _
  $region129: #{forward.1} parent=0 // pred_fallthru
    _
  // Predicated region
  $region130: #{forward.1} parent=0 // pred_check
    _
  $region131: #{forward.1} parent=0 // pred_check_branch
    %137 = sbr.rel (0) target = $region133
  $region132: #{forward.1} parent=0 // pred_region
    _
  $region133: #{forward.1} parent=0 // pred_fallthru
    _
  %v138 = vld [vmem:[%s1] sm:$0xff]
  %v139 = vld [vmem:[%s1 + $0x8] sm:$0xff]
  %v140 = vld [vmem:[%s1 + $0x10] sm:$0xff]
  %v141 = vld [vmem:[%s1 + $0x18] sm:$0xff]
  %v142 = vld [vmem:[%s3] sm:$0xff]
  %v143 = vld [vmem:[%s3 + $0x8] sm:$0xff]
  %v144 = vld [vmem:[%s5] sm:$0x1]
  %v146 = vlaneseq
  %v147 = vshrl.u32 %v146, 7
  %v148 = vsub.s32 0, %v147
  %v149 = vrot.slane %v144, %v148
  %vm151 = vcmask 130048
  %v153 = vsel %vm151, %v138, 0
  %v156 = vsel %vm151, %v139, 0
  %v159 = vsel %vm151, %v140, 0
  %v162 = vsel %vm151, %v141, 0
  %164 = vmatprep.subr.mxu0 0.0
  %165 = vmatpush1.msra.mxu0 %v142
  %166 = vmatprep.subr.mxu0 0.0
  %167 = vmatpush1.msra.mxu0 %v143
  %168 = vmatprep.subr.mxu0 0.0
  %169 = vmatpush1.msra.mxu0 0.0
  %170 = vmatprep.subr.mxu0 0.0
  %171 = vmatpush1.msra.mxu0 0.0
  %172 = vmatprep.subr.mxu0 0.0
  %173 = vmatpush1.msra.mxu0 0.0
  %174 = vmatprep.subr.mxu0 0.0
  %175 = vmatpush1.msra.mxu0 0.0
  %176 = vmatprep.subr.mxu0 0.0
  %177 = vmatpush1.msra.mxu0 0.0
  %178 = vmatprep.subr.mxu0 0.0
  %179 = vmatpush1.msra.mxu0 0.0
  %180 = vmatprep.subr.mxu0 0.0
  %181 = vmatpush1.msra.mxu0 0.0
  %182 = vmatprep.subr.mxu0 0.0
  %183 = vmatpush1.msra.mxu0 0.0
  %184 = vmatprep.subr.mxu0 0.0
  %185 = vmatpush1.msra.mxu0 0.0
  %186 = vmatprep.subr.mxu0 0.0
  %187 = vmatpush1.msra.mxu0 0.0
  %188 = vmatprep.subr.mxu0 0.0
  %189 = vmatpush1.msra.mxu0 0.0
  %190 = vmatprep.subr.mxu0 0.0
  %191 = vmatpush1.msra.mxu0 0.0
  %192 = vmatprep.subr.mxu0 0.0
  %193 = vmatpush1.msra.mxu0 0.0
  %194 = vmatprep.subr.mxu0 0.0
  %195 = vmatpush1.msra.mxu0 0.0
  %196 = vmatprep.subr.mxu0 0.0
  %197 = vmatpush1.msra.mxu0 0.0
  %198 = vmatprep.subr.mxu0 0.0
  %199 = vmatpush1.msra.mxu0 0.0
  %200 = vmatprep.subr.mxu0 0.0
  %201 = vmatpush1.msra.mxu0 0.0
  %202 = vmatprep.subr.mxu0 0.0
  %203 = vmatpush1.msra.mxu0 0.0
  %204 = vmatprep.subr.mxu0 0.0
  %205 = vmatpush1.msra.mxu0 0.0
  %206 = vmatprep.subr.mxu0 0.0
  %207 = vmatpush1.msra.mxu0 0.0
  %208 = vmatprep.subr.mxu0 0.0
  %209 = vmatpush1.msra.mxu0 0.0
  %210 = vmatprep.subr.mxu0 0.0
  %211 = vmatpush1.msra.mxu0 0.0
  %212 = vmatprep.subr.mxu0 0.0
  %213 = vmatpush1.msra.mxu0 0.0
  %214 = vmatprep.subr.mxu0 0.0
  %215 = vmatpush1.msra.mxu0 0.0
  %216 = vmatprep.subr.mxu0 0.0
  %217 = vmatpush1.msra.mxu0 0.0
  %218 = vmatprep.subr.mxu0 0.0
  %219 = vmatpush1.msra.mxu0 0.0
  %220 = vmatprep.subr.mxu0 0.0
  %221 = vmatpush1.msra.mxu0 0.0
  %222 = vmatprep.subr.mxu0 0.0
  %223 = vmatpush1.msra.mxu0 0.0
  %224 = vmatprep.subr.mxu0 0.0
  %225 = vmatpush1.msra.mxu0 0.0
  %226 = vmatprep.subr.mxu0 0.0
  %227 = vmatpush1.msra.mxu0 0.0
  %228 = vmatprep.mubr.f32.mxu0 0.0
  %229 = vmatmul.mubr.f32.gmra.mrb[0].mxu0 %v153
  %v230 = vpop.f32.mrb[0].mxu0
  %v231 = vadd.f32 %v149, %v230
  %v232 = vpop.f32.mrb[0].mxu0
  %233 = vmatprep.mubr.f32.mxu0 0.0
  %234 = vmatmul.mubr.f32.gmra.mrb[0].mxu0 %v156
  %v235 = vpop.f32.mrb[0].mxu0
  %v236 = vadd.f32 %v149, %v235
  %v237 = vpop.f32.mrb[0].mxu0
  %238 = vmatprep.mubr.f32.mxu0 0.0
  %239 = vmatmul.mubr.f32.gmra.mrb[0].mxu0 %v159
  %v240 = vpop.f32.mrb[0].mxu0
  %v241 = vadd.f32 %v149, %v240
  %v242 = vpop.f32.mrb[0].mxu0
  %243 = vmatprep.mubr.f32.mxu0 0.0
  %244 = vmatmul.mubr.f32.gmra.mrb[0].mxu0 %v162
  %v245 = vpop.f32.mrb[0].mxu0
  %v246 = vadd.f32 %v149, %v245
  %v247 = vpop.f32.mrb[0].mxu0
  %248 = vdwg.mxu0
  %v249 = vld [vmem:[%s7] sm:$0x1]
  %v250 = vld [vmem:[%s9] sm:$0x1]
  %vm251 = vcmask 261120
  %v252 = vsel %vm251, %v231, 0.0
  %253 = vadd.xlane.f32.xlu0 %v252
  %v254 = vpop.xlane.xlu0 %253
  %v255 = vsel %vm251, %v236, 0.0
  %256 = vadd.xlane.f32.xlu0 %v255
  %v257 = vpop.xlane.xlu0 %256
  %v258 = vsel %vm251, %v241, 0.0
  %259 = vadd.xlane.f32.xlu0 %v258
  %v260 = vpop.xlane.xlu0 %259
  %v261 = vsel %vm251, %v246, 0.0
  %262 = vadd.xlane.f32.xlu0 %v261
  %v263 = vpop.xlane.xlu0 %262
  %v264 = vrcp.pop 32.0
  %v265 = vmul.f32 %v254, %v264
  %v266 = vmul.f32 %v257, %v264
  %v267 = vmul.f32 %v260, %v264
  %v268 = vmul.f32 %v263, %v264
  %v269 = vsub.f32 %v231, %v265
  %v270 = vsub.f32 %v236, %v266
  %v271 = vsub.f32 %v241, %v267
  %v272 = vsub.f32 %v246, %v268
  %v273 = vmul.f32 %v269, %v269
  %v274 = vmul.f32 %v270, %v270
  %v275 = vmul.f32 %v271, %v271
  %v276 = vmul.f32 %v272, %v272
  %v277 = vsel %vm251, %v273, 0.0
  %278 = vadd.xlane.f32.xlu0 %v277
  %v279 = vpop.xlane.xlu0 %278
  %v280 = vsel %vm251, %v274, 0.0
  %281 = vadd.xlane.f32.xlu0 %v280
  %v282 = vpop.xlane.xlu0 %281
  %v283 = vsel %vm251, %v275, 0.0
  %284 = vadd.xlane.f32.xlu0 %v283
  %v285 = vpop.xlane.xlu0 %284
  %v286 = vsel %vm251, %v276, 0.0
  %287 = vadd.xlane.f32.xlu0 %v286
  %v288 = vpop.xlane.xlu0 %287
  %v289 = vmul.f32 %v279, %v264
  %v290 = vmul.f32 %v282, %v264
  %v291 = vmul.f32 %v285, %v264
  %v292 = vmul.f32 %v288, %v264
  %v293 = vadd.f32 %v289, 1e-05
  %v294 = vadd.f32 %v290, 1e-05
  %v295 = vadd.f32 %v291, 1e-05
  %v296 = vadd.f32 %v292, 1e-05
  %v297 = vrsqrt.pop %v293
  %v298 = vrsqrt.pop %v294
  %v299 = vrsqrt.pop %v295
  %v300 = vrsqrt.pop %v296
  %v301 = vmul.f32 %v269, %v297
  %v302 = vmul.f32 %v270, %v298
  %v303 = vmul.f32 %v271, %v299
  %v304 = vmul.f32 %v272, %v300
  %v306 = vlaneseq
  %v307 = vshrl.u32 %v306, 7
  %v308 = vsub.s32 0, %v307
  %v309 = vrot.slane %v249, %v308
  %v311 = vmul.f32 %v301, %v309
  %v312 = vmul.f32 %v302, %v309
  %v313 = vmul.f32 %v303, %v309
  %v314 = vmul.f32 %v304, %v309
  %v316 = vlaneseq
  %v317 = vshrl.u32 %v316, 7
  %v318 = vsub.s32 0, %v317
  %v319 = vrot.slane %v250, %v318
  %v321 = vadd.f32 %v311, %v319
  %v322 = vadd.f32 %v312, %v319
  %v323 = vadd.f32 %v313, %v319
  %v324 = vadd.f32 %v314, %v319
  %v325 = vld [vmem:[%s11] sm:$0xff]
  %v326 = vld [vmem:[%s11 + $0x8] sm:$0xff]
  %v327 = vld [vmem:[%s11 + $0x10] sm:$0xff]
  %v328 = vld [vmem:[%s11 + $0x18] sm:$0xff]
  %v329 = vld [vmem:[%s13] sm:$0x1]
  %v331 = vlaneseq
  %v332 = vshrl.u32 %v331, 7
  %v333 = vsub.s32 0, %v332
  %v334 = vrot.slane %v329, %v333
  %v337 = vsel %vm251, %v321, 0
  %v340 = vsel %vm251, %v322, 0
  %v343 = vsel %vm251, %v323, 0
  %v346 = vsel %vm251, %v324, 0
  %348 = vmatprep.subr.mxu0 0.0
  %349 = vmatpush1.msra.mxu0 %v325
  %350 = vmatprep.subr.mxu0 0.0
  %351 = vmatpush1.msra.mxu0 %v326
  %352 = vmatprep.subr.mxu0 0.0
  %353 = vmatpush1.msra.mxu0 %v327
  %354 = vmatprep.subr.mxu0 0.0
  %355 = vmatpush1.msra.mxu0 %v328
  %356 = vmatprep.subr.mxu0 0.0
  %357 = vmatpush1.msra.mxu0 0.0
  %358 = vmatprep.subr.mxu0 0.0
  %359 = vmatpush1.msra.mxu0 0.0
  %360 = vmatprep.subr.mxu0 0.0
  %361 = vmatpush1.msra.mxu0 0.0
  %362 = vmatprep.subr.mxu0 0.0
  %363 = vmatpush1.msra.mxu0 0.0
  %364 = vmatprep.subr.mxu0 0.0
  %365 = vmatpush1.msra.mxu0 0.0
  %366 = vmatprep.subr.mxu0 0.0
  %367 = vmatpush1.msra.mxu0 0.0
  %368 = vmatprep.subr.mxu0 0.0
  %369 = vmatpush1.msra.mxu0 0.0
  %370 = vmatprep.subr.mxu0 0.0
  %371 = vmatpush1.msra.mxu0 0.0
  %372 = vmatprep.subr.mxu0 0.0
  %373 = vmatpush1.msra.mxu0 0.0
  %374 = vmatprep.subr.mxu0 0.0
  %375 = vmatpush1.msra.mxu0 0.0
  %376 = vmatprep.subr.mxu0 0.0
  %377 = vmatpush1.msra.mxu0 0.0
  %378 = vmatprep.subr.mxu0 0.0
  %379 = vmatpush1.msra.mxu0 0.0
  %380 = vmatprep.subr.mxu0 0.0
  %381 = vmatpush1.msra.mxu0 0.0
  %382 = vmatprep.subr.mxu0 0.0
  %383 = vmatpush1.msra.mxu0 0.0
  %384 = vmatprep.subr.mxu0 0.0
  %385 = vmatpush1.msra.mxu0 0.0
  %386 = vmatprep.subr.mxu0 0.0
  %387 = vmatpush1.msra.mxu0 0.0
  %388 = vmatprep.subr.mxu0 0.0
  %389 = vmatpush1.msra.mxu0 0.0
  %390 = vmatprep.subr.mxu0 0.0
  %391 = vmatpush1.msra.mxu0 0.0
  %392 = vmatprep.subr.mxu0 0.0
  %393 = vmatpush1.msra.mxu0 0.0
  %394 = vmatprep.subr.mxu0 0.0
  %395 = vmatpush1.msra.mxu0 0.0
  %396 = vmatprep.subr.mxu0 0.0
  %397 = vmatpush1.msra.mxu0 0.0
  %398 = vmatprep.subr.mxu0 0.0
  %399 = vmatpush1.msra.mxu0 0.0
  %400 = vmatprep.subr.mxu0 0.0
  %401 = vmatpush1.msra.mxu0 0.0
  %402 = vmatprep.subr.mxu0 0.0
  %403 = vmatpush1.msra.mxu0 0.0
  %404 = vmatprep.subr.mxu0 0.0
  %405 = vmatpush1.msra.mxu0 0.0
  %406 = vmatprep.subr.mxu0 0.0
  %407 = vmatpush1.msra.mxu0 0.0
  %408 = vmatprep.subr.mxu0 0.0
  %409 = vmatpush1.msra.mxu0 0.0
  %410 = vmatprep.subr.mxu0 0.0
  %411 = vmatpush1.msra.mxu0 0.0
  %412 = vmatprep.mubr.f32.mxu0 0.0
  %413 = vmatmul.mubr.f32.gmra.mrb[0].mxu0 %v337
  %v414 = vpop.f32.mrb[0].mxu0
  %v415 = vadd.f32 %v334, %v414
  %v416 = vpop.f32.mrb[0].mxu0
  %417 = vmatprep.mubr.f32.mxu0 0.0
  %418 = vmatmul.mubr.f32.gmra.mrb[0].mxu0 %v340
  %v419 = vpop.f32.mrb[0].mxu0
  %v420 = vadd.f32 %v334, %v419
  %v421 = vpop.f32.mrb[0].mxu0
  %422 = vmatprep.mubr.f32.mxu0 0.0
  %423 = vmatmul.mubr.f32.gmra.mrb[0].mxu0 %v343
  %v424 = vpop.f32.mrb[0].mxu0
  %v425 = vadd.f32 %v334, %v424
  %v426 = vpop.f32.mrb[0].mxu0
  %427 = vmatprep.mubr.f32.mxu0 0.0
  %428 = vmatmul.mubr.f32.gmra.mrb[0].mxu0 %v346
  %v429 = vpop.f32.mrb[0].mxu0
  %v430 = vadd.f32 %v334, %v429
  %v431 = vpop.f32.mrb[0].mxu0
  %432 = vdwg.mxu0
  %v433 = vmul.f32 %v415, %v415
  %v434 = vmul.f32 %v420, %v420
  %v435 = vmul.f32 %v425, %v425
  %v436 = vmul.f32 %v430, %v430
  %v437 = vmul.f32 %v415, %v433
  %v438 = vmul.f32 %v420, %v434
  %v439 = vmul.f32 %v425, %v435
  %v440 = vmul.f32 %v430, %v436
  %v441 = vmul.f32 %v437, 0.044715
  %v442 = vmul.f32 %v438, 0.044715
  %v443 = vmul.f32 %v439, 0.044715
  %v444 = vmul.f32 %v440, 0.044715
  %v445 = vadd.f32 %v415, %v441
  %v446 = vadd.f32 %v420, %v442
  %v447 = vadd.f32 %v425, %v443
  %v448 = vadd.f32 %v430, %v444
  %v449 = vmul.f32 %v445, 0.7978846
  %v450 = vmul.f32 %v446, 0.7978846
  %v451 = vmul.f32 %v447, 0.7978846
  %v452 = vmul.f32 %v448, 0.7978846
  %v453 = vtanh.pop %v449
  %v454 = vtanh.pop %v450
  %v455 = vtanh.pop %v451
  %v456 = vtanh.pop %v452
  %v457 = vadd.f32 %v453, 1.0
  %v458 = vadd.f32 %v454, 1.0
  %v459 = vadd.f32 %v455, 1.0
  %v460 = vadd.f32 %v456, 1.0
  %v461 = vmul.f32 %v457, 0.5
  %v462 = vmul.f32 %v458, 0.5
  %v463 = vmul.f32 %v459, 0.5
  %v464 = vmul.f32 %v460, 0.5
  %v465 = vmul.f32 %v415, %v461
  %v466 = vmul.f32 %v420, %v462
  %v467 = vmul.f32 %v425, %v463
  %v468 = vmul.f32 %v430, %v464
  %469 = vrot.lane.b32.xlu0 %v415, 64
  %v470 = vpop.permute.xlu0 %469
  %471 = vrot.lane.b32.xlu0 %v420, 64
  %v472 = vpop.permute.xlu0 %471
  %473 = vrot.lane.b32.xlu0 %v425, 64
  %v474 = vpop.permute.xlu0 %473
  %475 = vrot.lane.b32.xlu0 %v430, 64
  %v476 = vpop.permute.xlu0 %475
  %v477 = vmul.f32 %v465, %v470
  %v478 = vmul.f32 %v466, %v472
  %v479 = vmul.f32 %v467, %v474
  %v480 = vmul.f32 %v468, %v476
  %v481 = vld [vmem:[%s15] sm:$0xff]
  %v482 = vld [vmem:[%s15 + $0x8] sm:$0xff]
  %v483 = vld [vmem:[%s15 + $0x10] sm:$0xff]
  %v484 = vld [vmem:[%s15 + $0x18] sm:$0xff]
  %v485 = vld [vmem:[%s15 + $0x20] sm:$0xff]
  %v486 = vld [vmem:[%s15 + $0x28] sm:$0xff]
  %v487 = vld [vmem:[%s15 + $0x30] sm:$0xff]
  %v488 = vld [vmem:[%s15 + $0x38] sm:$0xff]
  %v489 = vld [vmem:[%s15 + $0x40] sm:$0xff]
  %v490 = vld [vmem:[%s15 + $0x48] sm:$0xff]
  %v491 = vld [vmem:[%s15 + $0x50] sm:$0xff]
  %v492 = vld [vmem:[%s15 + $0x58] sm:$0xff]
  %v493 = vld [vmem:[%s15 + $0x60] sm:$0xff]
  %v494 = vld [vmem:[%s15 + $0x68] sm:$0xff]
  %v495 = vld [vmem:[%s15 + $0x70] sm:$0xff]
  %v496 = vld [vmem:[%s15 + $0x78] sm:$0xff]
  %497 = vmatprep.subr.mxu0 0.0
  %498 = vmatpush1.msra.mxu0 %v481
  %499 = vmatprep.subr.mxu0 0.0
  %500 = vmatpush1.msra.mxu0 %v482
  %501 = vmatprep.subr.mxu0 0.0
  %502 = vmatpush1.msra.mxu0 %v483
  %503 = vmatprep.subr.mxu0 0.0
  %504 = vmatpush1.msra.mxu0 %v484
  %505 = vmatprep.subr.mxu0 0.0
  %506 = vmatpush1.msra.mxu0 %v485
  %507 = vmatprep.subr.mxu0 0.0
  %508 = vmatpush1.msra.mxu0 %v486
  %509 = vmatprep.subr.mxu0 0.0
  %510 = vmatpush1.msra.mxu0 %v487
  %511 = vmatprep.subr.mxu0 0.0
  %512 = vmatpush1.msra.mxu0 %v488
  %513 = vmatprep.subr.mxu0 0.0
  %514 = vmatpush1.msra.mxu0 %v489
  %515 = vmatprep.subr.mxu0 0.0
  %516 = vmatpush1.msra.mxu0 %v490
  %517 = vmatprep.subr.mxu0 0.0
  %518 = vmatpush1.msra.mxu0 %v491
  %519 = vmatprep.subr.mxu0 0.0
  %520 = vmatpush1.msra.mxu0 %v492
  %521 = vmatprep.subr.mxu0 0.0
  %522 = vmatpush1.msra.mxu0 %v493
  %523 = vmatprep.subr.mxu0 0.0
  %524 = vmatpush1.msra.mxu0 %v494
  %525 = vmatprep.subr.mxu0 0.0
  %526 = vmatpush1.msra.mxu0 %v495
  %527 = vmatprep.subr.mxu0 0.0
  %528 = vmatpush1.msra.mxu0 %v496
  %529 = vmatprep.subr.mxu0 0.0
  %530 = vmatpush1.msra.mxu0 0.0
  %531 = vmatprep.subr.mxu0 0.0
  %532 = vmatpush1.msra.mxu0 0.0
  %533 = vmatprep.subr.mxu0 0.0
  %534 = vmatpush1.msra.mxu0 0.0
  %535 = vmatprep.subr.mxu0 0.0
  %536 = vmatpush1.msra.mxu0 0.0
  %537 = vmatprep.subr.mxu0 0.0
  %538 = vmatpush1.msra.mxu0 0.0
  %539 = vmatprep.subr.mxu0 0.0
  %540 = vmatpush1.msra.mxu0 0.0
  %541 = vmatprep.subr.mxu0 0.0
  %542 = vmatpush1.msra.mxu0 0.0
  %543 = vmatprep.subr.mxu0 0.0
  %544 = vmatpush1.msra.mxu0 0.0
  %545 = vmatprep.subr.mxu0 0.0
  %546 = vmatpush1.msra.mxu0 0.0
  %547 = vmatprep.subr.mxu0 0.0
  %548 = vmatpush1.msra.mxu0 0.0
  %549 = vmatprep.subr.mxu0 0.0
  %550 = vmatpush1.msra.mxu0 0.0
  %551 = vmatprep.subr.mxu0 0.0
  %552 = vmatpush1.msra.mxu0 0.0
  %553 = vmatprep.subr.mxu0 0.0
  %554 = vmatpush1.msra.mxu0 0.0
  %555 = vmatprep.subr.mxu0 0.0
  %556 = vmatpush1.msra.mxu0 0.0
  %557 = vmatprep.subr.mxu0 0.0
  %558 = vmatpush1.msra.mxu0 0.0
  %559 = vmatprep.subr.mxu0 0.0
  %560 = vmatpush1.msra.mxu0 0.0
  %561 = vmatprep.mubr.f32.mxu0 0.0
  %562 = vmatmul.mubr.f32.gmra.mrb[0].mxu0 %v477
  %v563 = vpop.f32.mrb[0].mxu0
  %v564 = vadd.f32 0.0, %v563
  %v565 = vpop.f32.mrb[0].mxu0
  %566 = vmatprep.mubr.f32.mxu0 0.0
  %567 = vmatmul.mubr.f32.gmra.mrb[0].mxu0 %v478
  %v568 = vpop.f32.mrb[0].mxu0
  %v569 = vadd.f32 0.0, %v568
  %v570 = vpop.f32.mrb[0].mxu0
  %571 = vmatprep.mubr.f32.mxu0 0.0
  %572 = vmatmul.mubr.f32.gmra.mrb[0].mxu0 %v479
  %v573 = vpop.f32.mrb[0].mxu0
  %v574 = vadd.f32 0.0, %v573
  %v575 = vpop.f32.mrb[0].mxu0
  %576 = vmatprep.mubr.f32.mxu0 0.0
  %577 = vmatmul.mubr.f32.gmra.mrb[0].mxu0 %v480
  %v578 = vpop.f32.mrb[0].mxu0
  %v579 = vadd.f32 0.0, %v578
  %v580 = vpop.f32.mrb[0].mxu0
  %581 = vdwg.mxu0
  %v582 = vadd.f32 %v231, %v564
  %v583 = vadd.f32 %v236, %v569
  %v584 = vadd.f32 %v241, %v574
  %v585 = vadd.f32 %v246, %v579
  %v586 = vld [vmem:[%s17] sm:$0x1]
  %v588 = vlaneseq
  %v589 = vshrl.u32 %v588, 7
  %v590 = vsub.s32 0, %v589
  %v591 = vrot.slane %v586, %v590
  %v593 = vadd.f32 %v582, %v591
  %v594 = vadd.f32 %v583, %v591
  %v595 = vadd.f32 %v584, %v591
  %v596 = vadd.f32 %v585, %v591
  %v597 = vld [vmem:[%s19] sm:$0x3]
  %v599 = vsel %vm251, %v597, 0
  %601 = vmatprep.subr.mxu0 0.0
  %602 = vmatpush1.msra.mxu0 %v593
  %603 = vmatprep.subr.mxu0 0.0
  %604 = vmatpush1.msra.mxu0 %v594
  %605 = vmatprep.subr.mxu0 0.0
  %606 = vmatpush1.msra.mxu0 %v595
  %607 = vmatprep.subr.mxu0 0.0
  %608 = vmatpush1.msra.mxu0 %v596
  %609 = vmatprep.subr.mxu0 0.0
  %610 = vmatpush1.msra.mxu0 0.0
  %611 = vmatprep.subr.mxu0 0.0
  %612 = vmatpush1.msra.mxu0 0.0
  %613 = vmatprep.subr.mxu0 0.0
  %614 = vmatpush1.msra.mxu0 0.0
  %615 = vmatprep.subr.mxu0 0.0
  %616 = vmatpush1.msra.mxu0 0.0
  %617 = vmatprep.subr.mxu0 0.0
  %618 = vmatpush1.msra.mxu0 0.0
  %619 = vmatprep.subr.mxu0 0.0
  %620 = vmatpush1.msra.mxu0 0.0
  %621 = vmatprep.subr.mxu0 0.0
  %622 = vmatpush1.msra.mxu0 0.0
  %623 = vmatprep.subr.mxu0 0.0
  %624 = vmatpush1.msra.mxu0 0.0
  %625 = vmatprep.subr.mxu0 0.0
  %626 = vmatpush1.msra.mxu0 0.0
  %627 = vmatprep.subr.mxu0 0.0
  %628 = vmatpush1.msra.mxu0 0.0
  %629 = vmatprep.subr.mxu0 0.0
  %630 = vmatpush1.msra.mxu0 0.0
  %631 = vmatprep.subr.mxu0 0.0
  %632 = vmatpush1.msra.mxu0 0.0
  %633 = vmatprep.subr.mxu0 0.0
  %634 = vmatpush1.msra.mxu0 0.0
  %635 = vmatprep.subr.mxu0 0.0
  %636 = vmatpush1.msra.mxu0 0.0
  %637 = vmatprep.subr.mxu0 0.0
  %638 = vmatpush1.msra.mxu0 0.0
  %639 = vmatprep.subr.mxu0 0.0
  %640 = vmatpush1.msra.mxu0 0.0
  %641 = vmatprep.subr.mxu0 0.0
  %642 = vmatpush1.msra.mxu0 0.0
  %643 = vmatprep.subr.mxu0 0.0
  %644 = vmatpush1.msra.mxu0 0.0
  %645 = vmatprep.subr.mxu0 0.0
  %646 = vmatpush1.msra.mxu0 0.0
  %647 = vmatprep.subr.mxu0 0.0
  %648 = vmatpush1.msra.mxu0 0.0
  %649 = vmatprep.subr.mxu0 0.0
  %650 = vmatpush1.msra.mxu0 0.0
  %651 = vmatprep.subr.mxu0 0.0
  %652 = vmatpush1.msra.mxu0 0.0
  %653 = vmatprep.subr.mxu0 0.0
  %654 = vmatpush1.msra.mxu0 0.0
  %655 = vmatprep.subr.mxu0 0.0
  %656 = vmatpush1.msra.mxu0 0.0
  %657 = vmatprep.subr.mxu0 0.0
  %658 = vmatpush1.msra.mxu0 0.0
  %659 = vmatprep.subr.mxu0 0.0
  %660 = vmatpush1.msra.mxu0 0.0
  %661 = vmatprep.subr.mxu0 0.0
  %662 = vmatpush1.msra.mxu0 0.0
  %663 = vmatprep.subr.mxu0 0.0
  %664 = vmatpush1.msra.mxu0 0.0
  %665 = vmatprep.mubr.f32.mxu0 0.0
  %666 = vmatmul.mubr.f32.gmra.mrb[0].mxu0 %v599
  %v667 = vpop.f32.mrb[0].mxu0
  %v668 = vadd.f32 0.0, %v667
  %v669 = vpop.f32.mrb[0].mxu0
  %670 = vdwg.mxu0
  %v671 = vld [vmem:[%s21] sm:$0xff]
  %v672 = vld [vmem:[%s21 + $0x8] sm:$0xff]
  %v673 = vld [vmem:[%s21 + $0x10] sm:$0xff]
  %v674 = vld [vmem:[%s21 + $0x18] sm:$0xff]
  %v675 = vld [vmem:[%s21 + $0x20] sm:$0x3]
  %v676 = vld [vmem:[%s23] sm:$0xff]
  %v677 = vld [vmem:[%s23 + $0x8] sm:$0xff]
  %v678 = vld [vmem:[%s23 + $0x10] sm:$0xff]
  %v679 = vld [vmem:[%s23 + $0x18] sm:$0xff]
  %v680 = vld [vmem:[%s23 + $0x20] sm:$0xff]
  %v681 = vld [vmem:[%s23 + $0x28] sm:$0xff]
  %v682 = vld [vmem:[%s23 + $0x30] sm:$0xff]
  %v683 = vld [vmem:[%s23 + $0x38] sm:$0xff]
  %v684 = vld [vmem:[%s23 + $0x40] sm:$0xff]
  %v685 = vld [vmem:[%s23 + $0x48] sm:$0xff]
  %v686 = vld [vmem:[%s23 + $0x50] sm:$0xff]
  %v687 = vld [vmem:[%s23 + $0x58] sm:$0xff]
  %v688 = vld [vmem:[%s23 + $0x60] sm:$0xff]
  %v689 = vld [vmem:[%s23 + $0x68] sm:$0xff]
  %v690 = vld [vmem:[%s23 + $0x70] sm:$0xff]
  %v691 = vld [vmem:[%s23 + $0x78] sm:$0xff]
  %v693 = vsel %vm251, %v668, 0
  %695 = vmatprep.subr.mxu0 %v677
  %696 = vmatpush1.msra.mxu0 %v676
  %697 = vmatprep.subr.mxu0 %v681
  %698 = vmatpush1.msra.mxu0 %v680
  %699 = vmatprep.subr.mxu0 %v685
  %700 = vmatpush1.msra.mxu0 %v684
  %701 = vmatprep.subr.mxu0 %v689
  %702 = vmatpush1.msra.mxu0 %v688
  %703 = vmatprep.subr.mxu0 0.0
  %704 = vmatpush1.msra.mxu0 0.0
  %705 = vmatprep.subr.mxu0 0.0
  %706 = vmatpush1.msra.mxu0 0.0
  %707 = vmatprep.subr.mxu0 0.0
  %708 = vmatpush1.msra.mxu0 0.0
  %709 = vmatprep.subr.mxu0 0.0
  %710 = vmatpush1.msra.mxu0 0.0
  %711 = vmatprep.subr.mxu0 0.0
  %712 = vmatpush1.msra.mxu0 0.0
  %713 = vmatprep.subr.mxu0 0.0
  %714 = vmatpush1.msra.mxu0 0.0
  %715 = vmatprep.subr.mxu0 0.0
  %716 = vmatpush1.msra.mxu0 0.0
  %717 = vmatprep.subr.mxu0 0.0
  %718 = vmatpush1.msra.mxu0 0.0
  %719 = vmatprep.subr.mxu0 0.0
  %720 = vmatpush1.msra.mxu0 0.0
  %721 = vmatprep.subr.mxu0 0.0
  %722 = vmatpush1.msra.mxu0 0.0
  %723 = vmatprep.subr.mxu0 0.0
  %724 = vmatpush1.msra.mxu0 0.0
  %725 = vmatprep.subr.mxu0 0.0
  %726 = vmatpush1.msra.mxu0 0.0
  %727 = vmatprep.subr.mxu0 0.0
  %728 = vmatpush1.msra.mxu0 0.0
  %729 = vmatprep.subr.mxu0 0.0
  %730 = vmatpush1.msra.mxu0 0.0
  %731 = vmatprep.subr.mxu0 0.0
  %732 = vmatpush1.msra.mxu0 0.0
  %733 = vmatprep.subr.mxu0 0.0
  %734 = vmatpush1.msra.mxu0 0.0
  %735 = vmatprep.subr.mxu0 0.0
  %736 = vmatpush1.msra.mxu0 0.0
  %737 = vmatprep.subr.mxu0 0.0
  %738 = vmatpush1.msra.mxu0 0.0
  %739 = vmatprep.subr.mxu0 0.0
  %740 = vmatpush1.msra.mxu0 0.0
  %741 = vmatprep.subr.mxu0 0.0
  %742 = vmatpush1.msra.mxu0 0.0
  %743 = vmatprep.subr.mxu0 0.0
  %744 = vmatpush1.msra.mxu0 0.0
  %745 = vmatprep.subr.mxu0 0.0
  %746 = vmatpush1.msra.mxu0 0.0
  %747 = vmatprep.subr.mxu0 0.0
  %748 = vmatpush1.msra.mxu0 0.0
  %749 = vmatprep.subr.mxu0 0.0
  %750 = vmatpush1.msra.mxu0 0.0
  %751 = vmatprep.subr.mxu0 0.0
  %752 = vmatpush1.msra.mxu0 0.0
  %753 = vmatprep.subr.mxu0 0.0
  %754 = vmatpush1.msra.mxu0 0.0
  %755 = vmatprep.subr.mxu0 0.0
  %756 = vmatpush1.msra.mxu0 0.0
  %757 = vmatprep.subr.mxu0 0.0
  %758 = vmatpush1.msra.mxu0 0.0
  %759 = vmatprep.mubr.f32.mxu0 0.0
  %760 = vmatmul.mubr.f32.gmra.mrb[0].mxu0 %v693
  %v761 = vpop.f32.mrb[0].mxu0
  %v762 = vadd.f32 0.0, %v761
  %v763 = vpop.f32.mrb[0].mxu0
  %v764 = vadd.f32 0.0, %v763
  %765 = vdwg.mxu0
  %766 = vmatprep.subr.mxu0 %v679
  %767 = vmatpush1.msra.mxu0 %v678
  %768 = vmatprep.subr.mxu0 %v683
  %769 = vmatpush1.msra.mxu0 %v682
  %770 = vmatprep.subr.mxu0 %v687
  %771 = vmatpush1.msra.mxu0 %v686
  %772 = vmatprep.subr.mxu0 %v691
  %773 = vmatpush1.msra.mxu0 %v690
  %774 = vmatprep.subr.mxu0 0.0
  %775 = vmatpush1.msra.mxu0 0.0
  %776 = vmatprep.subr.mxu0 0.0
  %777 = vmatpush1.msra.mxu0 0.0
  %778 = vmatprep.subr.mxu0 0.0
  %779 = vmatpush1.msra.mxu0 0.0
  %780 = vmatprep.subr.mxu0 0.0
  %781 = vmatpush1.msra.mxu0 0.0
  %782 = vmatprep.subr.mxu0 0.0
  %783 = vmatpush1.msra.mxu0 0.0
  %784 = vmatprep.subr.mxu0 0.0
  %785 = vmatpush1.msra.mxu0 0.0
  %786 = vmatprep.subr.mxu0 0.0
  %787 = vmatpush1.msra.mxu0 0.0
  %788 = vmatprep.subr.mxu0 0.0
  %789 = vmatpush1.msra.mxu0 0.0
  %790 = vmatprep.subr.mxu0 0.0
  %791 = vmatpush1.msra.mxu0 0.0
  %792 = vmatprep.subr.mxu0 0.0
  %793 = vmatpush1.msra.mxu0 0.0
  %794 = vmatprep.subr.mxu0 0.0
  %795 = vmatpush1.msra.mxu0 0.0
  %796 = vmatprep.subr.mxu0 0.0
  %797 = vmatpush1.msra.mxu0 0.0
  %798 = vmatprep.subr.mxu0 0.0
  %799 = vmatpush1.msra.mxu0 0.0
  %800 = vmatprep.subr.mxu0 0.0
  %801 = vmatpush1.msra.mxu0 0.0
  %802 = vmatprep.subr.mxu0 0.0
  %803 = vmatpush1.msra.mxu0 0.0
  %804 = vmatprep.subr.mxu0 0.0
  %805 = vmatpush1.msra.mxu0 0.0
  %806 = vmatprep.subr.mxu0 0.0
  %807 = vmatpush1.msra.mxu0 0.0
  %808 = vmatprep.subr.mxu0 0.0
  %809 = vmatpush1.msra.mxu0 0.0
  %810 = vmatprep.subr.mxu0 0.0
  %811 = vmatpush1.msra.mxu0 0.0
  %812 = vmatprep.subr.mxu0 0.0
  %813 = vmatpush1.msra.mxu0 0.0
  %814 = vmatprep.subr.mxu0 0.0
  %815 = vmatpush1.msra.mxu0 0.0
  %816 = vmatprep.subr.mxu0 0.0
  %817 = vmatpush1.msra.mxu0 0.0
  %818 = vmatprep.subr.mxu0 0.0
  %819 = vmatpush1.msra.mxu0 0.0
  %820 = vmatprep.subr.mxu0 0.0
  %821 = vmatpush1.msra.mxu0 0.0
  %822 = vmatprep.subr.mxu0 0.0
  %823 = vmatpush1.msra.mxu0 0.0
  %824 = vmatprep.subr.mxu0 0.0
  %825 = vmatpush1.msra.mxu0 0.0
  %826 = vmatprep.subr.mxu0 0.0
  %827 = vmatpush1.msra.mxu0 0.0
  %828 = vmatprep.subr.mxu0 0.0
  %829 = vmatpush1.msra.mxu0 0.0
  %830 = vmatprep.mubr.f32.mxu0 0.0
  %831 = vmatmul.mubr.f32.gmra.mrb[0].mxu0 %v693
  %v832 = vpop.f32.mrb[0].mxu0
  %v833 = vadd.f32 0.0, %v832
  %v834 = vpop.f32.mrb[0].mxu0
  %v835 = vadd.f32 0.0, %v834
  %836 = vdwg.mxu0
  %vm837 = vcmask 15360
  %v839 = vsel %vm837, %v671, 0
  %v842 = vsel %vm837, %v672, 0
  %v845 = vsel %vm837, %v673, 0
  %v848 = vsel %vm837, %v674, 0
  %v851 = vsel %vm837, %v675, 0
  %vm853 = vcmask 1041408
  %v855 = vsel %vm853, %v762, 0
  %v858 = vsel %vm853, %v764, 0
  %v861 = vsel %vm853, %v833, 0
  %v864 = vsel %vm853, %v835, 0
  %866 = vmatprep.subr.mxu0 %v858
  %867 = vmatpush1.msra.mxu0 %v855
  %868 = vmatprep.subr.mxu0 0.0
  %869 = vmatpush1.msra.mxu0 0.0
  %870 = vmatprep.subr.mxu0 0.0
  %871 = vmatpush1.msra.mxu0 0.0
  %872 = vmatprep.subr.mxu0 0.0
  %873 = vmatpush1.msra.mxu0 0.0
  %874 = vmatprep.subr.mxu0 0.0
  %875 = vmatpush1.msra.mxu0 0.0
  %876 = vmatprep.subr.mxu0 0.0
  %877 = vmatpush1.msra.mxu0 0.0
  %878 = vmatprep.subr.mxu0 0.0
  %879 = vmatpush1.msra.mxu0 0.0
  %880 = vmatprep.subr.mxu0 0.0
  %881 = vmatpush1.msra.mxu0 0.0
  %882 = vmatprep.subr.mxu0 0.0
  %883 = vmatpush1.msra.mxu0 0.0
  %884 = vmatprep.subr.mxu0 0.0
  %885 = vmatpush1.msra.mxu0 0.0
  %886 = vmatprep.subr.mxu0 0.0
  %887 = vmatpush1.msra.mxu0 0.0
  %888 = vmatprep.subr.mxu0 0.0
  %889 = vmatpush1.msra.mxu0 0.0
  %890 = vmatprep.subr.mxu0 0.0
  %891 = vmatpush1.msra.mxu0 0.0
  %892 = vmatprep.subr.mxu0 0.0
  %893 = vmatpush1.msra.mxu0 0.0
  %894 = vmatprep.subr.mxu0 0.0
  %895 = vmatpush1.msra.mxu0 0.0
  %896 = vmatprep.subr.mxu0 0.0
  %897 = vmatpush1.msra.mxu0 0.0
  %898 = vmatprep.subr.mxu0 0.0
  %899 = vmatpush1.msra.mxu0 0.0
  %900 = vmatprep.subr.mxu0 0.0
  %901 = vmatpush1.msra.mxu0 0.0
  %902 = vmatprep.subr.mxu0 0.0
  %903 = vmatpush1.msra.mxu0 0.0
  %904 = vmatprep.subr.mxu0 0.0
  %905 = vmatpush1.msra.mxu0 0.0
  %906 = vmatprep.subr.mxu0 0.0
  %907 = vmatpush1.msra.mxu0 0.0
  %908 = vmatprep.subr.mxu0 0.0
  %909 = vmatpush1.msra.mxu0 0.0
  %910 = vmatprep.subr.mxu0 0.0
  %911 = vmatpush1.msra.mxu0 0.0
  %912 = vmatprep.subr.mxu0 0.0
  %913 = vmatpush1.msra.mxu0 0.0
  %914 = vmatprep.subr.mxu0 0.0
  %915 = vmatpush1.msra.mxu0 0.0
  %916 = vmatprep.subr.mxu0 0.0
  %917 = vmatpush1.msra.mxu0 0.0
  %918 = vmatprep.subr.mxu0 0.0
  %919 = vmatpush1.msra.mxu0 0.0
  %920 = vmatprep.subr.mxu0 0.0
  %921 = vmatpush1.msra.mxu0 0.0
  %922 = vmatprep.subr.mxu0 0.0
  %923 = vmatpush1.msra.mxu0 0.0
  %924 = vmatprep.subr.mxu0 0.0
  %925 = vmatpush1.msra.mxu0 0.0
  %926 = vmatprep.subr.mxu0 0.0
  %927 = vmatpush1.msra.mxu0 0.0
  %928 = vmatprep.subr.mxu0 0.0
  %929 = vmatpush1.msra.mxu0 0.0
  %930 = vmatprep.mubr.f32.mxu0 0.0
  %931 = vmatmul.mubr.f32.gmra.mrb[0].mxu0 %v839
  %v932 = vpop.f32.mrb[0].mxu0
  %v933 = vadd.f32 0.0, %v932
  %v934 = vpop.f32.mrb[0].mxu0
  %v935 = vadd.f32 0.0, %v934
  %936 = vmatprep.mubr.f32.mxu0 0.0
  %937 = vmatmul.mubr.f32.gmra.mrb[0].mxu0 %v842
  %v938 = vpop.f32.mrb[0].mxu0
  %v939 = vadd.f32 0.0, %v938
  %v940 = vpop.f32.mrb[0].mxu0
  %v941 = vadd.f32 0.0, %v940
  %942 = vmatprep.mubr.f32.mxu0 0.0
  %943 = vmatmul.mubr.f32.gmra.mrb[0].mxu0 %v845
  %v944 = vpop.f32.mrb[0].mxu0
  %v945 = vadd.f32 0.0, %v944
  %v946 = vpop.f32.mrb[0].mxu0
  %v947 = vadd.f32 0.0, %v946
  %948 = vmatprep.mubr.f32.mxu0 0.0
  %949 = vmatmul.mubr.f32.gmra.mrb[0].mxu0 %v848
  %v950 = vpop.f32.mrb[0].mxu0
  %v951 = vadd.f32 0.0, %v950
  %v952 = vpop.f32.mrb[0].mxu0
  %v953 = vadd.f32 0.0, %v952
  %954 = vmatprep.mubr.f32.mxu0 0.0
  %955 = vmatmul.mubr.f32.gmra.mrb[0].mxu0 %v851
  %v956 = vpop.f32.mrb[0].mxu0
  %v957 = vadd.f32 0.0, %v956
  %v958 = vpop.f32.mrb[0].mxu0
  %v959 = vadd.f32 0.0, %v958
  %960 = vdwg.mxu0
  %961 = vmatprep.subr.mxu0 %v864
  %962 = vmatpush1.msra.mxu0 %v861
  %963 = vmatprep.subr.mxu0 0.0
  %964 = vmatpush1.msra.mxu0 0.0
  %965 = vmatprep.subr.mxu0 0.0
  %966 = vmatpush1.msra.mxu0 0.0
  %967 = vmatprep.subr.mxu0 0.0
  %968 = vmatpush1.msra.mxu0 0.0
  %969 = vmatprep.subr.mxu0 0.0
  %970 = vmatpush1.msra.mxu0 0.0
  %971 = vmatprep.subr.mxu0 0.0
  %972 = vmatpush1.msra.mxu0 0.0
  %973 = vmatprep.subr.mxu0 0.0
  %974 = vmatpush1.msra.mxu0 0.0
  %975 = vmatprep.subr.mxu0 0.0
  %976 = vmatpush1.msra.mxu0 0.0
  %977 = vmatprep.subr.mxu0 0.0
  %978 = vmatpush1.msra.mxu0 0.0
  %979 = vmatprep.subr.mxu0 0.0
  %980 = vmatpush1.msra.mxu0 0.0
  %981 = vmatprep.subr.mxu0 0.0
  %982 = vmatpush1.msra.mxu0 0.0
  %983 = vmatprep.subr.mxu0 0.0
  %984 = vmatpush1.msra.mxu0 0.0
  %985 = vmatprep.subr.mxu0 0.0
  %986 = vmatpush1.msra.mxu0 0.0
  %987 = vmatprep.subr.mxu0 0.0
  %988 = vmatpush1.msra.mxu0 0.0
  %989 = vmatprep.subr.mxu0 0.0
  %990 = vmatpush1.msra.mxu0 0.0
  %991 = vmatprep.subr.mxu0 0.0
  %992 = vmatpush1.msra.mxu0 0.0
  %993 = vmatprep.subr.mxu0 0.0
  %994 = vmatpush1.msra.mxu0 0.0
  %995 = vmatprep.subr.mxu0 0.0
  %996 = vmatpush1.msra.mxu0 0.0
  %997 = vmatprep.subr.mxu0 0.0
  %998 = vmatpush1.msra.mxu0 0.0
  %999 = vmatprep.subr.mxu0 0.0
  %1000 = vmatpush1.msra.mxu0 0.0
  %1001 = vmatprep.subr.mxu0 0.0
  %1002 = vmatpush1.msra.mxu0 0.0
  %1003 = vmatprep.subr.mxu0 0.0
  %1004 = vmatpush1.msra.mxu0 0.0
  %1005 = vmatprep.subr.mxu0 0.0
  %1006 = vmatpush1.msra.mxu0 0.0
  %1007 = vmatprep.subr.mxu0 0.0
  %1008 = vmatpush1.msra.mxu0 0.0
  %1009 = vmatprep.subr.mxu0 0.0
  %1010 = vmatpush1.msra.mxu0 0.0
  %1011 = vmatprep.subr.mxu0 0.0
  %1012 = vmatpush1.msra.mxu0 0.0
  %1013 = vmatprep.subr.mxu0 0.0
  %1014 = vmatpush1.msra.mxu0 0.0
  %1015 = vmatprep.subr.mxu0 0.0
  %1016 = vmatpush1.msra.mxu0 0.0
  %1017 = vmatprep.subr.mxu0 0.0
  %1018 = vmatpush1.msra.mxu0 0.0
  %1019 = vmatprep.subr.mxu0 0.0
  %1020 = vmatpush1.msra.mxu0 0.0
  %1021 = vmatprep.subr.mxu0 0.0
  %1022 = vmatpush1.msra.mxu0 0.0
  %1023 = vmatprep.subr.mxu0 0.0
  %1024 = vmatpush1.msra.mxu0 0.0
  %1025 = vmatprep.mubr.f32.mxu0 0.0
  %1026 = vmatmul.mubr.f32.gmra.mrb[0].mxu0 %v839
  %v1027 = vpop.f32.mrb[0].mxu0
  %v1028 = vadd.f32 0.0, %v1027
  %v1029 = vpop.f32.mrb[0].mxu0
  %v1030 = vadd.f32 0.0, %v1029
  %1031 = vmatprep.mubr.f32.mxu0 0.0
  %1032 = vmatmul.mubr.f32.gmra.mrb[0].mxu0 %v842
  %v1033 = vpop.f32.mrb[0].mxu0
  %v1034 = vadd.f32 0.0, %v1033
  %v1035 = vpop.f32.mrb[0].mxu0
  %v1036 = vadd.f32 0.0, %v1035
  %1037 = vmatprep.mubr.f32.mxu0 0.0
  %1038 = vmatmul.mubr.f32.gmra.mrb[0].mxu0 %v845
  %v1039 = vpop.f32.mrb[0].mxu0
  %v1040 = vadd.f32 0.0, %v1039
  %v1041 = vpop.f32.mrb[0].mxu0
  %v1042 = vadd.f32 0.0, %v1041
  %1043 = vmatprep.mubr.f32.mxu0 0.0
  %1044 = vmatmul.mubr.f32.gmra.mrb[0].mxu0 %v848
  %v1045 = vpop.f32.mrb[0].mxu0
  %v1046 = vadd.f32 0.0, %v1045
  %v1047 = vpop.f32.mrb[0].mxu0
  %v1048 = vadd.f32 0.0, %v1047
  %1049 = vmatprep.mubr.f32.mxu0 0.0
  %1050 = vmatmul.mubr.f32.gmra.mrb[0].mxu0 %v851
  %v1051 = vpop.f32.mrb[0].mxu0
  %v1052 = vadd.f32 0.0, %v1051
  %v1053 = vpop.f32.mrb[0].mxu0
  %v1054 = vadd.f32 0.0, %v1053
  %1055 = vdwg.mxu0
  %v1056 = vld [vmem:[%s29] sm:$0xff]
  %v1057 = vld [vmem:[%s29 + $0x8] sm:$0xff]
  %v1058 = vld [vmem:[%s29 + $0x10] sm:$0xff]
  %v1059 = vld [vmem:[%s29 + $0x18] sm:$0xff]
  %v1060 = vld [vmem:[%s29 + $0x20] sm:$0x3]
  %v1061 = vld [vmem:[%s25] sm:$0xff]
  %v1062 = vld [vmem:[%s25 + $0x8] sm:$0xff]
  %v1063 = vld [vmem:[%s25 + $0x10] sm:$0xff]
  %v1064 = vld [vmem:[%s25 + $0x18] sm:$0xff]
  %v1065 = vld [vmem:[%s25 + $0x20] sm:$0xff]
  %v1066 = vld [vmem:[%s25 + $0x28] sm:$0xff]
  %v1067 = vld [vmem:[%s25 + $0x30] sm:$0xff]
  %v1068 = vld [vmem:[%s25 + $0x38] sm:$0xff]
  %v1069 = vld [vmem:[%s25 + $0x40] sm:$0xff]
  %v1070 = vld [vmem:[%s25 + $0x48] sm:$0xff]
  %v1071 = vld [vmem:[%s25 + $0x50] sm:$0xff]
  %v1072 = vld [vmem:[%s25 + $0x58] sm:$0xff]
  %v1073 = vld [vmem:[%s25 + $0x60] sm:$0xff]
  %v1074 = vld [vmem:[%s25 + $0x68] sm:$0xff]
  %v1075 = vld [vmem:[%s25 + $0x70] sm:$0xff]
  %v1076 = vld [vmem:[%s25 + $0x78] sm:$0xff]
  %v1077 = vld [vmem:[%s25 + $0x80] sm:$0x3]
  %v1078 = vld [vmem:[%s25 + $0x88] sm:$0x3]
  %v1079 = vld [vmem:[%s25 + $0x90] sm:$0x3]
  %v1080 = vld [vmem:[%s25 + $0x98] sm:$0x3]
  %v1081 = vmul.f32 %v933, %v1061
  %v1082 = vmul.f32 %v935, %v1062
  %v1083 = vmul.f32 %v1028, %v1063
  %v1084 = vmul.f32 %v1030, %v1064
  %v1085 = vmul.f32 %v939, %v1065
  %v1086 = vmul.f32 %v941, %v1066
  %v1087 = vmul.f32 %v1034, %v1067
  %v1088 = vmul.f32 %v1036, %v1068
  %v1089 = vmul.f32 %v945, %v1069
  %v1090 = vmul.f32 %v947, %v1070
  %v1091 = vmul.f32 %v1040, %v1071
  %v1092 = vmul.f32 %v1042, %v1072
  %v1093 = vmul.f32 %v951, %v1073
  %v1094 = vmul.f32 %v953, %v1074
  %v1095 = vmul.f32 %v1046, %v1075
  %v1096 = vmul.f32 %v1048, %v1076
  %v1097 = vmul.f32 %v957, %v1077
  %v1098 = vmul.f32 %v959, %v1078
  %v1099 = vmul.f32 %v1052, %v1079
  %v1100 = vmul.f32 %v1054, %v1080
  %v1101 = vld [vmem:[%s27] sm:$0xff]
  %v1102 = vld [vmem:[%s27 + $0x8] sm:$0xff]
  %v1103 = vld [vmem:[%s27 + $0x10] sm:$0xff]
  %v1104 = vld [vmem:[%s27 + $0x18] sm:$0xff]
  %v1105 = vld [vmem:[%s27 + $0x20] sm:$0xff]
  %v1106 = vld [vmem:[%s27 + $0x28] sm:$0xff]
  %v1107 = vld [vmem:[%s27 + $0x30] sm:$0xff]
  %v1108 = vld [vmem:[%s27 + $0x38] sm:$0xff]
  %v1109 = vld [vmem:[%s27 + $0x40] sm:$0xff]
  %v1110 = vld [vmem:[%s27 + $0x48] sm:$0xff]
  %v1111 = vld [vmem:[%s27 + $0x50] sm:$0xff]
  %v1112 = vld [vmem:[%s27 + $0x58] sm:$0xff]
  %v1113 = vld [vmem:[%s27 + $0x60] sm:$0xff]
  %v1114 = vld [vmem:[%s27 + $0x68] sm:$0xff]
  %v1115 = vld [vmem:[%s27 + $0x70] sm:$0xff]
  %v1116 = vld [vmem:[%s27 + $0x78] sm:$0xff]
  %v1117 = vld [vmem:[%s27 + $0x80] sm:$0xff]
  %v1118 = vld [vmem:[%s27 + $0x88] sm:$0xff]
  %v1119 = vld [vmem:[%s27 + $0x90] sm:$0xff]
  %v1120 = vld [vmem:[%s27 + $0x98] sm:$0xff]
  %v1121 = vld [vmem:[%s27 + $0xa0] sm:$0xff]
  %v1122 = vld [vmem:[%s27 + $0xa8] sm:$0xff]
  %v1123 = vld [vmem:[%s27 + $0xb0] sm:$0xff]
  %v1124 = vld [vmem:[%s27 + $0xb8] sm:$0xff]
  %v1125 = vld [vmem:[%s27 + $0xc0] sm:$0xff]
  %v1126 = vld [vmem:[%s27 + $0xc8] sm:$0xff]
  %v1127 = vld [vmem:[%s27 + $0xd0] sm:$0xff]
  %v1128 = vld [vmem:[%s27 + $0xd8] sm:$0xff]
  %v1129 = vld [vmem:[%s27 + $0xe0] sm:$0xff]
  %v1130 = vld [vmem:[%s27 + $0xe8] sm:$0xff]
  %v1131 = vld [vmem:[%s27 + $0xf0] sm:$0xff]
  %v1132 = vld [vmem:[%s27 + $0xf8] sm:$0xff]
  %v1133 = vld [vmem:[%s27 + $0x100] sm:$0xff]
  %v1134 = vld [vmem:[%s27 + $0x108] sm:$0xff]
  %v1135 = vld [vmem:[%s27 + $0x110] sm:$0xff]
  %v1136 = vld [vmem:[%s27 + $0x118] sm:$0xff]
  %v1137 = vld [vmem:[%s27 + $0x120] sm:$0xff]
  %v1138 = vld [vmem:[%s27 + $0x128] sm:$0xff]
  %v1139 = vld [vmem:[%s27 + $0x130] sm:$0xff]
  %v1140 = vld [vmem:[%s27 + $0x138] sm:$0xff]
  %v1141 = vld [vmem:[%s27 + $0x140] sm:$0xff]
  %v1142 = vld [vmem:[%s27 + $0x148] sm:$0xff]
  %v1143 = vld [vmem:[%s27 + $0x150] sm:$0xff]
  %v1144 = vld [vmem:[%s27 + $0x158] sm:$0xff]
  %v1145 = vld [vmem:[%s27 + $0x160] sm:$0xff]
  %v1146 = vld [vmem:[%s27 + $0x168] sm:$0xff]
  %v1147 = vld [vmem:[%s27 + $0x170] sm:$0xff]
  %v1148 = vld [vmem:[%s27 + $0x178] sm:$0xff]
  %v1149 = vld [vmem:[%s27 + $0x180] sm:$0xff]
  %v1150 = vld [vmem:[%s27 + $0x188] sm:$0xff]
  %v1151 = vld [vmem:[%s27 + $0x190] sm:$0xff]
  %v1152 = vld [vmem:[%s27 + $0x198] sm:$0xff]
  %v1153 = vld [vmem:[%s27 + $0x1a0] sm:$0xff]
  %v1154 = vld [vmem:[%s27 + $0x1a8] sm:$0xff]
  %v1155 = vld [vmem:[%s27 + $0x1b0] sm:$0xff]
  %v1156 = vld [vmem:[%s27 + $0x1b8] sm:$0xff]
  %v1157 = vld [vmem:[%s27 + $0x1c0] sm:$0xff]
  %v1158 = vld [vmem:[%s27 + $0x1c8] sm:$0xff]
  %v1159 = vld [vmem:[%s27 + $0x1d0] sm:$0xff]
  %v1160 = vld [vmem:[%s27 + $0x1d8] sm:$0xff]
  %v1161 = vld [vmem:[%s27 + $0x1e0] sm:$0xff]
  %v1162 = vld [vmem:[%s27 + $0x1e8] sm:$0xff]
  %v1163 = vld [vmem:[%s27 + $0x1f0] sm:$0xff]
  %v1164 = vld [vmem:[%s27 + $0x1f8] sm:$0xff]
  %1165 = vmatprep.subr.mxu0 0.0
  %1166 = vmatpush1.msra.mxu0 %v1101
  %1167 = vmatprep.subr.mxu0 0.0
  %1168 = vmatpush1.msra.mxu0 %v1102
  %1169 = vmatprep.subr.mxu0 0.0
  %1170 = vmatpush1.msra.mxu0 %v1103
  %1171 = vmatprep.subr.mxu0 0.0
  %1172 = vmatpush1.msra.mxu0 %v1104
  %1173 = vmatprep.subr.mxu0 0.0
  %1174 = vmatpush1.msra.mxu0 %v1105
  %1175 = vmatprep.subr.mxu0 0.0
  %1176 = vmatpush1.msra.mxu0 %v1106
  %1177 = vmatprep.subr.mxu0 0.0
  %1178 = vmatpush1.msra.mxu0 %v1107
  %1179 = vmatprep.subr.mxu0 0.0
  %1180 = vmatpush1.msra.mxu0 %v1108
  %1181 = vmatprep.subr.mxu0 0.0
  %1182 = vmatpush1.msra.mxu0 %v1109
  %1183 = vmatprep.subr.mxu0 0.0
  %1184 = vmatpush1.msra.mxu0 %v1110
  %1185 = vmatprep.subr.mxu0 0.0
  %1186 = vmatpush1.msra.mxu0 %v1111
  %1187 = vmatprep.subr.mxu0 0.0
  %1188 = vmatpush1.msra.mxu0 %v1112
  %1189 = vmatprep.subr.mxu0 0.0
  %1190 = vmatpush1.msra.mxu0 %v1113
  %1191 = vmatprep.subr.mxu0 0.0
  %1192 = vmatpush1.msra.mxu0 %v1114
  %1193 = vmatprep.subr.mxu0 0.0
  %1194 = vmatpush1.msra.mxu0 %v1115
  %1195 = vmatprep.subr.mxu0 0.0
  %1196 = vmatpush1.msra.mxu0 %v1116
  %1197 = vmatprep.subr.mxu0 0.0
  %1198 = vmatpush1.msra.mxu0 %v1117
  %1199 = vmatprep.subr.mxu0 0.0
  %1200 = vmatpush1.msra.mxu0 %v1118
  %1201 = vmatprep.subr.mxu0 0.0
  %1202 = vmatpush1.msra.mxu0 %v1119
  %1203 = vmatprep.subr.mxu0 0.0
  %1204 = vmatpush1.msra.mxu0 %v1120
  %1205 = vmatprep.subr.mxu0 0.0
  %1206 = vmatpush1.msra.mxu0 %v1121
  %1207 = vmatprep.subr.mxu0 0.0
  %1208 = vmatpush1.msra.mxu0 %v1122
  %1209 = vmatprep.subr.mxu0 0.0
  %1210 = vmatpush1.msra.mxu0 %v1123
  %1211 = vmatprep.subr.mxu0 0.0
  %1212 = vmatpush1.msra.mxu0 %v1124
  %1213 = vmatprep.subr.mxu0 0.0
  %1214 = vmatpush1.msra.mxu0 %v1125
  %1215 = vmatprep.subr.mxu0 0.0
  %1216 = vmatpush1.msra.mxu0 %v1126
  %1217 = vmatprep.subr.mxu0 0.0
  %1218 = vmatpush1.msra.mxu0 %v1127
  %1219 = vmatprep.subr.mxu0 0.0
  %1220 = vmatpush1.msra.mxu0 %v1128
  %1221 = vmatprep.subr.mxu0 0.0
  %1222 = vmatpush1.msra.mxu0 %v1129
  %1223 = vmatprep.subr.mxu0 0.0
  %1224 = vmatpush1.msra.mxu0 %v1130
  %1225 = vmatprep.subr.mxu0 0.0
  %1226 = vmatpush1.msra.mxu0 %v1131
  %1227 = vmatprep.subr.mxu0 0.0
  %1228 = vmatpush1.msra.mxu0 %v1132
  %1229 = vmatprep.mubr.f32.mxu0 %v1082
  %1230 = vmatmul.mubr.f32.gmra.mrb[0].mxu0 %v1081
  %v1231 = vpop.f32.mrb[0].mxu0
  %v1232 = vadd.f32 0.0, %v1231
  %v1233 = vpop.f32.mrb[0].mxu0
  %1234 = vmatprep.mubr.f32.mxu0 %v1086
  %1235 = vmatmul.mubr.f32.gmra.mrb[0].mxu0 %v1085
  %v1236 = vpop.f32.mrb[0].mxu0
  %v1237 = vadd.f32 0.0, %v1236
  %v1238 = vpop.f32.mrb[0].mxu0
  %1239 = vmatprep.mubr.f32.mxu0 %v1090
  %1240 = vmatmul.mubr.f32.gmra.mrb[0].mxu0 %v1089
  %v1241 = vpop.f32.mrb[0].mxu0
  %v1242 = vadd.f32 0.0, %v1241
  %v1243 = vpop.f32.mrb[0].mxu0
  %1244 = vmatprep.mubr.f32.mxu0 %v1094
  %1245 = vmatmul.mubr.f32.gmra.mrb[0].mxu0 %v1093
  %v1246 = vpop.f32.mrb[0].mxu0
  %v1247 = vadd.f32 0.0, %v1246
  %v1248 = vpop.f32.mrb[0].mxu0
  %1249 = vmatprep.mubr.f32.mxu0 %v1098
  %1250 = vmatmul.mubr.f32.gmra.mrb[0].mxu0 %v1097
  %v1251 = vpop.f32.mrb[0].mxu0
  %v1252 = vadd.f32 0.0, %v1251
  %v1253 = vpop.f32.mrb[0].mxu0
  %1254 = vdwg.mxu0
  %1255 = vmatprep.subr.mxu0 0.0
  %1256 = vmatpush1.msra.mxu0 %v1133
  %1257 = vmatprep.subr.mxu0 0.0
  %1258 = vmatpush1.msra.mxu0 %v1134
  %1259 = vmatprep.subr.mxu0 0.0
  %1260 = vmatpush1.msra.mxu0 %v1135
  %1261 = vmatprep.subr.mxu0 0.0
  %1262 = vmatpush1.msra.mxu0 %v1136
  %1263 = vmatprep.subr.mxu0 0.0
  %1264 = vmatpush1.msra.mxu0 %v1137
  %1265 = vmatprep.subr.mxu0 0.0
  %1266 = vmatpush1.msra.mxu0 %v1138
  %1267 = vmatprep.subr.mxu0 0.0
  %1268 = vmatpush1.msra.mxu0 %v1139
  %1269 = vmatprep.subr.mxu0 0.0
  %1270 = vmatpush1.msra.mxu0 %v1140
  %1271 = vmatprep.subr.mxu0 0.0
  %1272 = vmatpush1.msra.mxu0 %v1141
  %1273 = vmatprep.subr.mxu0 0.0
  %1274 = vmatpush1.msra.mxu0 %v1142
  %1275 = vmatprep.subr.mxu0 0.0
  %1276 = vmatpush1.msra.mxu0 %v1143
  %1277 = vmatprep.subr.mxu0 0.0
  %1278 = vmatpush1.msra.mxu0 %v1144
  %1279 = vmatprep.subr.mxu0 0.0
  %1280 = vmatpush1.msra.mxu0 %v1145
  %1281 = vmatprep.subr.mxu0 0.0
  %1282 = vmatpush1.msra.mxu0 %v1146
  %1283 = vmatprep.subr.mxu0 0.0
  %1284 = vmatpush1.msra.mxu0 %v1147
  %1285 = vmatprep.subr.mxu0 0.0
  %1286 = vmatpush1.msra.mxu0 %v1148
  %1287 = vmatprep.subr.mxu0 0.0
  %1288 = vmatpush1.msra.mxu0 %v1149
  %1289 = vmatprep.subr.mxu0 0.0
  %1290 = vmatpush1.msra.mxu0 %v1150
  %1291 = vmatprep.subr.mxu0 0.0
  %1292 = vmatpush1.msra.mxu0 %v1151
  %1293 = vmatprep.subr.mxu0 0.0
  %1294 = vmatpush1.msra.mxu0 %v1152
  %1295 = vmatprep.subr.mxu0 0.0
  %1296 = vmatpush1.msra.mxu0 %v1153
  %1297 = vmatprep.subr.mxu0 0.0
  %1298 = vmatpush1.msra.mxu0 %v1154
  %1299 = vmatprep.subr.mxu0 0.0
  %1300 = vmatpush1.msra.mxu0 %v1155
  %1301 = vmatprep.subr.mxu0 0.0
  %1302 = vmatpush1.msra.mxu0 %v1156
  %1303 = vmatprep.subr.mxu0 0.0
  %1304 = vmatpush1.msra.mxu0 %v1157
  %1305 = vmatprep.subr.mxu0 0.0
  %1306 = vmatpush1.msra.mxu0 %v1158
  %1307 = vmatprep.subr.mxu0 0.0
  %1308 = vmatpush1.msra.mxu0 %v1159
  %1309 = vmatprep.subr.mxu0 0.0
  %1310 = vmatpush1.msra.mxu0 %v1160
  %1311 = vmatprep.subr.mxu0 0.0
  %1312 = vmatpush1.msra.mxu0 %v1161
  %1313 = vmatprep.subr.mxu0 0.0
  %1314 = vmatpush1.msra.mxu0 %v1162
  %1315 = vmatprep.subr.mxu0 0.0
  %1316 = vmatpush1.msra.mxu0 %v1163
  %1317 = vmatprep.subr.mxu0 0.0
  %1318 = vmatpush1.msra.mxu0 %v1164
  %1319 = vmatprep.mubr.f32.mxu0 %v1084
  %1320 = vmatmul.mubr.f32.gmra.mrb[0].mxu0 %v1083
  %v1321 = vpop.f32.mrb[0].mxu0
  %v1322 = vadd.f32 %v1232, %v1321
  %v1323 = vpop.f32.mrb[0].mxu0
  %1324 = vmatprep.mubr.f32.mxu0 %v1088
  %1325 = vmatmul.mubr.f32.gmra.mrb[0].mxu0 %v1087
  %v1326 = vpop.f32.mrb[0].mxu0
  %v1327 = vadd.f32 %v1237, %v1326
  %v1328 = vpop.f32.mrb[0].mxu0
  %1329 = vmatprep.mubr.f32.mxu0 %v1092
  %1330 = vmatmul.mubr.f32.gmra.mrb[0].mxu0 %v1091
  %v1331 = vpop.f32.mrb[0].mxu0
  %v1332 = vadd.f32 %v1242, %v1331
  %v1333 = vpop.f32.mrb[0].mxu0
  %1334 = vmatprep.mubr.f32.mxu0 %v1096
  %1335 = vmatmul.mubr.f32.gmra.mrb[0].mxu0 %v1095
  %v1336 = vpop.f32.mrb[0].mxu0
  %v1337 = vadd.f32 %v1247, %v1336
  %v1338 = vpop.f32.mrb[0].mxu0
  %1339 = vmatprep.mubr.f32.mxu0 %v1100
  %1340 = vmatmul.mubr.f32.gmra.mrb[0].mxu0 %v1099
  %v1341 = vpop.f32.mrb[0].mxu0
  %v1342 = vadd.f32 %v1252, %v1341
  %v1343 = vpop.f32.mrb[0].mxu0
  %1344 = vdwg.mxu0
  %v1345 = vadd.f32 %v1056, %v1322
  %v1346 = vadd.f32 %v1057, %v1327
  %v1347 = vadd.f32 %v1058, %v1332
  %v1348 = vadd.f32 %v1059, %v1337
  %v1349 = vadd.f32 %v1060, %v1342
  %v1350 = vld [vmem:[%s31] sm:$0xff]
  %v1351 = vld [vmem:[%s31 + $0x8] sm:$0xff]
  %v1352 = vld [vmem:[%s31 + $0x10] sm:$0xff]
  %v1353 = vld [vmem:[%s31 + $0x18] sm:$0xff]
  %v1354 = vld [vmem:[%s31 + $0x20] sm:$0x3]
  %v1355 = vld [vmem:[%s33] sm:$0x1]
  %v1356 = vld [vmem:[%s35] sm:$0x1]
  %v1357 = vsel %vm251, %v1345, 0.0
  %1358 = vadd.xlane.f32.xlu0 %v1357
  %v1359 = vpop.xlane.xlu0 %1358
  %v1360 = vsel %vm251, %v1346, 0.0
  %1361 = vadd.xlane.f32.xlu0 %v1360
  %v1362 = vpop.xlane.xlu0 %1361
  %v1363 = vsel %vm251, %v1347, 0.0
  %1364 = vadd.xlane.f32.xlu0 %v1363
  %v1365 = vpop.xlane.xlu0 %1364
  %v1366 = vsel %vm251, %v1348, 0.0
  %1367 = vadd.xlane.f32.xlu0 %v1366
  %v1368 = vpop.xlane.xlu0 %1367
  %vm1369 = vcmask 254976
  %v1370 = vsel %vm1369, %v1349, 0.0
  %1371 = vadd.xlane.f32.xlu0 %v1370
  %v1372 = vpop.xlane.xlu0 %1371
  %v1373 = vmul.f32 %v1359, %v264
  %v1374 = vmul.f32 %v1362, %v264
  %v1375 = vmul.f32 %v1365, %v264
  %v1376 = vmul.f32 %v1368, %v264
  %v1377 = vmul.f32 %v1372, %v264
  %v1378 = vsub.f32 %v1345, %v1373
  %v1379 = vsub.f32 %v1346, %v1374
  %v1380 = vsub.f32 %v1347, %v1375
  %v1381 = vsub.f32 %v1348, %v1376
  %v1382 = vsub.f32 %v1349, %v1377
  %v1383 = vmul.f32 %v1378, %v1378
  %v1384 = vmul.f32 %v1379, %v1379
  %v1385 = vmul.f32 %v1380, %v1380
  %v1386 = vmul.f32 %v1381, %v1381
  %v1387 = vmul.f32 %v1382, %v1382
  %v1388 = vsel %vm251, %v1383, 0.0
  %1389 = vadd.xlane.f32.xlu0 %v1388
  %v1390 = vpop.xlane.xlu0 %1389
  %v1391 = vsel %vm251, %v1384, 0.0
  %1392 = vadd.xlane.f32.xlu0 %v1391
  %v1393 = vpop.xlane.xlu0 %1392
  %v1394 = vsel %vm251, %v1385, 0.0
  %1395 = vadd.xlane.f32.xlu0 %v1394
  %v1396 = vpop.xlane.xlu0 %1395
  %v1397 = vsel %vm251, %v1386, 0.0
  %1398 = vadd.xlane.f32.xlu0 %v1397
  %v1399 = vpop.xlane.xlu0 %1398
  %v1400 = vsel %vm1369, %v1387, 0.0
  %1401 = vadd.xlane.f32.xlu0 %v1400
  %v1402 = vpop.xlane.xlu0 %1401
  %v1403 = vmul.f32 %v1390, %v264
  %v1404 = vmul.f32 %v1393, %v264
  %v1405 = vmul.f32 %v1396, %v264
  %v1406 = vmul.f32 %v1399, %v264
  %v1407 = vmul.f32 %v1402, %v264
  %v1408 = vadd.f32 %v1403, 1e-06
  %v1409 = vadd.f32 %v1404, 1e-06
  %v1410 = vadd.f32 %v1405, 1e-06
  %v1411 = vadd.f32 %v1406, 1e-06
  %v1412 = vadd.f32 %v1407, 1e-06
  %v1413 = vrsqrt.pop %v1408
  %v1414 = vrsqrt.pop %v1409
  %v1415 = vrsqrt.pop %v1410
  %v1416 = vrsqrt.pop %v1411
  %v1417 = vrsqrt.pop %v1412
  %v1418 = vmul.f32 %v1378, %v1413
  %v1419 = vmul.f32 %v1379, %v1414
  %v1420 = vmul.f32 %v1380, %v1415
  %v1421 = vmul.f32 %v1381, %v1416
  %v1422 = vmul.f32 %v1382, %v1417
  %v1424 = vlaneseq
  %v1425 = vshrl.u32 %v1424, 7
  %v1426 = vsub.s32 0, %v1425
  %v1427 = vrot.slane %v1355, %v1426
  %v1429 = vmul.f32 %v1418, %v1427
  %v1430 = vmul.f32 %v1419, %v1427
  %v1431 = vmul.f32 %v1420, %v1427
  %v1432 = vmul.f32 %v1421, %v1427
  %v1433 = vmul.f32 %v1422, %v1427
  %v1435 = vlaneseq
  %v1436 = vshrl.u32 %v1435, 7
  %v1437 = vsub.s32 0, %v1436
  %v1438 = vrot.slane %v1356, %v1437
  %v1440 = vadd.f32 %v1429, %v1438
  %v1441 = vadd.f32 %v1430, %v1438
  %v1442 = vadd.f32 %v1431, %v1438
  %v1443 = vadd.f32 %v1432, %v1438
  %v1444 = vadd.f32 %v1433, %v1438
  %v1445 = vld [vmem:[%s37] sm:$0xff]
  %v1446 = vld [vmem:[%s37 + $0x8] sm:$0xff]
  %v1447 = vld [vmem:[%s37 + $0x10] sm:$0xff]
  %v1448 = vld [vmem:[%s37 + $0x18] sm:$0xff]
  %v1449 = vld [vmem:[%s39] sm:$0x1]
  %v1451 = vlaneseq
  %v1452 = vshrl.u32 %v1451, 7
  %v1453 = vsub.s32 0, %v1452
  %v1454 = vrot.slane %v1449, %v1453
  %v1457 = vsel %vm251, %v1440, 0
  %v1460 = vsel %vm251, %v1441, 0
  %v1463 = vsel %vm251, %v1442, 0
  %v1466 = vsel %vm251, %v1443, 0
  %v1469 = vsel %vm251, %v1444, 0
  %1471 = vmatprep.subr.mxu0 0.0
  %1472 = vmatpush1.msra.mxu0 %v1445
  %1473 = vmatprep.subr.mxu0 0.0
  %1474 = vmatpush1.msra.mxu0 %v1446
  %1475 = vmatprep.subr.mxu0 0.0
  %1476 = vmatpush1.msra.mxu0 %v1447
  %1477 = vmatprep.subr.mxu0 0.0
  %1478 = vmatpush1.msra.mxu0 %v1448
  %1479 = vmatprep.subr.mxu0 0.0
  %1480 = vmatpush1.msra.mxu0 0.0
  %1481 = vmatprep.subr.mxu0 0.0
  %1482 = vmatpush1.msra.mxu0 0.0
  %1483 = vmatprep.subr.mxu0 0.0
  %1484 = vmatpush1.msra.mxu0 0.0
  %1485 = vmatprep.subr.mxu0 0.0
  %1486 = vmatpush1.msra.mxu0 0.0
  %1487 = vmatprep.subr.mxu0 0.0
  %1488 = vmatpush1.msra.mxu0 0.0
  %1489 = vmatprep.subr.mxu0 0.0
  %1490 = vmatpush1.msra.mxu0 0.0
  %1491 = vmatprep.subr.mxu0 0.0
  %1492 = vmatpush1.msra.mxu0 0.0
  %1493 = vmatprep.subr.mxu0 0.0
  %1494 = vmatpush1.msra.mxu0 0.0
  %1495 = vmatprep.subr.mxu0 0.0
  %1496 = vmatpush1.msra.mxu0 0.0
  %1497 = vmatprep.subr.mxu0 0.0
  %1498 = vmatpush1.msra.mxu0 0.0
  %1499 = vmatprep.subr.mxu0 0.0
  %1500 = vmatpush1.msra.mxu0 0.0
  %1501 = vmatprep.subr.mxu0 0.0
  %1502 = vmatpush1.msra.mxu0 0.0
  %1503 = vmatprep.subr.mxu0 0.0
  %1504 = vmatpush1.msra.mxu0 0.0
  %1505 = vmatprep.subr.mxu0 0.0
  %1506 = vmatpush1.msra.mxu0 0.0
  %1507 = vmatprep.subr.mxu0 0.0
  %1508 = vmatpush1.msra.mxu0 0.0
  %1509 = vmatprep.subr.mxu0 0.0
  %1510 = vmatpush1.msra.mxu0 0.0
  %1511 = vmatprep.subr.mxu0 0.0
  %1512 = vmatpush1.msra.mxu0 0.0
  %1513 = vmatprep.subr.mxu0 0.0
  %1514 = vmatpush1.msra.mxu0 0.0
  %1515 = vmatprep.subr.mxu0 0.0
  %1516 = vmatpush1.msra.mxu0 0.0
  %1517 = vmatprep.subr.mxu0 0.0
  %1518 = vmatpush1.msra.mxu0 0.0
  %1519 = vmatprep.subr.mxu0 0.0
  %1520 = vmatpush1.msra.mxu0 0.0
  %1521 = vmatprep.subr.mxu0 0.0
  %1522 = vmatpush1.msra.mxu0 0.0
  %1523 = vmatprep.subr.mxu0 0.0
  %1524 = vmatpush1.msra.mxu0 0.0
  %1525 = vmatprep.subr.mxu0 0.0
  %1526 = vmatpush1.msra.mxu0 0.0
  %1527 = vmatprep.subr.mxu0 0.0
  %1528 = vmatpush1.msra.mxu0 0.0
  %1529 = vmatprep.subr.mxu0 0.0
  %1530 = vmatpush1.msra.mxu0 0.0
  %1531 = vmatprep.subr.mxu0 0.0
  %1532 = vmatpush1.msra.mxu0 0.0
  %1533 = vmatprep.subr.mxu0 0.0
  %1534 = vmatpush1.msra.mxu0 0.0
  %1535 = vmatprep.mubr.f32.mxu0 0.0
  %1536 = vmatmul.mubr.f32.gmra.mrb[0].mxu0 %v1457
  %v1537 = vpop.f32.mrb[0].mxu0
  %v1538 = vadd.f32 %v1454, %v1537
  %v1539 = vpop.f32.mrb[0].mxu0
  %1540 = vmatprep.mubr.f32.mxu0 0.0
  %1541 = vmatmul.mubr.f32.gmra.mrb[0].mxu0 %v1460
  %v1542 = vpop.f32.mrb[0].mxu0
  %v1543 = vadd.f32 %v1454, %v1542
  %v1544 = vpop.f32.mrb[0].mxu0
  %1545 = vmatprep.mubr.f32.mxu0 0.0
  %1546 = vmatmul.mubr.f32.gmra.mrb[0].mxu0 %v1463
  %v1547 = vpop.f32.mrb[0].mxu0
  %v1548 = vadd.f32 %v1454, %v1547
  %v1549 = vpop.f32.mrb[0].mxu0
  %1550 = vmatprep.mubr.f32.mxu0 0.0
  %1551 = vmatmul.mubr.f32.gmra.mrb[0].mxu0 %v1466
  %v1552 = vpop.f32.mrb[0].mxu0
  %v1553 = vadd.f32 %v1454, %v1552
  %v1554 = vpop.f32.mrb[0].mxu0
  %1555 = vmatprep.mubr.f32.mxu0 0.0
  %1556 = vmatmul.mubr.f32.gmra.mrb[0].mxu0 %v1469
  %v1557 = vpop.f32.mrb[0].mxu0
  %v1558 = vadd.f32 %v1454, %v1557
  %v1559 = vpop.f32.mrb[0].mxu0
  %1560 = vdwg.mxu0
  %v1561 = vld [vmem:[%s43] sm:$0x1]
  %1567 = vrot.lane.b32.xlu0 %v1538, 96
  %v1568 = vpop.permute.xlu0 %1567
  %1569 = vrot.lane.b32.xlu0 %v1543, 96
  %v1570 = vpop.permute.xlu0 %1569
  %1571 = vrot.lane.b32.xlu0 %v1548, 96
  %v1572 = vpop.permute.xlu0 %1571
  %1573 = vrot.lane.b32.xlu0 %v1553, 96
  %v1574 = vpop.permute.xlu0 %1573
  %1575 = vrot.lane.b32.xlu0 %v1558, 96
  %v1576 = vpop.permute.xlu0 %1575
  %v1577 = vsel %vm151, %v1538, 0
  %v1579 = vsel %vm151, %v1543, 0
  %v1581 = vsel %vm151, %v1548, 0
  %v1583 = vsel %vm151, %v1553, 0
  %v1585 = vsel %vm151, %v1558, 0
  %v1587 = vsel %vm151, %v1568, 0
  %v1589 = vsel %vm151, %v1570, 0
  %v1591 = vsel %vm151, %v1572, 0
  %v1593 = vsel %vm151, %v1574, 0
  %v1595 = vsel %vm151, %v1576, 0
  %1597 = vmatprep.subr.mxu0 0.0
  %1598 = vmatpush1.xpose.msra.mxu0 %v1587
  %1599 = vmatprep.subr.mxu0 0.0
  %1600 = vmatpush1.xpose.msra.mxu0 %v1589
  %1601 = vmatprep.subr.mxu0 0.0
  %1602 = vmatpush1.xpose.msra.mxu0 %v1591
  %1603 = vmatprep.subr.mxu0 0.0
  %1604 = vmatpush1.xpose.msra.mxu0 %v1593
  %1605 = vmatprep.subr.mxu0 0.0
  %1606 = vmatpush1.xpose.msra.mxu0 %v1595
  %1607 = vmatprep.subr.mxu0 0.0
  %1608 = vmatpush1.xpose.msra.mxu0 0.0
  %1609 = vmatprep.subr.mxu0 0.0
  %1610 = vmatpush1.xpose.msra.mxu0 0.0
  %1611 = vmatprep.subr.mxu0 0.0
  %1612 = vmatpush1.xpose.msra.mxu0 0.0
  %1613 = vmatprep.subr.mxu0 0.0
  %1614 = vmatpush1.xpose.msra.mxu0 0.0
  %1615 = vmatprep.subr.mxu0 0.0
  %1616 = vmatpush1.xpose.msra.mxu0 0.0
  %1617 = vmatprep.subr.mxu0 0.0
  %1618 = vmatpush1.xpose.msra.mxu0 0.0
  %1619 = vmatprep.subr.mxu0 0.0
  %1620 = vmatpush1.xpose.msra.mxu0 0.0
  %1621 = vmatprep.subr.mxu0 0.0
  %1622 = vmatpush1.xpose.msra.mxu0 0.0
  %1623 = vmatprep.subr.mxu0 0.0
  %1624 = vmatpush1.xpose.msra.mxu0 0.0
  %1625 = vmatprep.subr.mxu0 0.0
  %1626 = vmatpush1.xpose.msra.mxu0 0.0
  %1627 = vmatprep.subr.mxu0 0.0
  %1628 = vmatpush1.xpose.msra.mxu0 0.0
  %1629 = vmatprep.subr.mxu0 0.0
  %1630 = vmatpush1.xpose.msra.mxu0 0.0
  %1631 = vmatprep.subr.mxu0 0.0
  %1632 = vmatpush1.xpose.msra.mxu0 0.0
  %1633 = vmatprep.subr.mxu0 0.0
  %1634 = vmatpush1.xpose.msra.mxu0 0.0
  %1635 = vmatprep.subr.mxu0 0.0
  %1636 = vmatpush1.xpose.msra.mxu0 0.0
  %1637 = vmatprep.subr.mxu0 0.0
  %1638 = vmatpush1.xpose.msra.mxu0 0.0
  %1639 = vmatprep.subr.mxu0 0.0
  %1640 = vmatpush1.xpose.msra.mxu0 0.0
  %1641 = vmatprep.subr.mxu0 0.0
  %1642 = vmatpush1.xpose.msra.mxu0 0.0
  %1643 = vmatprep.subr.mxu0 0.0
  %1644 = vmatpush1.xpose.msra.mxu0 0.0
  %1645 = vmatprep.subr.mxu0 0.0
  %1646 = vmatpush1.xpose.msra.mxu0 0.0
  %1647 = vmatprep.subr.mxu0 0.0
  %1648 = vmatpush1.xpose.msra.mxu0 0.0
  %1649 = vmatprep.subr.mxu0 0.0
  %1650 = vmatpush1.xpose.msra.mxu0 0.0
  %1651 = vmatprep.subr.mxu0 0.0
  %1652 = vmatpush1.xpose.msra.mxu0 0.0
  %1653 = vmatprep.subr.mxu0 0.0
  %1654 = vmatpush1.xpose.msra.mxu0 0.0
  %1655 = vmatprep.subr.mxu0 0.0
  %1656 = vmatpush1.xpose.msra.mxu0 0.0
  %1657 = vmatprep.subr.mxu0 0.0
  %1658 = vmatpush1.xpose.msra.mxu0 0.0
  %1659 = vmatprep.subr.mxu0 0.0
  %1660 = vmatpush1.xpose.msra.mxu0 0.0
  %1661 = vmatprep.mubr.f32.mxu0 0.0
  %1662 = vmatmul.mubr.f32.gmra.mrb[0].mxu0 %v1577
  %v1663 = vpop.f32.mrb[0].mxu0
  %v1664 = vadd.f32 0.0, %v1663
  %v1665 = vpop.f32.mrb[0].mxu0
  %1666 = vmatprep.mubr.f32.mxu0 0.0
  %1667 = vmatmul.mubr.f32.gmra.mrb[0].mxu0 %v1579
  %v1668 = vpop.f32.mrb[0].mxu0
  %v1669 = vadd.f32 0.0, %v1668
  %v1670 = vpop.f32.mrb[0].mxu0
  %1671 = vmatprep.mubr.f32.mxu0 0.0
  %1672 = vmatmul.mubr.f32.gmra.mrb[0].mxu0 %v1581
  %v1673 = vpop.f32.mrb[0].mxu0
  %v1674 = vadd.f32 0.0, %v1673
  %v1675 = vpop.f32.mrb[0].mxu0
  %1676 = vmatprep.mubr.f32.mxu0 0.0
  %1677 = vmatmul.mubr.f32.gmra.mrb[0].mxu0 %v1583
  %v1678 = vpop.f32.mrb[0].mxu0
  %v1679 = vadd.f32 0.0, %v1678
  %v1680 = vpop.f32.mrb[0].mxu0
  %1681 = vmatprep.mubr.f32.mxu0 0.0
  %1682 = vmatmul.mubr.f32.gmra.mrb[0].mxu0 %v1585
  %v1683 = vpop.f32.mrb[0].mxu0
  %v1684 = vadd.f32 0.0, %v1683
  %v1685 = vpop.f32.mrb[0].mxu0
  %1686 = vdwg.mxu0
  %v1687 = vmul.f32 %v1664, 0.25
  %v1688 = vmul.f32 %v1669, 0.25
  %v1689 = vmul.f32 %v1674, 0.25
  %v1690 = vmul.f32 %v1679, 0.25
  %v1691 = vmul.f32 %v1684, 0.25
  %v1692 = vadd.f32 %v1687, %v1350
  %v1693 = vadd.f32 %v1688, %v1351
  %v1694 = vadd.f32 %v1689, %v1352
  %v1695 = vadd.f32 %v1690, %v1353
  %v1696 = vadd.f32 %v1691, %v1354
  %vm1697 = vcmask 277504
  %v1698 = vsel %vm1697, %v1692, -inf
  %1699 = vmax.xlane.f32.xlu0 %v1698
  %v1700 = vpop.xlane.xlu0 %1699
  %v1701 = vsel %vm1697, %v1693, -inf
  %1702 = vmax.xlane.f32.xlu0 %v1701
  %v1703 = vpop.xlane.xlu0 %1702
  %v1704 = vsel %vm1697, %v1694, -inf
  %1705 = vmax.xlane.f32.xlu0 %v1704
  %v1706 = vpop.xlane.xlu0 %1705
  %v1707 = vsel %vm1697, %v1695, -inf
  %1708 = vmax.xlane.f32.xlu0 %v1707
  %v1709 = vpop.xlane.xlu0 %1708
  %vm1710 = vcmask 271360
  %v1711 = vsel %vm1710, %v1696, -inf
  %1712 = vmax.xlane.f32.xlu0 %v1711
  %v1713 = vpop.xlane.xlu0 %1712
  %v1714 = vsub.f32 %v1692, %v1700
  %v1715 = vsub.f32 %v1693, %v1703
  %v1716 = vsub.f32 %v1694, %v1706
  %v1717 = vsub.f32 %v1695, %v1709
  %v1718 = vsub.f32 %v1696, %v1713
  %v1719 = vmul.f32 %v1714, 1.442695
  %v1720 = vpow.pop %v1719
  %v1721 = vmul.f32 %v1715, 1.442695
  %v1722 = vpow.pop %v1721
  %v1723 = vmul.f32 %v1716, 1.442695
  %v1724 = vpow.pop %v1723
  %v1725 = vmul.f32 %v1717, 1.442695
  %v1726 = vpow.pop %v1725
  %v1727 = vmul.f32 %v1718, 1.442695
  %v1728 = vpow.pop %v1727
  %v1729 = vsel %vm1697, %v1720, 0.0
  %1730 = vadd.xlane.f32.xlu0 %v1729
  %v1731 = vpop.xlane.xlu0 %1730
  %v1732 = vsel %vm1697, %v1722, 0.0
  %1733 = vadd.xlane.f32.xlu0 %v1732
  %v1734 = vpop.xlane.xlu0 %1733
  %v1735 = vsel %vm1697, %v1724, 0.0
  %1736 = vadd.xlane.f32.xlu0 %v1735
  %v1737 = vpop.xlane.xlu0 %1736
  %v1738 = vsel %vm1697, %v1726, 0.0
  %1739 = vadd.xlane.f32.xlu0 %v1738
  %v1740 = vpop.xlane.xlu0 %1739
  %v1741 = vsel %vm1710, %v1728, 0.0
  %1742 = vadd.xlane.f32.xlu0 %v1741
  %v1743 = vpop.xlane.xlu0 %1742
  %v1744 = vrcp.pop %v1731
  %v1745 = vrcp.pop %v1734
  %v1746 = vrcp.pop %v1737
  %v1747 = vrcp.pop %v1740
  %v1748 = vrcp.pop %v1743
  %v1749 = vmul.f32 %v1720, %v1744
  %v1750 = vmul.f32 %v1722, %v1745
  %v1751 = vmul.f32 %v1724, %v1746
  %v1752 = vmul.f32 %v1726, %v1747
  %v1753 = vmul.f32 %v1728, %v1748
  %1754 = vrot.lane.b32.xlu0 %v1538, 64
  %v1755 = vpop.permute.xlu0 %1754
  %1756 = vrot.lane.b32.xlu0 %v1543, 64
  %v1757 = vpop.permute.xlu0 %1756
  %1758 = vrot.lane.b32.xlu0 %v1548, 64
  %v1759 = vpop.permute.xlu0 %1758
  %1760 = vrot.lane.b32.xlu0 %v1553, 64
  %v1761 = vpop.permute.xlu0 %1760
  %1762 = vrot.lane.b32.xlu0 %v1558, 64
  %v1763 = vpop.permute.xlu0 %1762
  %v1769 = vsel %vm1697, %v1749, 0
  %v1772 = vsel %vm1697, %v1750, 0
  %v1775 = vsel %vm1697, %v1751, 0
  %v1778 = vsel %vm1697, %v1752, 0
  %v1781 = vsel %vm1697, %v1753, 0
  %v1783 = vsel %vm853, %v1763, 0
  %1785 = vmatprep.subr.mxu0 0.0
  %1786 = vmatpush1.msra.mxu0 %v1755
  %1787 = vmatprep.subr.mxu0 0.0
  %1788 = vmatpush1.msra.mxu0 %v1757
  %1789 = vmatprep.subr.mxu0 0.0
  %1790 = vmatpush1.msra.mxu0 %v1759
  %1791 = vmatprep.subr.mxu0 0.0
  %1792 = vmatpush1.msra.mxu0 %v1761
  %1793 = vmatprep.subr.mxu0 0.0
  %1794 = vmatpush1.msra.mxu0 %v1783
  %1795 = vmatprep.subr.mxu0 0.0
  %1796 = vmatpush1.msra.mxu0 0.0
  %1797 = vmatprep.subr.mxu0 0.0
  %1798 = vmatpush1.msra.mxu0 0.0
  %1799 = vmatprep.subr.mxu0 0.0
  %1800 = vmatpush1.msra.mxu0 0.0
  %1801 = vmatprep.subr.mxu0 0.0
  %1802 = vmatpush1.msra.mxu0 0.0
  %1803 = vmatprep.subr.mxu0 0.0
  %1804 = vmatpush1.msra.mxu0 0.0
  %1805 = vmatprep.subr.mxu0 0.0
  %1806 = vmatpush1.msra.mxu0 0.0
  %1807 = vmatprep.subr.mxu0 0.0
  %1808 = vmatpush1.msra.mxu0 0.0
  %1809 = vmatprep.subr.mxu0 0.0
  %1810 = vmatpush1.msra.mxu0 0.0
  %1811 = vmatprep.subr.mxu0 0.0
  %1812 = vmatpush1.msra.mxu0 0.0
  %1813 = vmatprep.subr.mxu0 0.0
  %1814 = vmatpush1.msra.mxu0 0.0
  %1815 = vmatprep.subr.mxu0 0.0
  %1816 = vmatpush1.msra.mxu0 0.0
  %1817 = vmatprep.subr.mxu0 0.0
  %1818 = vmatpush1.msra.mxu0 0.0
  %1819 = vmatprep.subr.mxu0 0.0
  %1820 = vmatpush1.msra.mxu0 0.0
  %1821 = vmatprep.subr.mxu0 0.0
  %1822 = vmatpush1.msra.mxu0 0.0
  %1823 = vmatprep.subr.mxu0 0.0
  %1824 = vmatpush1.msra.mxu0 0.0
  %1825 = vmatprep.subr.mxu0 0.0
  %1826 = vmatpush1.msra.mxu0 0.0
  %1827 = vmatprep.subr.mxu0 0.0
  %1828 = vmatpush1.msra.mxu0 0.0
  %1829 = vmatprep.subr.mxu0 0.0
  %1830 = vmatpush1.msra.mxu0 0.0
  %1831 = vmatprep.subr.mxu0 0.0
  %1832 = vmatpush1.msra.mxu0 0.0
  %1833 = vmatprep.subr.mxu0 0.0
  %1834 = vmatpush1.msra.mxu0 0.0
  %1835 = vmatprep.subr.mxu0 0.0
  %1836 = vmatpush1.msra.mxu0 0.0
  %1837 = vmatprep.subr.mxu0 0.0
  %1838 = vmatpush1.msra.mxu0 0.0
  %1839 = vmatprep.subr.mxu0 0.0
  %1840 = vmatpush1.msra.mxu0 0.0
  %1841 = vmatprep.subr.mxu0 0.0
  %1842 = vmatpush1.msra.mxu0 0.0
  %1843 = vmatprep.subr.mxu0 0.0
  %1844 = vmatpush1.msra.mxu0 0.0
  %1845 = vmatprep.subr.mxu0 0.0
  %1846 = vmatpush1.msra.mxu0 0.0
  %1847 = vmatprep.subr.mxu0 0.0
  %1848 = vmatpush1.msra.mxu0 0.0
  %1849 = vmatprep.mubr.f32.mxu0 0.0
  %1850 = vmatmul.mubr.f32.gmra.mrb[0].mxu0 %v1769
  %v1851 = vpop.f32.mrb[0].mxu0
  %v1852 = vadd.f32 0.0, %v1851
  %v1853 = vpop.f32.mrb[0].mxu0
  %1854 = vmatprep.mubr.f32.mxu0 0.0
  %1855 = vmatmul.mubr.f32.gmra.mrb[0].mxu0 %v1772
  %v1856 = vpop.f32.mrb[0].mxu0
  %v1857 = vadd.f32 0.0, %v1856
  %v1858 = vpop.f32.mrb[0].mxu0
  %1859 = vmatprep.mubr.f32.mxu0 0.0
  %1860 = vmatmul.mubr.f32.gmra.mrb[0].mxu0 %v1775
  %v1861 = vpop.f32.mrb[0].mxu0
  %v1862 = vadd.f32 0.0, %v1861
  %v1863 = vpop.f32.mrb[0].mxu0
  %1864 = vmatprep.mubr.f32.mxu0 0.0
  %1865 = vmatmul.mubr.f32.gmra.mrb[0].mxu0 %v1778
  %v1866 = vpop.f32.mrb[0].mxu0
  %v1867 = vadd.f32 0.0, %v1866
  %v1868 = vpop.f32.mrb[0].mxu0
  %1869 = vmatprep.mubr.f32.mxu0 0.0
  %1870 = vmatmul.mubr.f32.gmra.mrb[0].mxu0 %v1781
  %v1871 = vpop.f32.mrb[0].mxu0
  %v1872 = vadd.f32 0.0, %v1871
  %v1873 = vpop.f32.mrb[0].mxu0
  %1874 = vdwg.mxu0
  %v1875 = vld [vmem:[%s41] sm:$0xff]
  %v1876 = vld [vmem:[%s41 + $0x8] sm:$0xff]
  %v1878 = vsel %vm151, %v1852, 0
  %v1881 = vsel %vm151, %v1857, 0
  %v1884 = vsel %vm151, %v1862, 0
  %v1887 = vsel %vm151, %v1867, 0
  %v1890 = vsel %vm151, %v1872, 0
  %1892 = vmatprep.subr.mxu0 0.0
  %1893 = vmatpush1.msra.mxu0 %v1875
  %1894 = vmatprep.subr.mxu0 0.0
  %1895 = vmatpush1.msra.mxu0 %v1876
  %1896 = vmatprep.subr.mxu0 0.0
  %1897 = vmatpush1.msra.mxu0 0.0
  %1898 = vmatprep.subr.mxu0 0.0
  %1899 = vmatpush1.msra.mxu0 0.0
  %1900 = vmatprep.subr.mxu0 0.0
  %1901 = vmatpush1.msra.mxu0 0.0
  %1902 = vmatprep.subr.mxu0 0.0
  %1903 = vmatpush1.msra.mxu0 0.0
  %1904 = vmatprep.subr.mxu0 0.0
  %1905 = vmatpush1.msra.mxu0 0.0
  %1906 = vmatprep.subr.mxu0 0.0
  %1907 = vmatpush1.msra.mxu0 0.0
  %1908 = vmatprep.subr.mxu0 0.0
  %1909 = vmatpush1.msra.mxu0 0.0
  %1910 = vmatprep.subr.mxu0 0.0
  %1911 = vmatpush1.msra.mxu0 0.0
  %1912 = vmatprep.subr.mxu0 0.0
  %1913 = vmatpush1.msra.mxu0 0.0
  %1914 = vmatprep.subr.mxu0 0.0
  %1915 = vmatpush1.msra.mxu0 0.0
  %1916 = vmatprep.subr.mxu0 0.0
  %1917 = vmatpush1.msra.mxu0 0.0
  %1918 = vmatprep.subr.mxu0 0.0
  %1919 = vmatpush1.msra.mxu0 0.0
  %1920 = vmatprep.subr.mxu0 0.0
  %1921 = vmatpush1.msra.mxu0 0.0
  %1922 = vmatprep.subr.mxu0 0.0
  %1923 = vmatpush1.msra.mxu0 0.0
  %1924 = vmatprep.subr.mxu0 0.0
  %1925 = vmatpush1.msra.mxu0 0.0
  %1926 = vmatprep.subr.mxu0 0.0
  %1927 = vmatpush1.msra.mxu0 0.0
  %1928 = vmatprep.subr.mxu0 0.0
  %1929 = vmatpush1.msra.mxu0 0.0
  %1930 = vmatprep.subr.mxu0 0.0
  %1931 = vmatpush1.msra.mxu0 0.0
  %1932 = vmatprep.subr.mxu0 0.0
  %1933 = vmatpush1.msra.mxu0 0.0
  %1934 = vmatprep.subr.mxu0 0.0
  %1935 = vmatpush1.msra.mxu0 0.0
  %1936 = vmatprep.subr.mxu0 0.0
  %1937 = vmatpush1.msra.mxu0 0.0
  %1938 = vmatprep.subr.mxu0 0.0
  %1939 = vmatpush1.msra.mxu0 0.0
  %1940 = vmatprep.subr.mxu0 0.0
  %1941 = vmatpush1.msra.mxu0 0.0
  %1942 = vmatprep.subr.mxu0 0.0
  %1943 = vmatpush1.msra.mxu0 0.0
  %1944 = vmatprep.subr.mxu0 0.0
  %1945 = vmatpush1.msra.mxu0 0.0
  %1946 = vmatprep.subr.mxu0 0.0
  %1947 = vmatpush1.msra.mxu0 0.0
  %1948 = vmatprep.subr.mxu0 0.0
  %1949 = vmatpush1.msra.mxu0 0.0
  %1950 = vmatprep.subr.mxu0 0.0
  %1951 = vmatpush1.msra.mxu0 0.0
  %1952 = vmatprep.subr.mxu0 0.0
  %1953 = vmatpush1.msra.mxu0 0.0
  %1954 = vmatprep.subr.mxu0 0.0
  %1955 = vmatpush1.msra.mxu0 0.0
  %1956 = vmatprep.mubr.f32.mxu0 0.0
  %1957 = vmatmul.mubr.f32.gmra.mrb[0].mxu0 %v1878
  %v1958 = vpop.f32.mrb[0].mxu0
  %v1959 = vadd.f32 0.0, %v1958
  %v1960 = vpop.f32.mrb[0].mxu0
  %1961 = vmatprep.mubr.f32.mxu0 0.0
  %1962 = vmatmul.mubr.f32.gmra.mrb[0].mxu0 %v1881
  %v1963 = vpop.f32.mrb[0].mxu0
  %v1964 = vadd.f32 0.0, %v1963
  %v1965 = vpop.f32.mrb[0].mxu0
  %1966 = vmatprep.mubr.f32.mxu0 0.0
  %1967 = vmatmul.mubr.f32.gmra.mrb[0].mxu0 %v1884
  %v1968 = vpop.f32.mrb[0].mxu0
  %v1969 = vadd.f32 0.0, %v1968
  %v1970 = vpop.f32.mrb[0].mxu0
  %1971 = vmatprep.mubr.f32.mxu0 0.0
  %1972 = vmatmul.mubr.f32.gmra.mrb[0].mxu0 %v1887
  %v1973 = vpop.f32.mrb[0].mxu0
  %v1974 = vadd.f32 0.0, %v1973
  %v1975 = vpop.f32.mrb[0].mxu0
  %1976 = vmatprep.mubr.f32.mxu0 0.0
  %1977 = vmatmul.mubr.f32.gmra.mrb[0].mxu0 %v1890
  %v1978 = vpop.f32.mrb[0].mxu0
  %v1979 = vadd.f32 0.0, %v1978
  %v1980 = vpop.f32.mrb[0].mxu0
  %1981 = vdwg.mxu0
  %v1983 = vlaneseq
  %v1984 = vshrl.u32 %v1983, 7
  %v1985 = vsub.s32 0, %v1984
  %v1986 = vrot.slane %v1561, %v1985
  %v1988 = vadd.f32 %v1986, %v1959
  %v1989 = vadd.f32 %v1986, %v1964
  %v1990 = vadd.f32 %v1986, %v1969
  %v1991 = vadd.f32 %v1986, %v1974
  %v1992 = vadd.f32 %v1986, %v1979
  %1993 = vrot.lane.b32.xlu0 %v1538, 112
  %v1994 = vpop.permute.xlu0 %1993
  %1995 = vrot.lane.b32.xlu0 %v1543, 112
  %v1996 = vpop.permute.xlu0 %1995
  %1997 = vrot.lane.b32.xlu0 %v1548, 112
  %v1998 = vpop.permute.xlu0 %1997
  %1999 = vrot.lane.b32.xlu0 %v1553, 112
  %v2000 = vpop.permute.xlu0 %1999
  %2001 = vrot.lane.b32.xlu0 %v1558, 112
  %v2002 = vpop.permute.xlu0 %2001
  %2003 = vrot.lane.b32.xlu0 %v1538, 80
  %v2004 = vpop.permute.xlu0 %2003
  %2005 = vrot.lane.b32.xlu0 %v1543, 80
  %v2006 = vpop.permute.xlu0 %2005
  %2007 = vrot.lane.b32.xlu0 %v1548, 80
  %v2008 = vpop.permute.xlu0 %2007
  %2009 = vrot.lane.b32.xlu0 %v1553, 80
  %v2010 = vpop.permute.xlu0 %2009
  %2011 = vrot.lane.b32.xlu0 %v1558, 80
  %v2012 = vpop.permute.xlu0 %2011
  %v2013 = vsel %vm151, %v1994, 0
  %v2015 = vsel %vm151, %v1996, 0
  %v2017 = vsel %vm151, %v1998, 0
  %v2019 = vsel %vm151, %v2000, 0
  %v2021 = vsel %vm151, %v2002, 0
  %v2023 = vsel %vm151, %v2004, 0
  %v2025 = vsel %vm151, %v2006, 0
  %v2027 = vsel %vm151, %v2008, 0
  %v2029 = vsel %vm151, %v2010, 0
  %v2031 = vsel %vm151, %v2012, 0
  %2033 = vmatprep.subr.mxu0 0.0
  %2034 = vmatpush1.xpose.msra.mxu0 %v2023
  %2035 = vmatprep.subr.mxu0 0.0
  %2036 = vmatpush1.xpose.msra.mxu0 %v2025
  %2037 = vmatprep.subr.mxu0 0.0
  %2038 = vmatpush1.xpose.msra.mxu0 %v2027
  %2039 = vmatprep.subr.mxu0 0.0
  %2040 = vmatpush1.xpose.msra.mxu0 %v2029
  %2041 = vmatprep.subr.mxu0 0.0
  %2042 = vmatpush1.xpose.msra.mxu0 %v2031
  %2043 = vmatprep.subr.mxu0 0.0
  %2044 = vmatpush1.xpose.msra.mxu0 0.0
  %2045 = vmatprep.subr.mxu0 0.0
  %2046 = vmatpush1.xpose.msra.mxu0 0.0
  %2047 = vmatprep.subr.mxu0 0.0
  %2048 = vmatpush1.xpose.msra.mxu0 0.0
  %2049 = vmatprep.subr.mxu0 0.0
  %2050 = vmatpush1.xpose.msra.mxu0 0.0
  %2051 = vmatprep.subr.mxu0 0.0
  %2052 = vmatpush1.xpose.msra.mxu0 0.0
  %2053 = vmatprep.subr.mxu0 0.0
  %2054 = vmatpush1.xpose.msra.mxu0 0.0
  %2055 = vmatprep.subr.mxu0 0.0
  %2056 = vmatpush1.xpose.msra.mxu0 0.0
  %2057 = vmatprep.subr.mxu0 0.0
  %2058 = vmatpush1.xpose.msra.mxu0 0.0
  %2059 = vmatprep.subr.mxu0 0.0
  %2060 = vmatpush1.xpose.msra.mxu0 0.0
  %2061 = vmatprep.subr.mxu0 0.0
  %2062 = vmatpush1.xpose.msra.mxu0 0.0
  %2063 = vmatprep.subr.mxu0 0.0
  %2064 = vmatpush1.xpose.msra.mxu0 0.0
  %2065 = vmatprep.subr.mxu0 0.0
  %2066 = vmatpush1.xpose.msra.mxu0 0.0
  %2067 = vmatprep.subr.mxu0 0.0
  %2068 = vmatpush1.xpose.msra.mxu0 0.0
  %2069 = vmatprep.subr.mxu0 0.0
  %2070 = vmatpush1.xpose.msra.mxu0 0.0
  %2071 = vmatprep.subr.mxu0 0.0
  %2072 = vmatpush1.xpose.msra.mxu0 0.0
  %2073 = vmatprep.subr.mxu0 0.0
  %2074 = vmatpush1.xpose.msra.mxu0 0.0
  %2075 = vmatprep.subr.mxu0 0.0
  %2076 = vmatpush1.xpose.msra.mxu0 0.0
  %2077 = vmatprep.subr.mxu0 0.0
  %2078 = vmatpush1.xpose.msra.mxu0 0.0
  %2079 = vmatprep.subr.mxu0 0.0
  %2080 = vmatpush1.xpose.msra.mxu0 0.0
  %2081 = vmatprep.subr.mxu0 0.0
  %2082 = vmatpush1.xpose.msra.mxu0 0.0
  %2083 = vmatprep.subr.mxu0 0.0
  %2084 = vmatpush1.xpose.msra.mxu0 0.0
  %2085 = vmatprep.subr.mxu0 0.0
  %2086 = vmatpush1.xpose.msra.mxu0 0.0
  %2087 = vmatprep.subr.mxu0 0.0
  %2088 = vmatpush1.xpose.msra.mxu0 0.0
  %2089 = vmatprep.subr.mxu0 0.0
  %2090 = vmatpush1.xpose.msra.mxu0 0.0
  %2091 = vmatprep.subr.mxu0 0.0
  %2092 = vmatpush1.xpose.msra.mxu0 0.0
  %2093 = vmatprep.subr.mxu0 0.0
  %2094 = vmatpush1.xpose.msra.mxu0 0.0
  %2095 = vmatprep.subr.mxu0 0.0
  %2096 = vmatpush1.xpose.msra.mxu0 0.0
  %2097 = vmatprep.mubr.f32.mxu0 0.0
  %2098 = vmatmul.mubr.f32.gmra.mrb[0].mxu0 %v2013
  %v2099 = vpop.f32.mrb[0].mxu0
  %v2100 = vadd.f32 0.0, %v2099
  %v2101 = vpop.f32.mrb[0].mxu0
  %2102 = vmatprep.mubr.f32.mxu0 0.0
  %2103 = vmatmul.mubr.f32.gmra.mrb[0].mxu0 %v2015
  %v2104 = vpop.f32.mrb[0].mxu0
  %v2105 = vadd.f32 0.0, %v2104
  %v2106 = vpop.f32.mrb[0].mxu0
  %2107 = vmatprep.mubr.f32.mxu0 0.0
  %2108 = vmatmul.mubr.f32.gmra.mrb[0].mxu0 %v2017
  %v2109 = vpop.f32.mrb[0].mxu0
  %v2110 = vadd.f32 0.0, %v2109
  %v2111 = vpop.f32.mrb[0].mxu0
  %2112 = vmatprep.mubr.f32.mxu0 0.0
  %2113 = vmatmul.mubr.f32.gmra.mrb[0].mxu0 %v2019
  %v2114 = vpop.f32.mrb[0].mxu0
  %v2115 = vadd.f32 0.0, %v2114
  %v2116 = vpop.f32.mrb[0].mxu0
  %2117 = vmatprep.mubr.f32.mxu0 0.0
  %2118 = vmatmul.mubr.f32.gmra.mrb[0].mxu0 %v2021
  %v2119 = vpop.f32.mrb[0].mxu0
  %v2120 = vadd.f32 0.0, %v2119
  %v2121 = vpop.f32.mrb[0].mxu0
  %2122 = vdwg.mxu0
  %v2123 = vmul.f32 %v2100, 0.25
  %v2124 = vmul.f32 %v2105, 0.25
  %v2125 = vmul.f32 %v2110, 0.25
  %v2126 = vmul.f32 %v2115, 0.25
  %v2127 = vmul.f32 %v2120, 0.25
  %v2128 = vadd.f32 %v2123, %v1350
  %v2129 = vadd.f32 %v2124, %v1351
  %v2130 = vadd.f32 %v2125, %v1352
  %v2131 = vadd.f32 %v2126, %v1353
  %v2132 = vadd.f32 %v2127, %v1354
  %v2133 = vsel %vm1697, %v2128, -inf
  %2134 = vmax.xlane.f32.xlu0 %v2133
  %v2135 = vpop.xlane.xlu0 %2134
  %v2136 = vsel %vm1697, %v2129, -inf
  %2137 = vmax.xlane.f32.xlu0 %v2136
  %v2138 = vpop.xlane.xlu0 %2137
  %v2139 = vsel %vm1697, %v2130, -inf
  %2140 = vmax.xlane.f32.xlu0 %v2139
  %v2141 = vpop.xlane.xlu0 %2140
  %v2142 = vsel %vm1697, %v2131, -inf
  %2143 = vmax.xlane.f32.xlu0 %v2142
  %v2144 = vpop.xlane.xlu0 %2143
  %v2145 = vsel %vm1710, %v2132, -inf
  %2146 = vmax.xlane.f32.xlu0 %v2145
  %v2147 = vpop.xlane.xlu0 %2146
  %v2148 = vsub.f32 %v2128, %v2135
  %v2149 = vsub.f32 %v2129, %v2138
  %v2150 = vsub.f32 %v2130, %v2141
  %v2151 = vsub.f32 %v2131, %v2144
  %v2152 = vsub.f32 %v2132, %v2147
  %v2153 = vmul.f32 %v2148, 1.442695
  %v2154 = vpow.pop %v2153
  %v2155 = vmul.f32 %v2149, 1.442695
  %v2156 = vpow.pop %v2155
  %v2157 = vmul.f32 %v2150, 1.442695
  %v2158 = vpow.pop %v2157
  %v2159 = vmul.f32 %v2151, 1.442695
  %v2160 = vpow.pop %v2159
  %v2161 = vmul.f32 %v2152, 1.442695
  %v2162 = vpow.pop %v2161
  %v2163 = vsel %vm1697, %v2154, 0.0
  %2164 = vadd.xlane.f32.xlu0 %v2163
  %v2165 = vpop.xlane.xlu0 %2164
  %v2166 = vsel %vm1697, %v2156, 0.0
  %2167 = vadd.xlane.f32.xlu0 %v2166
  %v2168 = vpop.xlane.xlu0 %2167
  %v2169 = vsel %vm1697, %v2158, 0.0
  %2170 = vadd.xlane.f32.xlu0 %v2169
  %v2171 = vpop.xlane.xlu0 %2170
  %v2172 = vsel %vm1697, %v2160, 0.0
  %2173 = vadd.xlane.f32.xlu0 %v2172
  %v2174 = vpop.xlane.xlu0 %2173
  %v2175 = vsel %vm1710, %v2162, 0.0
  %2176 = vadd.xlane.f32.xlu0 %v2175
  %v2177 = vpop.xlane.xlu0 %2176
  %v2178 = vrcp.pop %v2165
  %v2179 = vrcp.pop %v2168
  %v2180 = vrcp.pop %v2171
  %v2181 = vrcp.pop %v2174
  %v2182 = vrcp.pop %v2177
  %v2183 = vmul.f32 %v2154, %v2178
  %v2184 = vmul.f32 %v2156, %v2179
  %v2185 = vmul.f32 %v2158, %v2180
  %v2186 = vmul.f32 %v2160, %v2181
  %v2187 = vmul.f32 %v2162, %v2182
  %2188 = vrot.lane.b32.xlu0 %v1538, 48
  %v2189 = vpop.permute.xlu0 %2188
  %2190 = vrot.lane.b32.xlu0 %v1543, 48
  %v2191 = vpop.permute.xlu0 %2190
  %2192 = vrot.lane.b32.xlu0 %v1548, 48
  %v2193 = vpop.permute.xlu0 %2192
  %2194 = vrot.lane.b32.xlu0 %v1553, 48
  %v2195 = vpop.permute.xlu0 %2194
  %2196 = vrot.lane.b32.xlu0 %v1558, 48
  %v2197 = vpop.permute.xlu0 %2196
  %v2203 = vsel %vm1697, %v2183, 0
  %v2206 = vsel %vm1697, %v2184, 0
  %v2209 = vsel %vm1697, %v2185, 0
  %v2212 = vsel %vm1697, %v2186, 0
  %v2215 = vsel %vm1697, %v2187, 0
  %v2217 = vsel %vm853, %v2197, 0
  %2219 = vmatprep.subr.mxu0 0.0
  %2220 = vmatpush1.msra.mxu0 %v2189
  %2221 = vmatprep.subr.mxu0 0.0
  %2222 = vmatpush1.msra.mxu0 %v2191
  %2223 = vmatprep.subr.mxu0 0.0
  %2224 = vmatpush1.msra.mxu0 %v2193
  %2225 = vmatprep.subr.mxu0 0.0
  %2226 = vmatpush1.msra.mxu0 %v2195
  %2227 = vmatprep.subr.mxu0 0.0
  %2228 = vmatpush1.msra.mxu0 %v2217
  %2229 = vmatprep.subr.mxu0 0.0
  %2230 = vmatpush1.msra.mxu0 0.0
  %2231 = vmatprep.subr.mxu0 0.0
  %2232 = vmatpush1.msra.mxu0 0.0
  %2233 = vmatprep.subr.mxu0 0.0
  %2234 = vmatpush1.msra.mxu0 0.0
  %2235 = vmatprep.subr.mxu0 0.0
  %2236 = vmatpush1.msra.mxu0 0.0
  %2237 = vmatprep.subr.mxu0 0.0
  %2238 = vmatpush1.msra.mxu0 0.0
  %2239 = vmatprep.subr.mxu0 0.0
  %2240 = vmatpush1.msra.mxu0 0.0
  %2241 = vmatprep.subr.mxu0 0.0
  %2242 = vmatpush1.msra.mxu0 0.0
  %2243 = vmatprep.subr.mxu0 0.0
  %2244 = vmatpush1.msra.mxu0 0.0
  %2245 = vmatprep.subr.mxu0 0.0
  %2246 = vmatpush1.msra.mxu0 0.0
  %2247 = vmatprep.subr.mxu0 0.0
  %2248 = vmatpush1.msra.mxu0 0.0
  %2249 = vmatprep.subr.mxu0 0.0
  %2250 = vmatpush1.msra.mxu0 0.0
  %2251 = vmatprep.subr.mxu0 0.0
  %2252 = vmatpush1.msra.mxu0 0.0
  %2253 = vmatprep.subr.mxu0 0.0
  %2254 = vmatpush1.msra.mxu0 0.0
  %2255 = vmatprep.subr.mxu0 0.0
  %2256 = vmatpush1.msra.mxu0 0.0
  %2257 = vmatprep.subr.mxu0 0.0
  %2258 = vmatpush1.msra.mxu0 0.0
  %2259 = vmatprep.subr.mxu0 0.0
  %2260 = vmatpush1.msra.mxu0 0.0
  %2261 = vmatprep.subr.mxu0 0.0
  %2262 = vmatpush1.msra.mxu0 0.0
  %2263 = vmatprep.subr.mxu0 0.0
  %2264 = vmatpush1.msra.mxu0 0.0
  %2265 = vmatprep.subr.mxu0 0.0
  %2266 = vmatpush1.msra.mxu0 0.0
  %2267 = vmatprep.subr.mxu0 0.0
  %2268 = vmatpush1.msra.mxu0 0.0
  %2269 = vmatprep.subr.mxu0 0.0
  %2270 = vmatpush1.msra.mxu0 0.0
  %2271 = vmatprep.subr.mxu0 0.0
  %2272 = vmatpush1.msra.mxu0 0.0
  %2273 = vmatprep.subr.mxu0 0.0
  %2274 = vmatpush1.msra.mxu0 0.0
  %2275 = vmatprep.subr.mxu0 0.0
  %2276 = vmatpush1.msra.mxu0 0.0
  %2277 = vmatprep.subr.mxu0 0.0
  %2278 = vmatpush1.msra.mxu0 0.0
  %2279 = vmatprep.subr.mxu0 0.0
  %2280 = vmatpush1.msra.mxu0 0.0
  %2281 = vmatprep.subr.mxu0 0.0
  %2282 = vmatpush1.msra.mxu0 0.0
  %2283 = vmatprep.mubr.f32.mxu0 0.0
  %2284 = vmatmul.mubr.f32.gmra.mrb[0].mxu0 %v2203
  %v2285 = vpop.f32.mrb[0].mxu0
  %v2286 = vadd.f32 0.0, %v2285
  %v2287 = vpop.f32.mrb[0].mxu0
  %2288 = vmatprep.mubr.f32.mxu0 0.0
  %2289 = vmatmul.mubr.f32.gmra.mrb[0].mxu0 %v2206
  %v2290 = vpop.f32.mrb[0].mxu0
  %v2291 = vadd.f32 0.0, %v2290
  %v2292 = vpop.f32.mrb[0].mxu0
  %2293 = vmatprep.mubr.f32.mxu0 0.0
  %2294 = vmatmul.mubr.f32.gmra.mrb[0].mxu0 %v2209
  %v2295 = vpop.f32.mrb[0].mxu0
  %v2296 = vadd.f32 0.0, %v2295
  %v2297 = vpop.f32.mrb[0].mxu0
  %2298 = vmatprep.mubr.f32.mxu0 0.0
  %2299 = vmatmul.mubr.f32.gmra.mrb[0].mxu0 %v2212
  %v2300 = vpop.f32.mrb[0].mxu0
  %v2301 = vadd.f32 0.0, %v2300
  %v2302 = vpop.f32.mrb[0].mxu0
  %2303 = vmatprep.mubr.f32.mxu0 0.0
  %2304 = vmatmul.mubr.f32.gmra.mrb[0].mxu0 %v2215
  %v2305 = vpop.f32.mrb[0].mxu0
  %v2306 = vadd.f32 0.0, %v2305
  %v2307 = vpop.f32.mrb[0].mxu0
  %2308 = vdwg.mxu0
  %s2309 = scalar_lea.vmem %s41, 16
  %v2310 = vld [vmem:[%s2309] sm:$0xff]
  %v2311 = vld [vmem:[%s2309 + $0x8] sm:$0xff]
  %v2313 = vsel %vm151, %v2286, 0
  %v2316 = vsel %vm151, %v2291, 0
  %v2319 = vsel %vm151, %v2296, 0
  %v2322 = vsel %vm151, %v2301, 0
  %v2325 = vsel %vm151, %v2306, 0
  %2327 = vmatprep.subr.mxu0 0.0
  %2328 = vmatpush1.msra.mxu0 %v2310
  %2329 = vmatprep.subr.mxu0 0.0
  %2330 = vmatpush1.msra.mxu0 %v2311
  %2331 = vmatprep.subr.mxu0 0.0
  %2332 = vmatpush1.msra.mxu0 0.0
  %2333 = vmatprep.subr.mxu0 0.0
  %2334 = vmatpush1.msra.mxu0 0.0
  %2335 = vmatprep.subr.mxu0 0.0
  %2336 = vmatpush1.msra.mxu0 0.0
  %2337 = vmatprep.subr.mxu0 0.0
  %2338 = vmatpush1.msra.mxu0 0.0
  %2339 = vmatprep.subr.mxu0 0.0
  %2340 = vmatpush1.msra.mxu0 0.0
  %2341 = vmatprep.subr.mxu0 0.0
  %2342 = vmatpush1.msra.mxu0 0.0
  %2343 = vmatprep.subr.mxu0 0.0
  %2344 = vmatpush1.msra.mxu0 0.0
  %2345 = vmatprep.subr.mxu0 0.0
  %2346 = vmatpush1.msra.mxu0 0.0
  %2347 = vmatprep.subr.mxu0 0.0
  %2348 = vmatpush1.msra.mxu0 0.0
  %2349 = vmatprep.subr.mxu0 0.0
  %2350 = vmatpush1.msra.mxu0 0.0
  %2351 = vmatprep.subr.mxu0 0.0
  %2352 = vmatpush1.msra.mxu0 0.0
  %2353 = vmatprep.subr.mxu0 0.0
  %2354 = vmatpush1.msra.mxu0 0.0
  %2355 = vmatprep.subr.mxu0 0.0
  %2356 = vmatpush1.msra.mxu0 0.0
  %2357 = vmatprep.subr.mxu0 0.0
  %2358 = vmatpush1.msra.mxu0 0.0
  %2359 = vmatprep.subr.mxu0 0.0
  %2360 = vmatpush1.msra.mxu0 0.0
  %2361 = vmatprep.subr.mxu0 0.0
  %2362 = vmatpush1.msra.mxu0 0.0
  %2363 = vmatprep.subr.mxu0 0.0
  %2364 = vmatpush1.msra.mxu0 0.0
  %2365 = vmatprep.subr.mxu0 0.0
  %2366 = vmatpush1.msra.mxu0 0.0
  %2367 = vmatprep.subr.mxu0 0.0
  %2368 = vmatpush1.msra.mxu0 0.0
  %2369 = vmatprep.subr.mxu0 0.0
  %2370 = vmatpush1.msra.mxu0 0.0
  %2371 = vmatprep.subr.mxu0 0.0
  %2372 = vmatpush1.msra.mxu0 0.0
  %2373 = vmatprep.subr.mxu0 0.0
  %2374 = vmatpush1.msra.mxu0 0.0
  %2375 = vmatprep.subr.mxu0 0.0
  %2376 = vmatpush1.msra.mxu0 0.0
  %2377 = vmatprep.subr.mxu0 0.0
  %2378 = vmatpush1.msra.mxu0 0.0
  %2379 = vmatprep.subr.mxu0 0.0
  %2380 = vmatpush1.msra.mxu0 0.0
  %2381 = vmatprep.subr.mxu0 0.0
  %2382 = vmatpush1.msra.mxu0 0.0
  %2383 = vmatprep.subr.mxu0 0.0
  %2384 = vmatpush1.msra.mxu0 0.0
  %2385 = vmatprep.subr.mxu0 0.0
  %2386 = vmatpush1.msra.mxu0 0.0
  %2387 = vmatprep.subr.mxu0 0.0
  %2388 = vmatpush1.msra.mxu0 0.0
  %2389 = vmatprep.subr.mxu0 0.0
  %2390 = vmatpush1.msra.mxu0 0.0
  %2391 = vmatprep.mubr.f32.mxu0 0.0
  %2392 = vmatmul.mubr.f32.gmra.mrb[0].mxu0 %v2313
  %v2393 = vpop.f32.mrb[0].mxu0
  %v2394 = vadd.f32 0.0, %v2393
  %v2395 = vpop.f32.mrb[0].mxu0
  %2396 = vmatprep.mubr.f32.mxu0 0.0
  %2397 = vmatmul.mubr.f32.gmra.mrb[0].mxu0 %v2316
  %v2398 = vpop.f32.mrb[0].mxu0
  %v2399 = vadd.f32 0.0, %v2398
  %v2400 = vpop.f32.mrb[0].mxu0
  %2401 = vmatprep.mubr.f32.mxu0 0.0
  %2402 = vmatmul.mubr.f32.gmra.mrb[0].mxu0 %v2319
  %v2403 = vpop.f32.mrb[0].mxu0
  %v2404 = vadd.f32 0.0, %v2403
  %v2405 = vpop.f32.mrb[0].mxu0
  %2406 = vmatprep.mubr.f32.mxu0 0.0
  %2407 = vmatmul.mubr.f32.gmra.mrb[0].mxu0 %v2322
  %v2408 = vpop.f32.mrb[0].mxu0
  %v2409 = vadd.f32 0.0, %v2408
  %v2410 = vpop.f32.mrb[0].mxu0
  %2411 = vmatprep.mubr.f32.mxu0 0.0
  %2412 = vmatmul.mubr.f32.gmra.mrb[0].mxu0 %v2325
  %v2413 = vpop.f32.mrb[0].mxu0
  %v2414 = vadd.f32 0.0, %v2413
  %v2415 = vpop.f32.mrb[0].mxu0
  %2416 = vdwg.mxu0
  %v2417 = vadd.f32 %v1988, %v2394
  %v2418 = vadd.f32 %v1989, %v2399
  %v2419 = vadd.f32 %v1990, %v2404
  %v2420 = vadd.f32 %v1991, %v2409
  %v2421 = vadd.f32 %v1992, %v2414
  %v2422 = vadd.f32 %v1345, %v2417
  %v2423 = vadd.f32 %v1346, %v2418
  %v2424 = vadd.f32 %v1347, %v2419
  %v2425 = vadd.f32 %v1348, %v2420
  %v2426 = vadd.f32 %v1349, %v2421
  %v2427 = vld [vmem:[%s45] sm:$0x1]
  %v2428 = vld [vmem:[%s47] sm:$0x1]
  %v2429 = vsel %vm251, %v2422, 0.0
  %2430 = vadd.xlane.f32.xlu0 %v2429
  %v2431 = vpop.xlane.xlu0 %2430
  %v2432 = vsel %vm251, %v2423, 0.0
  %2433 = vadd.xlane.f32.xlu0 %v2432
  %v2434 = vpop.xlane.xlu0 %2433
  %v2435 = vsel %vm251, %v2424, 0.0
  %2436 = vadd.xlane.f32.xlu0 %v2435
  %v2437 = vpop.xlane.xlu0 %2436
  %v2438 = vsel %vm251, %v2425, 0.0
  %2439 = vadd.xlane.f32.xlu0 %v2438
  %v2440 = vpop.xlane.xlu0 %2439
  %v2441 = vsel %vm1369, %v2426, 0.0
  %2442 = vadd.xlane.f32.xlu0 %v2441
  %v2443 = vpop.xlane.xlu0 %2442
  %v2444 = vmul.f32 %v2431, %v264
  %v2445 = vmul.f32 %v2434, %v264
  %v2446 = vmul.f32 %v2437, %v264
  %v2447 = vmul.f32 %v2440, %v264
  %v2448 = vmul.f32 %v2443, %v264
  %v2449 = vsub.f32 %v2422, %v2444
  %v2450 = vsub.f32 %v2423, %v2445
  %v2451 = vsub.f32 %v2424, %v2446
  %v2452 = vsub.f32 %v2425, %v2447
  %v2453 = vsub.f32 %v2426, %v2448
  %v2454 = vmul.f32 %v2449, %v2449
  %v2455 = vmul.f32 %v2450, %v2450
  %v2456 = vmul.f32 %v2451, %v2451
  %v2457 = vmul.f32 %v2452, %v2452
  %v2458 = vmul.f32 %v2453, %v2453
  %v2459 = vsel %vm251, %v2454, 0.0
  %2460 = vadd.xlane.f32.xlu0 %v2459
  %v2461 = vpop.xlane.xlu0 %2460
  %v2462 = vsel %vm251, %v2455, 0.0
  %2463 = vadd.xlane.f32.xlu0 %v2462
  %v2464 = vpop.xlane.xlu0 %2463
  %v2465 = vsel %vm251, %v2456, 0.0
  %2466 = vadd.xlane.f32.xlu0 %v2465
  %v2467 = vpop.xlane.xlu0 %2466
  %v2468 = vsel %vm251, %v2457, 0.0
  %2469 = vadd.xlane.f32.xlu0 %v2468
  %v2470 = vpop.xlane.xlu0 %2469
  %v2471 = vsel %vm1369, %v2458, 0.0
  %2472 = vadd.xlane.f32.xlu0 %v2471
  %v2473 = vpop.xlane.xlu0 %2472
  %v2474 = vmul.f32 %v2461, %v264
  %v2475 = vmul.f32 %v2464, %v264
  %v2476 = vmul.f32 %v2467, %v264
  %v2477 = vmul.f32 %v2470, %v264
  %v2478 = vmul.f32 %v2473, %v264
  %v2479 = vadd.f32 %v2474, 1e-06
  %v2480 = vadd.f32 %v2475, 1e-06
  %v2481 = vadd.f32 %v2476, 1e-06
  %v2482 = vadd.f32 %v2477, 1e-06
  %v2483 = vadd.f32 %v2478, 1e-06
  %v2484 = vrsqrt.pop %v2479
  %v2485 = vrsqrt.pop %v2480
  %v2486 = vrsqrt.pop %v2481
  %v2487 = vrsqrt.pop %v2482
  %v2488 = vrsqrt.pop %v2483
  %v2489 = vmul.f32 %v2449, %v2484
  %v2490 = vmul.f32 %v2450, %v2485
  %v2491 = vmul.f32 %v2451, %v2486
  %v2492 = vmul.f32 %v2452, %v2487
  %v2493 = vmul.f32 %v2453, %v2488
  %v2495 = vlaneseq
  %v2496 = vshrl.u32 %v2495, 7
  %v2497 = vsub.s32 0, %v2496
  %v2498 = vrot.slane %v2427, %v2497
  %v2500 = vmul.f32 %v2489, %v2498
  %v2501 = vmul.f32 %v2490, %v2498
  %v2502 = vmul.f32 %v2491, %v2498
  %v2503 = vmul.f32 %v2492, %v2498
  %v2504 = vmul.f32 %v2493, %v2498
  %v2506 = vlaneseq
  %v2507 = vshrl.u32 %v2506, 7
  %v2508 = vsub.s32 0, %v2507
  %v2509 = vrot.slane %v2428, %v2508
  %v2511 = vadd.f32 %v2500, %v2509
  %v2512 = vadd.f32 %v2501, %v2509
  %v2513 = vadd.f32 %v2502, %v2509
  %v2514 = vadd.f32 %v2503, %v2509
  %v2515 = vadd.f32 %v2504, %v2509
  %v2516 = vld [vmem:[%s49] sm:$0xff]
  %v2517 = vld [vmem:[%s49 + $0x8] sm:$0xff]
  %v2518 = vld [vmem:[%s49 + $0x10] sm:$0xff]
  %v2519 = vld [vmem:[%s49 + $0x18] sm:$0xff]
  %v2520 = vld [vmem:[%s51] sm:$0x1]
  %v2522 = vlaneseq
  %v2523 = vshrl.u32 %v2522, 7
  %v2524 = vsub.s32 0, %v2523
  %v2525 = vrot.slane %v2520, %v2524
  %v2528 = vsel %vm251, %v2511, 0
  %v2531 = vsel %vm251, %v2512, 0
  %v2534 = vsel %vm251, %v2513, 0
  %v2537 = vsel %vm251, %v2514, 0
  %v2540 = vsel %vm251, %v2515, 0
  %2542 = vmatprep.subr.mxu0 0.0
  %2543 = vmatpush1.msra.mxu0 %v2516
  %2544 = vmatprep.subr.mxu0 0.0
  %2545 = vmatpush1.msra.mxu0 %v2517
  %2546 = vmatprep.subr.mxu0 0.0
  %2547 = vmatpush1.msra.mxu0 %v2518
  %2548 = vmatprep.subr.mxu0 0.0
  %2549 = vmatpush1.msra.mxu0 %v2519
  %2550 = vmatprep.subr.mxu0 0.0
  %2551 = vmatpush1.msra.mxu0 0.0
  %2552 = vmatprep.subr.mxu0 0.0
  %2553 = vmatpush1.msra.mxu0 0.0
  %2554 = vmatprep.subr.mxu0 0.0
  %2555 = vmatpush1.msra.mxu0 0.0
  %2556 = vmatprep.subr.mxu0 0.0
  %2557 = vmatpush1.msra.mxu0 0.0
  %2558 = vmatprep.subr.mxu0 0.0
  %2559 = vmatpush1.msra.mxu0 0.0
  %2560 = vmatprep.subr.mxu0 0.0
  %2561 = vmatpush1.msra.mxu0 0.0
  %2562 = vmatprep.subr.mxu0 0.0
  %2563 = vmatpush1.msra.mxu0 0.0
  %2564 = vmatprep.subr.mxu0 0.0
  %2565 = vmatpush1.msra.mxu0 0.0
  %2566 = vmatprep.subr.mxu0 0.0
  %2567 = vmatpush1.msra.mxu0 0.0
  %2568 = vmatprep.subr.mxu0 0.0
  %2569 = vmatpush1.msra.mxu0 0.0
  %2570 = vmatprep.subr.mxu0 0.0
  %2571 = vmatpush1.msra.mxu0 0.0
  %2572 = vmatprep.subr.mxu0 0.0
  %2573 = vmatpush1.msra.mxu0 0.0
  %2574 = vmatprep.subr.mxu0 0.0
  %2575 = vmatpush1.msra.mxu0 0.0
  %2576 = vmatprep.subr.mxu0 0.0
  %2577 = vmatpush1.msra.mxu0 0.0
  %2578 = vmatprep.subr.mxu0 0.0
  %2579 = vmatpush1.msra.mxu0 0.0
  %2580 = vmatprep.subr.mxu0 0.0
  %2581 = vmatpush1.msra.mxu0 0.0
  %2582 = vmatprep.subr.mxu0 0.0
  %2583 = vmatpush1.msra.mxu0 0.0
  %2584 = vmatprep.subr.mxu0 0.0
  %2585 = vmatpush1.msra.mxu0 0.0
  %2586 = vmatprep.subr.mxu0 0.0
  %2587 = vmatpush1.msra.mxu0 0.0
  %2588 = vmatprep.subr.mxu0 0.0
  %2589 = vmatpush1.msra.mxu0 0.0
  %2590 = vmatprep.subr.mxu0 0.0
  %2591 = vmatpush1.msra.mxu0 0.0
  %2592 = vmatprep.subr.mxu0 0.0
  %2593 = vmatpush1.msra.mxu0 0.0
  %2594 = vmatprep.subr.mxu0 0.0
  %2595 = vmatpush1.msra.mxu0 0.0
  %2596 = vmatprep.subr.mxu0 0.0
  %2597 = vmatpush1.msra.mxu0 0.0
  %2598 = vmatprep.subr.mxu0 0.0
  %2599 = vmatpush1.msra.mxu0 0.0
  %2600 = vmatprep.subr.mxu0 0.0
  %2601 = vmatpush1.msra.mxu0 0.0
  %2602 = vmatprep.subr.mxu0 0.0
  %2603 = vmatpush1.msra.mxu0 0.0
  %2604 = vmatprep.subr.mxu0 0.0
  %2605 = vmatpush1.msra.mxu0 0.0
  %2606 = vmatprep.mubr.f32.mxu0 0.0
  %2607 = vmatmul.mubr.f32.gmra.mrb[0].mxu0 %v2528
  %v2608 = vpop.f32.mrb[0].mxu0
  %v2609 = vadd.f32 %v2525, %v2608
  %v2610 = vpop.f32.mrb[0].mxu0
  %2611 = vmatprep.mubr.f32.mxu0 0.0
  %2612 = vmatmul.mubr.f32.gmra.mrb[0].mxu0 %v2531
  %v2613 = vpop.f32.mrb[0].mxu0
  %v2614 = vadd.f32 %v2525, %v2613
  %v2615 = vpop.f32.mrb[0].mxu0
  %2616 = vmatprep.mubr.f32.mxu0 0.0
  %2617 = vmatmul.mubr.f32.gmra.mrb[0].mxu0 %v2534
  %v2618 = vpop.f32.mrb[0].mxu0
  %v2619 = vadd.f32 %v2525, %v2618
  %v2620 = vpop.f32.mrb[0].mxu0
  %2621 = vmatprep.mubr.f32.mxu0 0.0
  %2622 = vmatmul.mubr.f32.gmra.mrb[0].mxu0 %v2537
  %v2623 = vpop.f32.mrb[0].mxu0
  %v2624 = vadd.f32 %v2525, %v2623
  %v2625 = vpop.f32.mrb[0].mxu0
  %2626 = vmatprep.mubr.f32.mxu0 0.0
  %2627 = vmatmul.mubr.f32.gmra.mrb[0].mxu0 %v2540
  %v2628 = vpop.f32.mrb[0].mxu0
  %v2629 = vadd.f32 %v2525, %v2628
  %v2630 = vpop.f32.mrb[0].mxu0
  %2631 = vdwg.mxu0
  %v2632 = vmul.f32 %v2609, %v2609
  %v2633 = vmul.f32 %v2614, %v2614
  %v2634 = vmul.f32 %v2619, %v2619
  %v2635 = vmul.f32 %v2624, %v2624
  %v2636 = vmul.f32 %v2629, %v2629
  %v2637 = vmul.f32 %v2609, %v2632
  %v2638 = vmul.f32 %v2614, %v2633
  %v2639 = vmul.f32 %v2619, %v2634
  %v2640 = vmul.f32 %v2624, %v2635
  %v2641 = vmul.f32 %v2629, %v2636
  %v2642 = vmul.f32 %v2637, 0.044715
  %v2643 = vmul.f32 %v2638, 0.044715
  %v2644 = vmul.f32 %v2639, 0.044715
  %v2645 = vmul.f32 %v2640, 0.044715
  %v2646 = vmul.f32 %v2641, 0.044715
  %v2647 = vadd.f32 %v2609, %v2642
  %v2648 = vadd.f32 %v2614, %v2643
  %v2649 = vadd.f32 %v2619, %v2644
  %v2650 = vadd.f32 %v2624, %v2645
  %v2651 = vadd.f32 %v2629, %v2646
  %v2652 = vmul.f32 %v2647, 0.7978846
  %v2653 = vmul.f32 %v2648, 0.7978846
  %v2654 = vmul.f32 %v2649, 0.7978846
  %v2655 = vmul.f32 %v2650, 0.7978846
  %v2656 = vmul.f32 %v2651, 0.7978846
  %v2657 = vtanh.pop %v2652
  %v2658 = vtanh.pop %v2653
  %v2659 = vtanh.pop %v2654
  %v2660 = vtanh.pop %v2655
  %v2661 = vtanh.pop %v2656
  %v2662 = vadd.f32 %v2657, 1.0
  %v2663 = vadd.f32 %v2658, 1.0
  %v2664 = vadd.f32 %v2659, 1.0
  %v2665 = vadd.f32 %v2660, 1.0
  %v2666 = vadd.f32 %v2661, 1.0
  %v2667 = vmul.f32 %v2662, 0.5
  %v2668 = vmul.f32 %v2663, 0.5
  %v2669 = vmul.f32 %v2664, 0.5
  %v2670 = vmul.f32 %v2665, 0.5
  %v2671 = vmul.f32 %v2666, 0.5
  %v2672 = vmul.f32 %v2609, %v2667
  %v2673 = vmul.f32 %v2614, %v2668
  %v2674 = vmul.f32 %v2619, %v2669
  %v2675 = vmul.f32 %v2624, %v2670
  %v2676 = vmul.f32 %v2629, %v2671
  %v2677 = vld [vmem:[%s53] sm:$0xff]
  %v2678 = vld [vmem:[%s53 + $0x8] sm:$0xff]
  %v2679 = vld [vmem:[%s53 + $0x10] sm:$0xff]
  %v2680 = vld [vmem:[%s53 + $0x18] sm:$0xff]
  %v2681 = vld [vmem:[%s53 + $0x20] sm:$0xff]
  %v2682 = vld [vmem:[%s53 + $0x28] sm:$0xff]
  %v2683 = vld [vmem:[%s53 + $0x30] sm:$0xff]
  %v2684 = vld [vmem:[%s53 + $0x38] sm:$0xff]
  %v2685 = vld [vmem:[%s53 + $0x40] sm:$0xff]
  %v2686 = vld [vmem:[%s53 + $0x48] sm:$0xff]
  %v2687 = vld [vmem:[%s53 + $0x50] sm:$0xff]
  %v2688 = vld [vmem:[%s53 + $0x58] sm:$0xff]
  %v2689 = vld [vmem:[%s53 + $0x60] sm:$0xff]
  %v2690 = vld [vmem:[%s53 + $0x68] sm:$0xff]
  %v2691 = vld [vmem:[%s53 + $0x70] sm:$0xff]
  %v2692 = vld [vmem:[%s53 + $0x78] sm:$0xff]
  %2693 = vmatprep.subr.mxu0 0.0
  %2694 = vmatpush1.msra.mxu0 %v2677
  %2695 = vmatprep.subr.mxu0 0.0
  %2696 = vmatpush1.msra.mxu0 %v2678
  %2697 = vmatprep.subr.mxu0 0.0
  %2698 = vmatpush1.msra.mxu0 %v2679
  %2699 = vmatprep.subr.mxu0 0.0
  %2700 = vmatpush1.msra.mxu0 %v2680
  %2701 = vmatprep.subr.mxu0 0.0
  %2702 = vmatpush1.msra.mxu0 %v2681
  %2703 = vmatprep.subr.mxu0 0.0
  %2704 = vmatpush1.msra.mxu0 %v2682
  %2705 = vmatprep.subr.mxu0 0.0
  %2706 = vmatpush1.msra.mxu0 %v2683
  %2707 = vmatprep.subr.mxu0 0.0
  %2708 = vmatpush1.msra.mxu0 %v2684
  %2709 = vmatprep.subr.mxu0 0.0
  %2710 = vmatpush1.msra.mxu0 %v2685
  %2711 = vmatprep.subr.mxu0 0.0
  %2712 = vmatpush1.msra.mxu0 %v2686
  %2713 = vmatprep.subr.mxu0 0.0
  %2714 = vmatpush1.msra.mxu0 %v2687
  %2715 = vmatprep.subr.mxu0 0.0
  %2716 = vmatpush1.msra.mxu0 %v2688
  %2717 = vmatprep.subr.mxu0 0.0
  %2718 = vmatpush1.msra.mxu0 %v2689
  %2719 = vmatprep.subr.mxu0 0.0
  %2720 = vmatpush1.msra.mxu0 %v2690
  %2721 = vmatprep.subr.mxu0 0.0
  %2722 = vmatpush1.msra.mxu0 %v2691
  %2723 = vmatprep.subr.mxu0 0.0
  %2724 = vmatpush1.msra.mxu0 %v2692
  %2725 = vmatprep.subr.mxu0 0.0
  %2726 = vmatpush1.msra.mxu0 0.0
  %2727 = vmatprep.subr.mxu0 0.0
  %2728 = vmatpush1.msra.mxu0 0.0
  %2729 = vmatprep.subr.mxu0 0.0
  %2730 = vmatpush1.msra.mxu0 0.0
  %2731 = vmatprep.subr.mxu0 0.0
  %2732 = vmatpush1.msra.mxu0 0.0
  %2733 = vmatprep.subr.mxu0 0.0
  %2734 = vmatpush1.msra.mxu0 0.0
  %2735 = vmatprep.subr.mxu0 0.0
  %2736 = vmatpush1.msra.mxu0 0.0
  %2737 = vmatprep.subr.mxu0 0.0
  %2738 = vmatpush1.msra.mxu0 0.0
  %2739 = vmatprep.subr.mxu0 0.0
  %2740 = vmatpush1.msra.mxu0 0.0
  %2741 = vmatprep.subr.mxu0 0.0
  %2742 = vmatpush1.msra.mxu0 0.0
  %2743 = vmatprep.subr.mxu0 0.0
  %2744 = vmatpush1.msra.mxu0 0.0
  %2745 = vmatprep.subr.mxu0 0.0
  %2746 = vmatpush1.msra.mxu0 0.0
  %2747 = vmatprep.subr.mxu0 0.0
  %2748 = vmatpush1.msra.mxu0 0.0
  %2749 = vmatprep.subr.mxu0 0.0
  %2750 = vmatpush1.msra.mxu0 0.0
  %2751 = vmatprep.subr.mxu0 0.0
  %2752 = vmatpush1.msra.mxu0 0.0
  %2753 = vmatprep.subr.mxu0 0.0
  %2754 = vmatpush1.msra.mxu0 0.0
  %2755 = vmatprep.subr.mxu0 0.0
  %2756 = vmatpush1.msra.mxu0 0.0
  %2757 = vmatprep.mubr.f32.mxu0 0.0
  %2758 = vmatmul.mubr.f32.gmra.mrb[0].mxu0 %v2672
  %v2759 = vpop.f32.mrb[0].mxu0
  %v2760 = vadd.f32 0.0, %v2759
  %v2761 = vpop.f32.mrb[0].mxu0
  %2762 = vmatprep.mubr.f32.mxu0 0.0
  %2763 = vmatmul.mubr.f32.gmra.mrb[0].mxu0 %v2673
  %v2764 = vpop.f32.mrb[0].mxu0
  %v2765 = vadd.f32 0.0, %v2764
  %v2766 = vpop.f32.mrb[0].mxu0
  %2767 = vmatprep.mubr.f32.mxu0 0.0
  %2768 = vmatmul.mubr.f32.gmra.mrb[0].mxu0 %v2674
  %v2769 = vpop.f32.mrb[0].mxu0
  %v2770 = vadd.f32 0.0, %v2769
  %v2771 = vpop.f32.mrb[0].mxu0
  %2772 = vmatprep.mubr.f32.mxu0 0.0
  %2773 = vmatmul.mubr.f32.gmra.mrb[0].mxu0 %v2675
  %v2774 = vpop.f32.mrb[0].mxu0
  %v2775 = vadd.f32 0.0, %v2774
  %v2776 = vpop.f32.mrb[0].mxu0
  %2777 = vmatprep.mubr.f32.mxu0 0.0
  %2778 = vmatmul.mubr.f32.gmra.mrb[0].mxu0 %v2676
  %v2779 = vpop.f32.mrb[0].mxu0
  %v2780 = vadd.f32 0.0, %v2779
  %v2781 = vpop.f32.mrb[0].mxu0
  %2782 = vdwg.mxu0
  %v2783 = vadd.f32 %v2422, %v2760
  %v2784 = vadd.f32 %v2423, %v2765
  %v2785 = vadd.f32 %v2424, %v2770
  %v2786 = vadd.f32 %v2425, %v2775
  %v2787 = vadd.f32 %v2426, %v2780
  %v2788 = vld [vmem:[%s55] sm:$0x1]
  %v2790 = vlaneseq
  %v2791 = vshrl.u32 %v2790, 7
  %v2792 = vsub.s32 0, %v2791
  %v2793 = vrot.slane %v2788, %v2792
  %v2795 = vadd.f32 %v2783, %v2793
  %v2796 = vadd.f32 %v2784, %v2793
  %v2797 = vadd.f32 %v2785, %v2793
  %v2798 = vadd.f32 %v2786, %v2793
  %v2799 = vadd.f32 %v2787, %v2793
  %s2800 = scalar_lea.vmem %s33, 1
  %v2801 = vld [vmem:[%s2800] sm:$0x1]
  %s2802 = scalar_lea.vmem %s35, 1
  %v2803 = vld [vmem:[%s2802] sm:$0x1]
  %v2804 = vsel %vm251, %v2795, 0.0
  %2805 = vadd.xlane.f32.xlu0 %v2804
  %v2806 = vpop.xlane.xlu0 %2805
  %v2807 = vsel %vm251, %v2796, 0.0
  %2808 = vadd.xlane.f32.xlu0 %v2807
  %v2809 = vpop.xlane.xlu0 %2808
  %v2810 = vsel %vm251, %v2797, 0.0
  %2811 = vadd.xlane.f32.xlu0 %v2810
  %v2812 = vpop.xlane.xlu0 %2811
  %v2813 = vsel %vm251, %v2798, 0.0
  %2814 = vadd.xlane.f32.xlu0 %v2813
  %v2815 = vpop.xlane.xlu0 %2814
  %v2816 = vsel %vm1369, %v2799, 0.0
  %2817 = vadd.xlane.f32.xlu0 %v2816
  %v2818 = vpop.xlane.xlu0 %2817
  %v2819 = vmul.f32 %v2806, %v264
  %v2820 = vmul.f32 %v2809, %v264
  %v2821 = vmul.f32 %v2812, %v264
  %v2822 = vmul.f32 %v2815, %v264
  %v2823 = vmul.f32 %v2818, %v264
  %v2824 = vsub.f32 %v2795, %v2819
  %v2825 = vsub.f32 %v2796, %v2820
  %v2826 = vsub.f32 %v2797, %v2821
  %v2827 = vsub.f32 %v2798, %v2822
  %v2828 = vsub.f32 %v2799, %v2823
  %v2829 = vmul.f32 %v2824, %v2824
  %v2830 = vmul.f32 %v2825, %v2825
  %v2831 = vmul.f32 %v2826, %v2826
  %v2832 = vmul.f32 %v2827, %v2827
  %v2833 = vmul.f32 %v2828, %v2828
  %v2834 = vsel %vm251, %v2829, 0.0
  %2835 = vadd.xlane.f32.xlu0 %v2834
  %v2836 = vpop.xlane.xlu0 %2835
  %v2837 = vsel %vm251, %v2830, 0.0
  %2838 = vadd.xlane.f32.xlu0 %v2837
  %v2839 = vpop.xlane.xlu0 %2838
  %v2840 = vsel %vm251, %v2831, 0.0
  %2841 = vadd.xlane.f32.xlu0 %v2840
  %v2842 = vpop.xlane.xlu0 %2841
  %v2843 = vsel %vm251, %v2832, 0.0
  %2844 = vadd.xlane.f32.xlu0 %v2843
  %v2845 = vpop.xlane.xlu0 %2844
  %v2846 = vsel %vm1369, %v2833, 0.0
  %2847 = vadd.xlane.f32.xlu0 %v2846
  %v2848 = vpop.xlane.xlu0 %2847
  %v2849 = vmul.f32 %v2836, %v264
  %v2850 = vmul.f32 %v2839, %v264
  %v2851 = vmul.f32 %v2842, %v264
  %v2852 = vmul.f32 %v2845, %v264
  %v2853 = vmul.f32 %v2848, %v264
  %v2854 = vadd.f32 %v2849, 1e-06
  %v2855 = vadd.f32 %v2850, 1e-06
  %v2856 = vadd.f32 %v2851, 1e-06
  %v2857 = vadd.f32 %v2852, 1e-06
  %v2858 = vadd.f32 %v2853, 1e-06
  %v2859 = vrsqrt.pop %v2854
  %v2860 = vrsqrt.pop %v2855
  %v2861 = vrsqrt.pop %v2856
  %v2862 = vrsqrt.pop %v2857
  %v2863 = vrsqrt.pop %v2858
  %v2864 = vmul.f32 %v2824, %v2859
  %v2865 = vmul.f32 %v2825, %v2860
  %v2866 = vmul.f32 %v2826, %v2861
  %v2867 = vmul.f32 %v2827, %v2862
  %v2868 = vmul.f32 %v2828, %v2863
  %v2870 = vlaneseq
  %v2871 = vshrl.u32 %v2870, 7
  %v2872 = vsub.s32 0, %v2871
  %v2873 = vrot.slane %v2801, %v2872
  %v2875 = vmul.f32 %v2864, %v2873
  %v2876 = vmul.f32 %v2865, %v2873
  %v2877 = vmul.f32 %v2866, %v2873
  %v2878 = vmul.f32 %v2867, %v2873
  %v2879 = vmul.f32 %v2868, %v2873
  %v2881 = vlaneseq
  %v2882 = vshrl.u32 %v2881, 7
  %v2883 = vsub.s32 0, %v2882
  %v2884 = vrot.slane %v2803, %v2883
  %v2886 = vadd.f32 %v2875, %v2884
  %v2887 = vadd.f32 %v2876, %v2884
  %v2888 = vadd.f32 %v2877, %v2884
  %v2889 = vadd.f32 %v2878, %v2884
  %v2890 = vadd.f32 %v2879, %v2884
  %s2891 = scalar_lea.vmem %s37, 32
  %v2892 = vld [vmem:[%s2891] sm:$0xff]
  %v2893 = vld [vmem:[%s2891 + $0x8] sm:$0xff]
  %v2894 = vld [vmem:[%s2891 + $0x10] sm:$0xff]
  %v2895 = vld [vmem:[%s2891 + $0x18] sm:$0xff]
  %s2896 = scalar_lea.vmem %s39, 1
  %v2897 = vld [vmem:[%s2896] sm:$0x1]
  %v2899 = vlaneseq
  %v2900 = vshrl.u32 %v2899, 7
  %v2901 = vsub.s32 0, %v2900
  %v2902 = vrot.slane %v2897, %v2901
  %v2905 = vsel %vm251, %v2886, 0
  %v2908 = vsel %vm251, %v2887, 0
  %v2911 = vsel %vm251, %v2888, 0
  %v2914 = vsel %vm251, %v2889, 0
  %v2917 = vsel %vm251, %v2890, 0
  %2919 = vmatprep.subr.mxu0 0.0
  %2920 = vmatpush1.msra.mxu0 %v2892
  %2921 = vmatprep.subr.mxu0 0.0
  %2922 = vmatpush1.msra.mxu0 %v2893
  %2923 = vmatprep.subr.mxu0 0.0
  %2924 = vmatpush1.msra.mxu0 %v2894
  %2925 = vmatprep.subr.mxu0 0.0
  %2926 = vmatpush1.msra.mxu0 %v2895
  %2927 = vmatprep.subr.mxu0 0.0
  %2928 = vmatpush1.msra.mxu0 0.0
  %2929 = vmatprep.subr.mxu0 0.0
  %2930 = vmatpush1.msra.mxu0 0.0
  %2931 = vmatprep.subr.mxu0 0.0
  %2932 = vmatpush1.msra.mxu0 0.0
  %2933 = vmatprep.subr.mxu0 0.0
  %2934 = vmatpush1.msra.mxu0 0.0
  %2935 = vmatprep.subr.mxu0 0.0
  %2936 = vmatpush1.msra.mxu0 0.0
  %2937 = vmatprep.subr.mxu0 0.0
  %2938 = vmatpush1.msra.mxu0 0.0
  %2939 = vmatprep.subr.mxu0 0.0
  %2940 = vmatpush1.msra.mxu0 0.0
  %2941 = vmatprep.subr.mxu0 0.0
  %2942 = vmatpush1.msra.mxu0 0.0
  %2943 = vmatprep.subr.mxu0 0.0
  %2944 = vmatpush1.msra.mxu0 0.0
  %2945 = vmatprep.subr.mxu0 0.0
  %2946 = vmatpush1.msra.mxu0 0.0
  %2947 = vmatprep.subr.mxu0 0.0
  %2948 = vmatpush1.msra.mxu0 0.0
  %2949 = vmatprep.subr.mxu0 0.0
  %2950 = vmatpush1.msra.mxu0 0.0
  %2951 = vmatprep.subr.mxu0 0.0
  %2952 = vmatpush1.msra.mxu0 0.0
  %2953 = vmatprep.subr.mxu0 0.0
  %2954 = vmatpush1.msra.mxu0 0.0
  %2955 = vmatprep.subr.mxu0 0.0
  %2956 = vmatpush1.msra.mxu0 0.0
  %2957 = vmatprep.subr.mxu0 0.0
  %2958 = vmatpush1.msra.mxu0 0.0
  %2959 = vmatprep.subr.mxu0 0.0
  %2960 = vmatpush1.msra.mxu0 0.0
  %2961 = vmatprep.subr.mxu0 0.0
  %2962 = vmatpush1.msra.mxu0 0.0
  %2963 = vmatprep.subr.mxu0 0.0
  %2964 = vmatpush1.msra.mxu0 0.0
  %2965 = vmatprep.subr.mxu0 0.0
  %2966 = vmatpush1.msra.mxu0 0.0
  %2967 = vmatprep.subr.mxu0 0.0
  %2968 = vmatpush1.msra.mxu0 0.0
  %2969 = vmatprep.subr.mxu0 0.0
  %2970 = vmatpush1.msra.mxu0 0.0
  %2971 = vmatprep.subr.mxu0 0.0
  %2972 = vmatpush1.msra.mxu0 0.0
  %2973 = vmatprep.subr.mxu0 0.0
  %2974 = vmatpush1.msra.mxu0 0.0
  %2975 = vmatprep.subr.mxu0 0.0
  %2976 = vmatpush1.msra.mxu0 0.0
  %2977 = vmatprep.subr.mxu0 0.0
  %2978 = vmatpush1.msra.mxu0 0.0
  %2979 = vmatprep.subr.mxu0 0.0
  %2980 = vmatpush1.msra.mxu0 0.0
  %2981 = vmatprep.subr.mxu0 0.0
  %2982 = vmatpush1.msra.mxu0 0.0
  %2983 = vmatprep.mubr.f32.mxu0 0.0
  %2984 = vmatmul.mubr.f32.gmra.mrb[0].mxu0 %v2905
  %v2985 = vpop.f32.mrb[0].mxu0
  %v2986 = vadd.f32 %v2902, %v2985
  %v2987 = vpop.f32.mrb[0].mxu0
  %2988 = vmatprep.mubr.f32.mxu0 0.0
  %2989 = vmatmul.mubr.f32.gmra.mrb[0].mxu0 %v2908
  %v2990 = vpop.f32.mrb[0].mxu0
  %v2991 = vadd.f32 %v2902, %v2990
  %v2992 = vpop.f32.mrb[0].mxu0
  %2993 = vmatprep.mubr.f32.mxu0 0.0
  %2994 = vmatmul.mubr.f32.gmra.mrb[0].mxu0 %v2911
  %v2995 = vpop.f32.mrb[0].mxu0
  %v2996 = vadd.f32 %v2902, %v2995
  %v2997 = vpop.f32.mrb[0].mxu0
  %2998 = vmatprep.mubr.f32.mxu0 0.0
  %2999 = vmatmul.mubr.f32.gmra.mrb[0].mxu0 %v2914
  %v3000 = vpop.f32.mrb[0].mxu0
  %v3001 = vadd.f32 %v2902, %v3000
  %v3002 = vpop.f32.mrb[0].mxu0
  %3003 = vmatprep.mubr.f32.mxu0 0.0
  %3004 = vmatmul.mubr.f32.gmra.mrb[0].mxu0 %v2917
  %v3005 = vpop.f32.mrb[0].mxu0
  %v3006 = vadd.f32 %v2902, %v3005
  %v3007 = vpop.f32.mrb[0].mxu0
  %3008 = vdwg.mxu0
  %s3009 = scalar_lea.vmem %s43, 1
  %v3010 = vld [vmem:[%s3009] sm:$0x1]
  %3016 = vrot.lane.b32.xlu0 %v2986, 96
  %v3017 = vpop.permute.xlu0 %3016
  %3018 = vrot.lane.b32.xlu0 %v2991, 96
  %v3019 = vpop.permute.xlu0 %3018
  %3020 = vrot.lane.b32.xlu0 %v2996, 96
  %v3021 = vpop.permute.xlu0 %3020
  %3022 = vrot.lane.b32.xlu0 %v3001, 96
  %v3023 = vpop.permute.xlu0 %3022
  %3024 = vrot.lane.b32.xlu0 %v3006, 96
  %v3025 = vpop.permute.xlu0 %3024
  %v3026 = vsel %vm151, %v2986, 0
  %v3028 = vsel %vm151, %v2991, 0
  %v3030 = vsel %vm151, %v2996, 0
  %v3032 = vsel %vm151, %v3001, 0
  %v3034 = vsel %vm151, %v3006, 0
  %v3036 = vsel %vm151, %v3017, 0
  %v3038 = vsel %vm151, %v3019, 0
  %v3040 = vsel %vm151, %v3021, 0
  %v3042 = vsel %vm151, %v3023, 0
  %v3044 = vsel %vm151, %v3025, 0
  %3046 = vmatprep.subr.mxu0 0.0
  %3047 = vmatpush1.xpose.msra.mxu0 %v3036
  %3048 = vmatprep.subr.mxu0 0.0
  %3049 = vmatpush1.xpose.msra.mxu0 %v3038
  %3050 = vmatprep.subr.mxu0 0.0
  %3051 = vmatpush1.xpose.msra.mxu0 %v3040
  %3052 = vmatprep.subr.mxu0 0.0
  %3053 = vmatpush1.xpose.msra.mxu0 %v3042
  %3054 = vmatprep.subr.mxu0 0.0
  %3055 = vmatpush1.xpose.msra.mxu0 %v3044
  %3056 = vmatprep.subr.mxu0 0.0
  %3057 = vmatpush1.xpose.msra.mxu0 0.0
  %3058 = vmatprep.subr.mxu0 0.0
  %3059 = vmatpush1.xpose.msra.mxu0 0.0
  %3060 = vmatprep.subr.mxu0 0.0
  %3061 = vmatpush1.xpose.msra.mxu0 0.0
  %3062 = vmatprep.subr.mxu0 0.0
  %3063 = vmatpush1.xpose.msra.mxu0 0.0
  %3064 = vmatprep.subr.mxu0 0.0
  %3065 = vmatpush1.xpose.msra.mxu0 0.0
  %3066 = vmatprep.subr.mxu0 0.0
  %3067 = vmatpush1.xpose.msra.mxu0 0.0
  %3068 = vmatprep.subr.mxu0 0.0
  %3069 = vmatpush1.xpose.msra.mxu0 0.0
  %3070 = vmatprep.subr.mxu0 0.0
  %3071 = vmatpush1.xpose.msra.mxu0 0.0
  %3072 = vmatprep.subr.mxu0 0.0
  %3073 = vmatpush1.xpose.msra.mxu0 0.0
  %3074 = vmatprep.subr.mxu0 0.0
  %3075 = vmatpush1.xpose.msra.mxu0 0.0
  %3076 = vmatprep.subr.mxu0 0.0
  %3077 = vmatpush1.xpose.msra.mxu0 0.0
  %3078 = vmatprep.subr.mxu0 0.0
  %3079 = vmatpush1.xpose.msra.mxu0 0.0
  %3080 = vmatprep.subr.mxu0 0.0
  %3081 = vmatpush1.xpose.msra.mxu0 0.0
  %3082 = vmatprep.subr.mxu0 0.0
  %3083 = vmatpush1.xpose.msra.mxu0 0.0
  %3084 = vmatprep.subr.mxu0 0.0
  %3085 = vmatpush1.xpose.msra.mxu0 0.0
  %3086 = vmatprep.subr.mxu0 0.0
  %3087 = vmatpush1.xpose.msra.mxu0 0.0
  %3088 = vmatprep.subr.mxu0 0.0
  %3089 = vmatpush1.xpose.msra.mxu0 0.0
  %3090 = vmatprep.subr.mxu0 0.0
  %3091 = vmatpush1.xpose.msra.mxu0 0.0
  %3092 = vmatprep.subr.mxu0 0.0
  %3093 = vmatpush1.xpose.msra.mxu0 0.0
  %3094 = vmatprep.subr.mxu0 0.0
  %3095 = vmatpush1.xpose.msra.mxu0 0.0
  %3096 = vmatprep.subr.mxu0 0.0
  %3097 = vmatpush1.xpose.msra.mxu0 0.0
  %3098 = vmatprep.subr.mxu0 0.0
  %3099 = vmatpush1.xpose.msra.mxu0 0.0
  %3100 = vmatprep.subr.mxu0 0.0
  %3101 = vmatpush1.xpose.msra.mxu0 0.0
  %3102 = vmatprep.subr.mxu0 0.0
  %3103 = vmatpush1.xpose.msra.mxu0 0.0
  %3104 = vmatprep.subr.mxu0 0.0
  %3105 = vmatpush1.xpose.msra.mxu0 0.0
  %3106 = vmatprep.subr.mxu0 0.0
  %3107 = vmatpush1.xpose.msra.mxu0 0.0
  %3108 = vmatprep.subr.mxu0 0.0
  %3109 = vmatpush1.xpose.msra.mxu0 0.0
  %3110 = vmatprep.mubr.f32.mxu0 0.0
  %3111 = vmatmul.mubr.f32.gmra.mrb[0].mxu0 %v3026
  %v3112 = vpop.f32.mrb[0].mxu0
  %v3113 = vadd.f32 0.0, %v3112
  %v3114 = vpop.f32.mrb[0].mxu0
  %3115 = vmatprep.mubr.f32.mxu0 0.0
  %3116 = vmatmul.mubr.f32.gmra.mrb[0].mxu0 %v3028
  %v3117 = vpop.f32.mrb[0].mxu0
  %v3118 = vadd.f32 0.0, %v3117
  %v3119 = vpop.f32.mrb[0].mxu0
  %3120 = vmatprep.mubr.f32.mxu0 0.0
  %3121 = vmatmul.mubr.f32.gmra.mrb[0].mxu0 %v3030
  %v3122 = vpop.f32.mrb[0].mxu0
  %v3123 = vadd.f32 0.0, %v3122
  %v3124 = vpop.f32.mrb[0].mxu0
  %3125 = vmatprep.mubr.f32.mxu0 0.0
  %3126 = vmatmul.mubr.f32.gmra.mrb[0].mxu0 %v3032
  %v3127 = vpop.f32.mrb[0].mxu0
  %v3128 = vadd.f32 0.0, %v3127
  %v3129 = vpop.f32.mrb[0].mxu0
  %3130 = vmatprep.mubr.f32.mxu0 0.0
  %3131 = vmatmul.mubr.f32.gmra.mrb[0].mxu0 %v3034
  %v3132 = vpop.f32.mrb[0].mxu0
  %v3133 = vadd.f32 0.0, %v3132
  %v3134 = vpop.f32.mrb[0].mxu0
  %3135 = vdwg.mxu0
  %v3136 = vmul.f32 %v3113, 0.25
  %v3137 = vmul.f32 %v3118, 0.25
  %v3138 = vmul.f32 %v3123, 0.25
  %v3139 = vmul.f32 %v3128, 0.25
  %v3140 = vmul.f32 %v3133, 0.25
  %v3141 = vadd.f32 %v3136, %v1350
  %v3142 = vadd.f32 %v3137, %v1351
  %v3143 = vadd.f32 %v3138, %v1352
  %v3144 = vadd.f32 %v3139, %v1353
  %v3145 = vadd.f32 %v3140, %v1354
  %v3146 = vsel %vm1697, %v3141, -inf
  %3147 = vmax.xlane.f32.xlu0 %v3146
  %v3148 = vpop.xlane.xlu0 %3147
  %v3149 = vsel %vm1697, %v3142, -inf
  %3150 = vmax.xlane.f32.xlu0 %v3149
  %v3151 = vpop.xlane.xlu0 %3150
  %v3152 = vsel %vm1697, %v3143, -inf
  %3153 = vmax.xlane.f32.xlu0 %v3152
  %v3154 = vpop.xlane.xlu0 %3153
  %v3155 = vsel %vm1697, %v3144, -inf
  %3156 = vmax.xlane.f32.xlu0 %v3155
  %v3157 = vpop.xlane.xlu0 %3156
  %v3158 = vsel %vm1710, %v3145, -inf
  %3159 = vmax.xlane.f32.xlu0 %v3158
  %v3160 = vpop.xlane.xlu0 %3159
  %v3161 = vsub.f32 %v3141, %v3148
  %v3162 = vsub.f32 %v3142, %v3151
  %v3163 = vsub.f32 %v3143, %v3154
  %v3164 = vsub.f32 %v3144, %v3157
  %v3165 = vsub.f32 %v3145, %v3160
  %v3166 = vmul.f32 %v3161, 1.442695
  %v3167 = vpow.pop %v3166
  %v3168 = vmul.f32 %v3162, 1.442695
  %v3169 = vpow.pop %v3168
  %v3170 = vmul.f32 %v3163, 1.442695
  %v3171 = vpow.pop %v3170
  %v3172 = vmul.f32 %v3164, 1.442695
  %v3173 = vpow.pop %v3172
  %v3174 = vmul.f32 %v3165, 1.442695
  %v3175 = vpow.pop %v3174
  %v3176 = vsel %vm1697, %v3167, 0.0
  %3177 = vadd.xlane.f32.xlu0 %v3176
  %v3178 = vpop.xlane.xlu0 %3177
  %v3179 = vsel %vm1697, %v3169, 0.0
  %3180 = vadd.xlane.f32.xlu0 %v3179
  %v3181 = vpop.xlane.xlu0 %3180
  %v3182 = vsel %vm1697, %v3171, 0.0
  %3183 = vadd.xlane.f32.xlu0 %v3182
  %v3184 = vpop.xlane.xlu0 %3183
  %v3185 = vsel %vm1697, %v3173, 0.0
  %3186 = vadd.xlane.f32.xlu0 %v3185
  %v3187 = vpop.xlane.xlu0 %3186
  %v3188 = vsel %vm1710, %v3175, 0.0
  %3189 = vadd.xlane.f32.xlu0 %v3188
  %v3190 = vpop.xlane.xlu0 %3189
  %v3191 = vrcp.pop %v3178
  %v3192 = vrcp.pop %v3181
  %v3193 = vrcp.pop %v3184
  %v3194 = vrcp.pop %v3187
  %v3195 = vrcp.pop %v3190
  %v3196 = vmul.f32 %v3167, %v3191
  %v3197 = vmul.f32 %v3169, %v3192
  %v3198 = vmul.f32 %v3171, %v3193
  %v3199 = vmul.f32 %v3173, %v3194
  %v3200 = vmul.f32 %v3175, %v3195
  %3201 = vrot.lane.b32.xlu0 %v2986, 64
  %v3202 = vpop.permute.xlu0 %3201
  %3203 = vrot.lane.b32.xlu0 %v2991, 64
  %v3204 = vpop.permute.xlu0 %3203
  %3205 = vrot.lane.b32.xlu0 %v2996, 64
  %v3206 = vpop.permute.xlu0 %3205
  %3207 = vrot.lane.b32.xlu0 %v3001, 64
  %v3208 = vpop.permute.xlu0 %3207
  %3209 = vrot.lane.b32.xlu0 %v3006, 64
  %v3210 = vpop.permute.xlu0 %3209
  %v3216 = vsel %vm1697, %v3196, 0
  %v3219 = vsel %vm1697, %v3197, 0
  %v3222 = vsel %vm1697, %v3198, 0
  %v3225 = vsel %vm1697, %v3199, 0
  %v3228 = vsel %vm1697, %v3200, 0
  %v3230 = vsel %vm853, %v3210, 0
  %3232 = vmatprep.subr.mxu0 0.0
  %3233 = vmatpush1.msra.mxu0 %v3202
  %3234 = vmatprep.subr.mxu0 0.0
  %3235 = vmatpush1.msra.mxu0 %v3204
  %3236 = vmatprep.subr.mxu0 0.0
  %3237 = vmatpush1.msra.mxu0 %v3206
  %3238 = vmatprep.subr.mxu0 0.0
  %3239 = vmatpush1.msra.mxu0 %v3208
  %3240 = vmatprep.subr.mxu0 0.0
  %3241 = vmatpush1.msra.mxu0 %v3230
  %3242 = vmatprep.subr.mxu0 0.0
  %3243 = vmatpush1.msra.mxu0 0.0
  %3244 = vmatprep.subr.mxu0 0.0
  %3245 = vmatpush1.msra.mxu0 0.0
  %3246 = vmatprep.subr.mxu0 0.0
  %3247 = vmatpush1.msra.mxu0 0.0
  %3248 = vmatprep.subr.mxu0 0.0
  %3249 = vmatpush1.msra.mxu0 0.0
  %3250 = vmatprep.subr.mxu0 0.0
  %3251 = vmatpush1.msra.mxu0 0.0
  %3252 = vmatprep.subr.mxu0 0.0
  %3253 = vmatpush1.msra.mxu0 0.0
  %3254 = vmatprep.subr.mxu0 0.0
  %3255 = vmatpush1.msra.mxu0 0.0
  %3256 = vmatprep.subr.mxu0 0.0
  %3257 = vmatpush1.msra.mxu0 0.0
  %3258 = vmatprep.subr.mxu0 0.0
  %3259 = vmatpush1.msra.mxu0 0.0
  %3260 = vmatprep.subr.mxu0 0.0
  %3261 = vmatpush1.msra.mxu0 0.0
  %3262 = vmatprep.subr.mxu0 0.0
  %3263 = vmatpush1.msra.mxu0 0.0
  %3264 = vmatprep.subr.mxu0 0.0
  %3265 = vmatpush1.msra.mxu0 0.0
  %3266 = vmatprep.subr.mxu0 0.0
  %3267 = vmatpush1.msra.mxu0 0.0
  %3268 = vmatprep.subr.mxu0 0.0
  %3269 = vmatpush1.msra.mxu0 0.0
  %3270 = vmatprep.subr.mxu0 0.0
  %3271 = vmatpush1.msra.mxu0 0.0
  %3272 = vmatprep.subr.mxu0 0.0
  %3273 = vmatpush1.msra.mxu0 0.0
  %3274 = vmatprep.subr.mxu0 0.0
  %3275 = vmatpush1.msra.mxu0 0.0
  %3276 = vmatprep.subr.mxu0 0.0
  %3277 = vmatpush1.msra.mxu0 0.0
  %3278 = vmatprep.subr.mxu0 0.0
  %3279 = vmatpush1.msra.mxu0 0.0
  %3280 = vmatprep.subr.mxu0 0.0
  %3281 = vmatpush1.msra.mxu0 0.0
  %3282 = vmatprep.subr.mxu0 0.0
  %3283 = vmatpush1.msra.mxu0 0.0
  %3284 = vmatprep.subr.mxu0 0.0
  %3285 = vmatpush1.msra.mxu0 0.0
  %3286 = vmatprep.subr.mxu0 0.0
  %3287 = vmatpush1.msra.mxu0 0.0
  %3288 = vmatprep.subr.mxu0 0.0
  %3289 = vmatpush1.msra.mxu0 0.0
  %3290 = vmatprep.subr.mxu0 0.0
  %3291 = vmatpush1.msra.mxu0 0.0
  %3292 = vmatprep.subr.mxu0 0.0
  %3293 = vmatpush1.msra.mxu0 0.0
  %3294 = vmatprep.subr.mxu0 0.0
  %3295 = vmatpush1.msra.mxu0 0.0
  %3296 = vmatprep.mubr.f32.mxu0 0.0
  %3297 = vmatmul.mubr.f32.gmra.mrb[0].mxu0 %v3216
  %v3298 = vpop.f32.mrb[0].mxu0
  %v3299 = vadd.f32 0.0, %v3298
  %v3300 = vpop.f32.mrb[0].mxu0
  %3301 = vmatprep.mubr.f32.mxu0 0.0
  %3302 = vmatmul.mubr.f32.gmra.mrb[0].mxu0 %v3219
  %v3303 = vpop.f32.mrb[0].mxu0
  %v3304 = vadd.f32 0.0, %v3303
  %v3305 = vpop.f32.mrb[0].mxu0
  %3306 = vmatprep.mubr.f32.mxu0 0.0
  %3307 = vmatmul.mubr.f32.gmra.mrb[0].mxu0 %v3222
  %v3308 = vpop.f32.mrb[0].mxu0
  %v3309 = vadd.f32 0.0, %v3308
  %v3310 = vpop.f32.mrb[0].mxu0
  %3311 = vmatprep.mubr.f32.mxu0 0.0
  %3312 = vmatmul.mubr.f32.gmra.mrb[0].mxu0 %v3225
  %v3313 = vpop.f32.mrb[0].mxu0
  %v3314 = vadd.f32 0.0, %v3313
  %v3315 = vpop.f32.mrb[0].mxu0
  %3316 = vmatprep.mubr.f32.mxu0 0.0
  %3317 = vmatmul.mubr.f32.gmra.mrb[0].mxu0 %v3228
  %v3318 = vpop.f32.mrb[0].mxu0
  %v3319 = vadd.f32 0.0, %v3318
  %v3320 = vpop.f32.mrb[0].mxu0
  %3321 = vdwg.mxu0
  %s3322 = scalar_lea.vmem %s41, 32
  %v3323 = vld [vmem:[%s3322] sm:$0xff]
  %v3324 = vld [vmem:[%s3322 + $0x8] sm:$0xff]
  %v3326 = vsel %vm151, %v3299, 0
  %v3329 = vsel %vm151, %v3304, 0
  %v3332 = vsel %vm151, %v3309, 0
  %v3335 = vsel %vm151, %v3314, 0
  %v3338 = vsel %vm151, %v3319, 0
  %3340 = vmatprep.subr.mxu0 0.0
  %3341 = vmatpush1.msra.mxu0 %v3323
  %3342 = vmatprep.subr.mxu0 0.0
  %3343 = vmatpush1.msra.mxu0 %v3324
  %3344 = vmatprep.subr.mxu0 0.0
  %3345 = vmatpush1.msra.mxu0 0.0
  %3346 = vmatprep.subr.mxu0 0.0
  %3347 = vmatpush1.msra.mxu0 0.0
  %3348 = vmatprep.subr.mxu0 0.0
  %3349 = vmatpush1.msra.mxu0 0.0
  %3350 = vmatprep.subr.mxu0 0.0
  %3351 = vmatpush1.msra.mxu0 0.0
  %3352 = vmatprep.subr.mxu0 0.0
  %3353 = vmatpush1.msra.mxu0 0.0
  %3354 = vmatprep.subr.mxu0 0.0
  %3355 = vmatpush1.msra.mxu0 0.0
  %3356 = vmatprep.subr.mxu0 0.0
  %3357 = vmatpush1.msra.mxu0 0.0
  %3358 = vmatprep.subr.mxu0 0.0
  %3359 = vmatpush1.msra.mxu0 0.0
  %3360 = vmatprep.subr.mxu0 0.0
  %3361 = vmatpush1.msra.mxu0 0.0
  %3362 = vmatprep.subr.mxu0 0.0
  %3363 = vmatpush1.msra.mxu0 0.0
  %3364 = vmatprep.subr.mxu0 0.0
  %3365 = vmatpush1.msra.mxu0 0.0
  %3366 = vmatprep.subr.mxu0 0.0
  %3367 = vmatpush1.msra.mxu0 0.0
  %3368 = vmatprep.subr.mxu0 0.0
  %3369 = vmatpush1.msra.mxu0 0.0
  %3370 = vmatprep.subr.mxu0 0.0
  %3371 = vmatpush1.msra.mxu0 0.0
  %3372 = vmatprep.subr.mxu0 0.0
  %3373 = vmatpush1.msra.mxu0 0.0
  %3374 = vmatprep.subr.mxu0 0.0
  %3375 = vmatpush1.msra.mxu0 0.0
  %3376 = vmatprep.subr.mxu0 0.0
  %3377 = vmatpush1.msra.mxu0 0.0
  %3378 = vmatprep.subr.mxu0 0.0
  %3379 = vmatpush1.msra.mxu0 0.0
  %3380 = vmatprep.subr.mxu0 0.0
  %3381 = vmatpush1.msra.mxu0 0.0
  %3382 = vmatprep.subr.mxu0 0.0
  %3383 = vmatpush1.msra.mxu0 0.0
  %3384 = vmatprep.subr.mxu0 0.0
  %3385 = vmatpush1.msra.mxu0 0.0
  %3386 = vmatprep.subr.mxu0 0.0
  %3387 = vmatpush1.msra.mxu0 0.0
  %3388 = vmatprep.subr.mxu0 0.0
  %3389 = vmatpush1.msra.mxu0 0.0
  %3390 = vmatprep.subr.mxu0 0.0
  %3391 = vmatpush1.msra.mxu0 0.0
  %3392 = vmatprep.subr.mxu0 0.0
  %3393 = vmatpush1.msra.mxu0 0.0
  %3394 = vmatprep.subr.mxu0 0.0
  %3395 = vmatpush1.msra.mxu0 0.0
  %3396 = vmatprep.subr.mxu0 0.0
  %3397 = vmatpush1.msra.mxu0 0.0
  %3398 = vmatprep.subr.mxu0 0.0
  %3399 = vmatpush1.msra.mxu0 0.0
  %3400 = vmatprep.subr.mxu0 0.0
  %3401 = vmatpush1.msra.mxu0 0.0
  %3402 = vmatprep.subr.mxu0 0.0
  %3403 = vmatpush1.msra.mxu0 0.0
  %3404 = vmatprep.mubr.f32.mxu0 0.0
  %3405 = vmatmul.mubr.f32.gmra.mrb[0].mxu0 %v3326
  %v3406 = vpop.f32.mrb[0].mxu0
  %v3407 = vadd.f32 0.0, %v3406
  %v3408 = vpop.f32.mrb[0].mxu0
  %3409 = vmatprep.mubr.f32.mxu0 0.0
  %3410 = vmatmul.mubr.f32.gmra.mrb[0].mxu0 %v3329
  %v3411 = vpop.f32.mrb[0].mxu0
  %v3412 = vadd.f32 0.0, %v3411
  %v3413 = vpop.f32.mrb[0].mxu0
  %3414 = vmatprep.mubr.f32.mxu0 0.0
  %3415 = vmatmul.mubr.f32.gmra.mrb[0].mxu0 %v3332
  %v3416 = vpop.f32.mrb[0].mxu0
  %v3417 = vadd.f32 0.0, %v3416
  %v3418 = vpop.f32.mrb[0].mxu0
  %3419 = vmatprep.mubr.f32.mxu0 0.0
  %3420 = vmatmul.mubr.f32.gmra.mrb[0].mxu0 %v3335
  %v3421 = vpop.f32.mrb[0].mxu0
  %v3422 = vadd.f32 0.0, %v3421
  %v3423 = vpop.f32.mrb[0].mxu0
  %3424 = vmatprep.mubr.f32.mxu0 0.0
  %3425 = vmatmul.mubr.f32.gmra.mrb[0].mxu0 %v3338
  %v3426 = vpop.f32.mrb[0].mxu0
  %v3427 = vadd.f32 0.0, %v3426
  %v3428 = vpop.f32.mrb[0].mxu0
  %3429 = vdwg.mxu0
  %v3431 = vlaneseq
  %v3432 = vshrl.u32 %v3431, 7
  %v3433 = vsub.s32 0, %v3432
  %v3434 = vrot.slane %v3010, %v3433
  %v3436 = vadd.f32 %v3434, %v3407
  %v3437 = vadd.f32 %v3434, %v3412
  %v3438 = vadd.f32 %v3434, %v3417
  %v3439 = vadd.f32 %v3434, %v3422
  %v3440 = vadd.f32 %v3434, %v3427
  %3441 = vrot.lane.b32.xlu0 %v2986, 112
  %v3442 = vpop.permute.xlu0 %3441
  %3443 = vrot.lane.b32.xlu0 %v2991, 112
  %v3444 = vpop.permute.xlu0 %3443
  %3445 = vrot.lane.b32.xlu0 %v2996, 112
  %v3446 = vpop.permute.xlu0 %3445
  %3447 = vrot.lane.b32.xlu0 %v3001, 112
  %v3448 = vpop.permute.xlu0 %3447
  %3449 = vrot.lane.b32.xlu0 %v3006, 112
  %v3450 = vpop.permute.xlu0 %3449
  %3451 = vrot.lane.b32.xlu0 %v2986, 80
  %v3452 = vpop.permute.xlu0 %3451
  %3453 = vrot.lane.b32.xlu0 %v2991, 80
  %v3454 = vpop.permute.xlu0 %3453
  %3455 = vrot.lane.b32.xlu0 %v2996, 80
  %v3456 = vpop.permute.xlu0 %3455
  %3457 = vrot.lane.b32.xlu0 %v3001, 80
  %v3458 = vpop.permute.xlu0 %3457
  %3459 = vrot.lane.b32.xlu0 %v3006, 80
  %v3460 = vpop.permute.xlu0 %3459
  %v3461 = vsel %vm151, %v3442, 0
  %v3463 = vsel %vm151, %v3444, 0
  %v3465 = vsel %vm151, %v3446, 0
  %v3467 = vsel %vm151, %v3448, 0
  %v3469 = vsel %vm151, %v3450, 0
  %v3471 = vsel %vm151, %v3452, 0
  %v3473 = vsel %vm151, %v3454, 0
  %v3475 = vsel %vm151, %v3456, 0
  %v3477 = vsel %vm151, %v3458, 0
  %v3479 = vsel %vm151, %v3460, 0
  %3481 = vmatprep.subr.mxu0 0.0
  %3482 = vmatpush1.xpose.msra.mxu0 %v3471
  %3483 = vmatprep.subr.mxu0 0.0
  %3484 = vmatpush1.xpose.msra.mxu0 %v3473
  %3485 = vmatprep.subr.mxu0 0.0
  %3486 = vmatpush1.xpose.msra.mxu0 %v3475
  %3487 = vmatprep.subr.mxu0 0.0
  %3488 = vmatpush1.xpose.msra.mxu0 %v3477
  %3489 = vmatprep.subr.mxu0 0.0
  %3490 = vmatpush1.xpose.msra.mxu0 %v3479
  %3491 = vmatprep.subr.mxu0 0.0
  %3492 = vmatpush1.xpose.msra.mxu0 0.0
  %3493 = vmatprep.subr.mxu0 0.0
  %3494 = vmatpush1.xpose.msra.mxu0 0.0
  %3495 = vmatprep.subr.mxu0 0.0
  %3496 = vmatpush1.xpose.msra.mxu0 0.0
  %3497 = vmatprep.subr.mxu0 0.0
  %3498 = vmatpush1.xpose.msra.mxu0 0.0
  %3499 = vmatprep.subr.mxu0 0.0
  %3500 = vmatpush1.xpose.msra.mxu0 0.0
  %3501 = vmatprep.subr.mxu0 0.0
  %3502 = vmatpush1.xpose.msra.mxu0 0.0
  %3503 = vmatprep.subr.mxu0 0.0
  %3504 = vmatpush1.xpose.msra.mxu0 0.0
  %3505 = vmatprep.subr.mxu0 0.0
  %3506 = vmatpush1.xpose.msra.mxu0 0.0
  %3507 = vmatprep.subr.mxu0 0.0
  %3508 = vmatpush1.xpose.msra.mxu0 0.0
  %3509 = vmatprep.subr.mxu0 0.0
  %3510 = vmatpush1.xpose.msra.mxu0 0.0
  %3511 = vmatprep.subr.mxu0 0.0
  %3512 = vmatpush1.xpose.msra.mxu0 0.0
  %3513 = vmatprep.subr.mxu0 0.0
  %3514 = vmatpush1.xpose.msra.mxu0 0.0
  %3515 = vmatprep.subr.mxu0 0.0
  %3516 = vmatpush1.xpose.msra.mxu0 0.0
  %3517 = vmatprep.subr.mxu0 0.0
  %3518 = vmatpush1.xpose.msra.mxu0 0.0
  %3519 = vmatprep.subr.mxu0 0.0
  %3520 = vmatpush1.xpose.msra.mxu0 0.0
  %3521 = vmatprep.subr.mxu0 0.0
  %3522 = vmatpush1.xpose.msra.mxu0 0.0
  %3523 = vmatprep.subr.mxu0 0.0
  %3524 = vmatpush1.xpose.msra.mxu0 0.0
  %3525 = vmatprep.subr.mxu0 0.0
  %3526 = vmatpush1.xpose.msra.mxu0 0.0
  %3527 = vmatprep.subr.mxu0 0.0
  %3528 = vmatpush1.xpose.msra.mxu0 0.0
  %3529 = vmatprep.subr.mxu0 0.0
  %3530 = vmatpush1.xpose.msra.mxu0 0.0
  %3531 = vmatprep.subr.mxu0 0.0
  %3532 = vmatpush1.xpose.msra.mxu0 0.0
  %3533 = vmatprep.subr.mxu0 0.0
  %3534 = vmatpush1.xpose.msra.mxu0 0.0
  %3535 = vmatprep.subr.mxu0 0.0
  %3536 = vmatpush1.xpose.msra.mxu0 0.0
  %3537 = vmatprep.subr.mxu0 0.0
  %3538 = vmatpush1.xpose.msra.mxu0 0.0
  %3539 = vmatprep.subr.mxu0 0.0
  %3540 = vmatpush1.xpose.msra.mxu0 0.0
  %3541 = vmatprep.subr.mxu0 0.0
  %3542 = vmatpush1.xpose.msra.mxu0 0.0
  %3543 = vmatprep.subr.mxu0 0.0
  %3544 = vmatpush1.xpose.msra.mxu0 0.0
  %3545 = vmatprep.mubr.f32.mxu0 0.0
  %3546 = vmatmul.mubr.f32.gmra.mrb[0].mxu0 %v3461
  %v3547 = vpop.f32.mrb[0].mxu0
  %v3548 = vadd.f32 0.0, %v3547
  %v3549 = vpop.f32.mrb[0].mxu0
  %3550 = vmatprep.mubr.f32.mxu0 0.0
  %3551 = vmatmul.mubr.f32.gmra.mrb[0].mxu0 %v3463
  %v3552 = vpop.f32.mrb[0].mxu0
  %v3553 = vadd.f32 0.0, %v3552
  %v3554 = vpop.f32.mrb[0].mxu0
  %3555 = vmatprep.mubr.f32.mxu0 0.0
  %3556 = vmatmul.mubr.f32.gmra.mrb[0].mxu0 %v3465
  %v3557 = vpop.f32.mrb[0].mxu0
  %v3558 = vadd.f32 0.0, %v3557
  %v3559 = vpop.f32.mrb[0].mxu0
  %3560 = vmatprep.mubr.f32.mxu0 0.0
  %3561 = vmatmul.mubr.f32.gmra.mrb[0].mxu0 %v3467
  %v3562 = vpop.f32.mrb[0].mxu0
  %v3563 = vadd.f32 0.0, %v3562
  %v3564 = vpop.f32.mrb[0].mxu0
  %3565 = vmatprep.mubr.f32.mxu0 0.0
  %3566 = vmatmul.mubr.f32.gmra.mrb[0].mxu0 %v3469
  %v3567 = vpop.f32.mrb[0].mxu0
  %v3568 = vadd.f32 0.0, %v3567
  %v3569 = vpop.f32.mrb[0].mxu0
  %3570 = vdwg.mxu0
  %v3571 = vmul.f32 %v3548, 0.25
  %v3572 = vmul.f32 %v3553, 0.25
  %v3573 = vmul.f32 %v3558, 0.25
  %v3574 = vmul.f32 %v3563, 0.25
  %v3575 = vmul.f32 %v3568, 0.25
  %v3576 = vadd.f32 %v3571, %v1350
  %v3577 = vadd.f32 %v3572, %v1351
  %v3578 = vadd.f32 %v3573, %v1352
  %v3579 = vadd.f32 %v3574, %v1353
  %v3580 = vadd.f32 %v3575, %v1354
  %v3581 = vsel %vm1697, %v3576, -inf
  %3582 = vmax.xlane.f32.xlu0 %v3581
  %v3583 = vpop.xlane.xlu0 %3582
  %v3584 = vsel %vm1697, %v3577, -inf
  %3585 = vmax.xlane.f32.xlu0 %v3584
  %v3586 = vpop.xlane.xlu0 %3585
  %v3587 = vsel %vm1697, %v3578, -inf
  %3588 = vmax.xlane.f32.xlu0 %v3587
  %v3589 = vpop.xlane.xlu0 %3588
  %v3590 = vsel %vm1697, %v3579, -inf
  %3591 = vmax.xlane.f32.xlu0 %v3590
  %v3592 = vpop.xlane.xlu0 %3591
  %v3593 = vsel %vm1710, %v3580, -inf
  %3594 = vmax.xlane.f32.xlu0 %v3593
  %v3595 = vpop.xlane.xlu0 %3594
  %v3596 = vsub.f32 %v3576, %v3583
  %v3597 = vsub.f32 %v3577, %v3586
  %v3598 = vsub.f32 %v3578, %v3589
  %v3599 = vsub.f32 %v3579, %v3592
  %v3600 = vsub.f32 %v3580, %v3595
  %v3601 = vmul.f32 %v3596, 1.442695
  %v3602 = vpow.pop %v3601
  %v3603 = vmul.f32 %v3597, 1.442695
  %v3604 = vpow.pop %v3603
  %v3605 = vmul.f32 %v3598, 1.442695
  %v3606 = vpow.pop %v3605
  %v3607 = vmul.f32 %v3599, 1.442695
  %v3608 = vpow.pop %v3607
  %v3609 = vmul.f32 %v3600, 1.442695
  %v3610 = vpow.pop %v3609
  %v3611 = vsel %vm1697, %v3602, 0.0
  %3612 = vadd.xlane.f32.xlu0 %v3611
  %v3613 = vpop.xlane.xlu0 %3612
  %v3614 = vsel %vm1697, %v3604, 0.0
  %3615 = vadd.xlane.f32.xlu0 %v3614
  %v3616 = vpop.xlane.xlu0 %3615
  %v3617 = vsel %vm1697, %v3606, 0.0
  %3618 = vadd.xlane.f32.xlu0 %v3617
  %v3619 = vpop.xlane.xlu0 %3618
  %v3620 = vsel %vm1697, %v3608, 0.0
  %3621 = vadd.xlane.f32.xlu0 %v3620
  %v3622 = vpop.xlane.xlu0 %3621
  %v3623 = vsel %vm1710, %v3610, 0.0
  %3624 = vadd.xlane.f32.xlu0 %v3623
  %v3625 = vpop.xlane.xlu0 %3624
  %v3626 = vrcp.pop %v3613
  %v3627 = vrcp.pop %v3616
  %v3628 = vrcp.pop %v3619
  %v3629 = vrcp.pop %v3622
  %v3630 = vrcp.pop %v3625
  %v3631 = vmul.f32 %v3602, %v3626
  %v3632 = vmul.f32 %v3604, %v3627
  %v3633 = vmul.f32 %v3606, %v3628
  %v3634 = vmul.f32 %v3608, %v3629
  %v3635 = vmul.f32 %v3610, %v3630
  %3636 = vrot.lane.b32.xlu0 %v2986, 48
  %v3637 = vpop.permute.xlu0 %3636
  %3638 = vrot.lane.b32.xlu0 %v2991, 48
  %v3639 = vpop.permute.xlu0 %3638
  %3640 = vrot.lane.b32.xlu0 %v2996, 48
  %v3641 = vpop.permute.xlu0 %3640
  %3642 = vrot.lane.b32.xlu0 %v3001, 48
  %v3643 = vpop.permute.xlu0 %3642
  %3644 = vrot.lane.b32.xlu0 %v3006, 48
  %v3645 = vpop.permute.xlu0 %3644
  %v3651 = vsel %vm1697, %v3631, 0
  %v3654 = vsel %vm1697, %v3632, 0
  %v3657 = vsel %vm1697, %v3633, 0
  %v3660 = vsel %vm1697, %v3634, 0
  %v3663 = vsel %vm1697, %v3635, 0
  %v3665 = vsel %vm853, %v3645, 0
  %3667 = vmatprep.subr.mxu0 0.0
  %3668 = vmatpush1.msra.mxu0 %v3637
  %3669 = vmatprep.subr.mxu0 0.0
  %3670 = vmatpush1.msra.mxu0 %v3639
  %3671 = vmatprep.subr.mxu0 0.0
  %3672 = vmatpush1.msra.mxu0 %v3641
  %3673 = vmatprep.subr.mxu0 0.0
  %3674 = vmatpush1.msra.mxu0 %v3643
  %3675 = vmatprep.subr.mxu0 0.0
  %3676 = vmatpush1.msra.mxu0 %v3665
  %3677 = vmatprep.subr.mxu0 0.0
  %3678 = vmatpush1.msra.mxu0 0.0
  %3679 = vmatprep.subr.mxu0 0.0
  %3680 = vmatpush1.msra.mxu0 0.0
  %3681 = vmatprep.subr.mxu0 0.0
  %3682 = vmatpush1.msra.mxu0 0.0
  %3683 = vmatprep.subr.mxu0 0.0
  %3684 = vmatpush1.msra.mxu0 0.0
  %3685 = vmatprep.subr.mxu0 0.0
  %3686 = vmatpush1.msra.mxu0 0.0
  %3687 = vmatprep.subr.mxu0 0.0
  %3688 = vmatpush1.msra.mxu0 0.0
  %3689 = vmatprep.subr.mxu0 0.0
  %3690 = vmatpush1.msra.mxu0 0.0
  %3691 = vmatprep.subr.mxu0 0.0
  %3692 = vmatpush1.msra.mxu0 0.0
  %3693 = vmatprep.subr.mxu0 0.0
  %3694 = vmatpush1.msra.mxu0 0.0
  %3695 = vmatprep.subr.mxu0 0.0
  %3696 = vmatpush1.msra.mxu0 0.0
  %3697 = vmatprep.subr.mxu0 0.0
  %3698 = vmatpush1.msra.mxu0 0.0
  %3699 = vmatprep.subr.mxu0 0.0
  %3700 = vmatpush1.msra.mxu0 0.0
  %3701 = vmatprep.subr.mxu0 0.0
  %3702 = vmatpush1.msra.mxu0 0.0
  %3703 = vmatprep.subr.mxu0 0.0
  %3704 = vmatpush1.msra.mxu0 0.0
  %3705 = vmatprep.subr.mxu0 0.0
  %3706 = vmatpush1.msra.mxu0 0.0
  %3707 = vmatprep.subr.mxu0 0.0
  %3708 = vmatpush1.msra.mxu0 0.0
  %3709 = vmatprep.subr.mxu0 0.0
  %3710 = vmatpush1.msra.mxu0 0.0
  %3711 = vmatprep.subr.mxu0 0.0
  %3712 = vmatpush1.msra.mxu0 0.0
  %3713 = vmatprep.subr.mxu0 0.0
  %3714 = vmatpush1.msra.mxu0 0.0
  %3715 = vmatprep.subr.mxu0 0.0
  %3716 = vmatpush1.msra.mxu0 0.0
  %3717 = vmatprep.subr.mxu0 0.0
  %3718 = vmatpush1.msra.mxu0 0.0
  %3719 = vmatprep.subr.mxu0 0.0
  %3720 = vmatpush1.msra.mxu0 0.0
  %3721 = vmatprep.subr.mxu0 0.0
  %3722 = vmatpush1.msra.mxu0 0.0
  %3723 = vmatprep.subr.mxu0 0.0
  %3724 = vmatpush1.msra.mxu0 0.0
  %3725 = vmatprep.subr.mxu0 0.0
  %3726 = vmatpush1.msra.mxu0 0.0
  %3727 = vmatprep.subr.mxu0 0.0
  %3728 = vmatpush1.msra.mxu0 0.0
  %3729 = vmatprep.subr.mxu0 0.0
  %3730 = vmatpush1.msra.mxu0 0.0
  %3731 = vmatprep.mubr.f32.mxu0 0.0
  %3732 = vmatmul.mubr.f32.gmra.mrb[0].mxu0 %v3651
  %v3733 = vpop.f32.mrb[0].mxu0
  %v3734 = vadd.f32 0.0, %v3733
  %v3735 = vpop.f32.mrb[0].mxu0
  %3736 = vmatprep.mubr.f32.mxu0 0.0
  %3737 = vmatmul.mubr.f32.gmra.mrb[0].mxu0 %v3654
  %v3738 = vpop.f32.mrb[0].mxu0
  %v3739 = vadd.f32 0.0, %v3738
  %v3740 = vpop.f32.mrb[0].mxu0
  %3741 = vmatprep.mubr.f32.mxu0 0.0
  %3742 = vmatmul.mubr.f32.gmra.mrb[0].mxu0 %v3657
  %v3743 = vpop.f32.mrb[0].mxu0
  %v3744 = vadd.f32 0.0, %v3743
  %v3745 = vpop.f32.mrb[0].mxu0
  %3746 = vmatprep.mubr.f32.mxu0 0.0
  %3747 = vmatmul.mubr.f32.gmra.mrb[0].mxu0 %v3660
  %v3748 = vpop.f32.mrb[0].mxu0
  %v3749 = vadd.f32 0.0, %v3748
  %v3750 = vpop.f32.mrb[0].mxu0
  %3751 = vmatprep.mubr.f32.mxu0 0.0
  %3752 = vmatmul.mubr.f32.gmra.mrb[0].mxu0 %v3663
  %v3753 = vpop.f32.mrb[0].mxu0
  %v3754 = vadd.f32 0.0, %v3753
  %v3755 = vpop.f32.mrb[0].mxu0
  %3756 = vdwg.mxu0
  %s3757 = scalar_lea.vmem %s41, 48
  %v3758 = vld [vmem:[%s3757] sm:$0xff]
  %v3759 = vld [vmem:[%s3757 + $0x8] sm:$0xff]
  %v3761 = vsel %vm151, %v3734, 0
  %v3764 = vsel %vm151, %v3739, 0
  %v3767 = vsel %vm151, %v3744, 0
  %v3770 = vsel %vm151, %v3749, 0
  %v3773 = vsel %vm151, %v3754, 0
  %3775 = vmatprep.subr.mxu0 0.0
  %3776 = vmatpush1.msra.mxu0 %v3758
  %3777 = vmatprep.subr.mxu0 0.0
  %3778 = vmatpush1.msra.mxu0 %v3759
  %3779 = vmatprep.subr.mxu0 0.0
  %3780 = vmatpush1.msra.mxu0 0.0
  %3781 = vmatprep.subr.mxu0 0.0
  %3782 = vmatpush1.msra.mxu0 0.0
  %3783 = vmatprep.subr.mxu0 0.0
  %3784 = vmatpush1.msra.mxu0 0.0
  %3785 = vmatprep.subr.mxu0 0.0
  %3786 = vmatpush1.msra.mxu0 0.0
  %3787 = vmatprep.subr.mxu0 0.0
  %3788 = vmatpush1.msra.mxu0 0.0
  %3789 = vmatprep.subr.mxu0 0.0
  %3790 = vmatpush1.msra.mxu0 0.0
  %3791 = vmatprep.subr.mxu0 0.0
  %3792 = vmatpush1.msra.mxu0 0.0
  %3793 = vmatprep.subr.mxu0 0.0
  %3794 = vmatpush1.msra.mxu0 0.0
  %3795 = vmatprep.subr.mxu0 0.0
  %3796 = vmatpush1.msra.mxu0 0.0
  %3797 = vmatprep.subr.mxu0 0.0
  %3798 = vmatpush1.msra.mxu0 0.0
  %3799 = vmatprep.subr.mxu0 0.0
  %3800 = vmatpush1.msra.mxu0 0.0
  %3801 = vmatprep.subr.mxu0 0.0
  %3802 = vmatpush1.msra.mxu0 0.0
  %3803 = vmatprep.subr.mxu0 0.0
  %3804 = vmatpush1.msra.mxu0 0.0
  %3805 = vmatprep.subr.mxu0 0.0
  %3806 = vmatpush1.msra.mxu0 0.0
  %3807 = vmatprep.subr.mxu0 0.0
  %3808 = vmatpush1.msra.mxu0 0.0
  %3809 = vmatprep.subr.mxu0 0.0
  %3810 = vmatpush1.msra.mxu0 0.0
  %3811 = vmatprep.subr.mxu0 0.0
  %3812 = vmatpush1.msra.mxu0 0.0
  %3813 = vmatprep.subr.mxu0 0.0
  %3814 = vmatpush1.msra.mxu0 0.0
  %3815 = vmatprep.subr.mxu0 0.0
  %3816 = vmatpush1.msra.mxu0 0.0
  %3817 = vmatprep.subr.mxu0 0.0
  %3818 = vmatpush1.msra.mxu0 0.0
  %3819 = vmatprep.subr.mxu0 0.0
  %3820 = vmatpush1.msra.mxu0 0.0
  %3821 = vmatprep.subr.mxu0 0.0
  %3822 = vmatpush1.msra.mxu0 0.0
  %3823 = vmatprep.subr.mxu0 0.0
  %3824 = vmatpush1.msra.mxu0 0.0
  %3825 = vmatprep.subr.mxu0 0.0
  %3826 = vmatpush1.msra.mxu0 0.0
  %3827 = vmatprep.subr.mxu0 0.0
  %3828 = vmatpush1.msra.mxu0 0.0
  %3829 = vmatprep.subr.mxu0 0.0
  %3830 = vmatpush1.msra.mxu0 0.0
  %3831 = vmatprep.subr.mxu0 0.0
  %3832 = vmatpush1.msra.mxu0 0.0
  %3833 = vmatprep.subr.mxu0 0.0
  %3834 = vmatpush1.msra.mxu0 0.0
  %3835 = vmatprep.subr.mxu0 0.0
  %3836 = vmatpush1.msra.mxu0 0.0
  %3837 = vmatprep.subr.mxu0 0.0
  %3838 = vmatpush1.msra.mxu0 0.0
  %3839 = vmatprep.mubr.f32.mxu0 0.0
  %3840 = vmatmul.mubr.f32.gmra.mrb[0].mxu0 %v3761
  %v3841 = vpop.f32.mrb[0].mxu0
  %v3842 = vadd.f32 0.0, %v3841
  %v3843 = vpop.f32.mrb[0].mxu0
  %3844 = vmatprep.mubr.f32.mxu0 0.0
  %3845 = vmatmul.mubr.f32.gmra.mrb[0].mxu0 %v3764
  %v3846 = vpop.f32.mrb[0].mxu0
  %v3847 = vadd.f32 0.0, %v3846
  %v3848 = vpop.f32.mrb[0].mxu0
  %3849 = vmatprep.mubr.f32.mxu0 0.0
  %3850 = vmatmul.mubr.f32.gmra.mrb[0].mxu0 %v3767
  %v3851 = vpop.f32.mrb[0].mxu0
  %v3852 = vadd.f32 0.0, %v3851
  %v3853 = vpop.f32.mrb[0].mxu0
  %3854 = vmatprep.mubr.f32.mxu0 0.0
  %3855 = vmatmul.mubr.f32.gmra.mrb[0].mxu0 %v3770
  %v3856 = vpop.f32.mrb[0].mxu0
  %v3857 = vadd.f32 0.0, %v3856
  %v3858 = vpop.f32.mrb[0].mxu0
  %3859 = vmatprep.mubr.f32.mxu0 0.0
  %3860 = vmatmul.mubr.f32.gmra.mrb[0].mxu0 %v3773
  %v3861 = vpop.f32.mrb[0].mxu0
  %v3862 = vadd.f32 0.0, %v3861
  %v3863 = vpop.f32.mrb[0].mxu0
  %3864 = vdwg.mxu0
  %v3865 = vadd.f32 %v3436, %v3842
  %v3866 = vadd.f32 %v3437, %v3847
  %v3867 = vadd.f32 %v3438, %v3852
  %v3868 = vadd.f32 %v3439, %v3857
  %v3869 = vadd.f32 %v3440, %v3862
  %v3870 = vadd.f32 %v2795, %v3865
  %v3871 = vadd.f32 %v2796, %v3866
  %v3872 = vadd.f32 %v2797, %v3867
  %v3873 = vadd.f32 %v2798, %v3868
  %v3874 = vadd.f32 %v2799, %v3869
  %s3875 = scalar_lea.vmem %s45, 1
  %v3876 = vld [vmem:[%s3875] sm:$0x1]
  %s3877 = scalar_lea.vmem %s47, 1
  %v3878 = vld [vmem:[%s3877] sm:$0x1]
  %v3879 = vsel %vm251, %v3870, 0.0
  %3880 = vadd.xlane.f32.xlu0 %v3879
  %v3881 = vpop.xlane.xlu0 %3880
  %v3882 = vsel %vm251, %v3871, 0.0
  %3883 = vadd.xlane.f32.xlu0 %v3882
  %v3884 = vpop.xlane.xlu0 %3883
  %v3885 = vsel %vm251, %v3872, 0.0
  %3886 = vadd.xlane.f32.xlu0 %v3885
  %v3887 = vpop.xlane.xlu0 %3886
  %v3888 = vsel %vm251, %v3873, 0.0
  %3889 = vadd.xlane.f32.xlu0 %v3888
  %v3890 = vpop.xlane.xlu0 %3889
  %v3891 = vsel %vm1369, %v3874, 0.0
  %3892 = vadd.xlane.f32.xlu0 %v3891
  %v3893 = vpop.xlane.xlu0 %3892
  %v3894 = vmul.f32 %v3881, %v264
  %v3895 = vmul.f32 %v3884, %v264
  %v3896 = vmul.f32 %v3887, %v264
  %v3897 = vmul.f32 %v3890, %v264
  %v3898 = vmul.f32 %v3893, %v264
  %v3899 = vsub.f32 %v3870, %v3894
  %v3900 = vsub.f32 %v3871, %v3895
  %v3901 = vsub.f32 %v3872, %v3896
  %v3902 = vsub.f32 %v3873, %v3897
  %v3903 = vsub.f32 %v3874, %v3898
  %v3904 = vmul.f32 %v3899, %v3899
  %v3905 = vmul.f32 %v3900, %v3900
  %v3906 = vmul.f32 %v3901, %v3901
  %v3907 = vmul.f32 %v3902, %v3902
  %v3908 = vmul.f32 %v3903, %v3903
  %v3909 = vsel %vm251, %v3904, 0.0
  %3910 = vadd.xlane.f32.xlu0 %v3909
  %v3911 = vpop.xlane.xlu0 %3910
  %v3912 = vsel %vm251, %v3905, 0.0
  %3913 = vadd.xlane.f32.xlu0 %v3912
  %v3914 = vpop.xlane.xlu0 %3913
  %v3915 = vsel %vm251, %v3906, 0.0
  %3916 = vadd.xlane.f32.xlu0 %v3915
  %v3917 = vpop.xlane.xlu0 %3916
  %v3918 = vsel %vm251, %v3907, 0.0
  %3919 = vadd.xlane.f32.xlu0 %v3918
  %v3920 = vpop.xlane.xlu0 %3919
  %v3921 = vsel %vm1369, %v3908, 0.0
  %3922 = vadd.xlane.f32.xlu0 %v3921
  %v3923 = vpop.xlane.xlu0 %3922
  %v3924 = vmul.f32 %v3911, %v264
  %v3925 = vmul.f32 %v3914, %v264
  %v3926 = vmul.f32 %v3917, %v264
  %v3927 = vmul.f32 %v3920, %v264
  %v3928 = vmul.f32 %v3923, %v264
  %v3929 = vadd.f32 %v3924, 1e-06
  %v3930 = vadd.f32 %v3925, 1e-06
  %v3931 = vadd.f32 %v3926, 1e-06
  %v3932 = vadd.f32 %v3927, 1e-06
  %v3933 = vadd.f32 %v3928, 1e-06
  %v3934 = vrsqrt.pop %v3929
  %v3935 = vrsqrt.pop %v3930
  %v3936 = vrsqrt.pop %v3931
  %v3937 = vrsqrt.pop %v3932
  %v3938 = vrsqrt.pop %v3933
  %v3939 = vmul.f32 %v3899, %v3934
  %v3940 = vmul.f32 %v3900, %v3935
  %v3941 = vmul.f32 %v3901, %v3936
  %v3942 = vmul.f32 %v3902, %v3937
  %v3943 = vmul.f32 %v3903, %v3938
  %v3945 = vlaneseq
  %v3946 = vshrl.u32 %v3945, 7
  %v3947 = vsub.s32 0, %v3946
  %v3948 = vrot.slane %v3876, %v3947
  %v3950 = vmul.f32 %v3939, %v3948
  %v3951 = vmul.f32 %v3940, %v3948
  %v3952 = vmul.f32 %v3941, %v3948
  %v3953 = vmul.f32 %v3942, %v3948
  %v3954 = vmul.f32 %v3943, %v3948
  %v3956 = vlaneseq
  %v3957 = vshrl.u32 %v3956, 7
  %v3958 = vsub.s32 0, %v3957
  %v3959 = vrot.slane %v3878, %v3958
  %v3961 = vadd.f32 %v3950, %v3959
  %v3962 = vadd.f32 %v3951, %v3959
  %v3963 = vadd.f32 %v3952, %v3959
  %v3964 = vadd.f32 %v3953, %v3959
  %v3965 = vadd.f32 %v3954, %v3959
  %s3966 = scalar_lea.vmem %s49, 32
  %v3967 = vld [vmem:[%s3966] sm:$0xff]
  %v3968 = vld [vmem:[%s3966 + $0x8] sm:$0xff]
  %v3969 = vld [vmem:[%s3966 + $0x10] sm:$0xff]
  %v3970 = vld [vmem:[%s3966 + $0x18] sm:$0xff]
  %s3971 = scalar_lea.vmem %s51, 1
  %v3972 = vld [vmem:[%s3971] sm:$0x1]
  %v3974 = vlaneseq
  %v3975 = vshrl.u32 %v3974, 7
  %v3976 = vsub.s32 0, %v3975
  %v3977 = vrot.slane %v3972, %v3976
  %v3980 = vsel %vm251, %v3961, 0
  %v3983 = vsel %vm251, %v3962, 0
  %v3986 = vsel %vm251, %v3963, 0
  %v3989 = vsel %vm251, %v3964, 0
  %v3992 = vsel %vm251, %v3965, 0
  %3994 = vmatprep.subr.mxu0 0.0
  %3995 = vmatpush1.msra.mxu0 %v3967
  %3996 = vmatprep.subr.mxu0 0.0
  %3997 = vmatpush1.msra.mxu0 %v3968
  %3998 = vmatprep.subr.mxu0 0.0
  %3999 = vmatpush1.msra.mxu0 %v3969
  %4000 = vmatprep.subr.mxu0 0.0
  %4001 = vmatpush1.msra.mxu0 %v3970
  %4002 = vmatprep.subr.mxu0 0.0
  %4003 = vmatpush1.msra.mxu0 0.0
  %4004 = vmatprep.subr.mxu0 0.0
  %4005 = vmatpush1.msra.mxu0 0.0
  %4006 = vmatprep.subr.mxu0 0.0
  %4007 = vmatpush1.msra.mxu0 0.0
  %4008 = vmatprep.subr.mxu0 0.0
  %4009 = vmatpush1.msra.mxu0 0.0
  %4010 = vmatprep.subr.mxu0 0.0
  %4011 = vmatpush1.msra.mxu0 0.0
  %4012 = vmatprep.subr.mxu0 0.0
  %4013 = vmatpush1.msra.mxu0 0.0
  %4014 = vmatprep.subr.mxu0 0.0
  %4015 = vmatpush1.msra.mxu0 0.0
  %4016 = vmatprep.subr.mxu0 0.0
  %4017 = vmatpush1.msra.mxu0 0.0
  %4018 = vmatprep.subr.mxu0 0.0
  %4019 = vmatpush1.msra.mxu0 0.0
  %4020 = vmatprep.subr.mxu0 0.0
  %4021 = vmatpush1.msra.mxu0 0.0
  %4022 = vmatprep.subr.mxu0 0.0
  %4023 = vmatpush1.msra.mxu0 0.0
  %4024 = vmatprep.subr.mxu0 0.0
  %4025 = vmatpush1.msra.mxu0 0.0
  %4026 = vmatprep.subr.mxu0 0.0
  %4027 = vmatpush1.msra.mxu0 0.0
  %4028 = vmatprep.subr.mxu0 0.0
  %4029 = vmatpush1.msra.mxu0 0.0
  %4030 = vmatprep.subr.mxu0 0.0
  %4031 = vmatpush1.msra.mxu0 0.0
  %4032 = vmatprep.subr.mxu0 0.0
  %4033 = vmatpush1.msra.mxu0 0.0
  %4034 = vmatprep.subr.mxu0 0.0
  %4035 = vmatpush1.msra.mxu0 0.0
  %4036 = vmatprep.subr.mxu0 0.0
  %4037 = vmatpush1.msra.mxu0 0.0
  %4038 = vmatprep.subr.mxu0 0.0
  %4039 = vmatpush1.msra.mxu0 0.0
  %4040 = vmatprep.subr.mxu0 0.0
  %4041 = vmatpush1.msra.mxu0 0.0
  %4042 = vmatprep.subr.mxu0 0.0
  %4043 = vmatpush1.msra.mxu0 0.0
  %4044 = vmatprep.subr.mxu0 0.0
  %4045 = vmatpush1.msra.mxu0 0.0
  %4046 = vmatprep.subr.mxu0 0.0
  %4047 = vmatpush1.msra.mxu0 0.0
  %4048 = vmatprep.subr.mxu0 0.0
  %4049 = vmatpush1.msra.mxu0 0.0
  %4050 = vmatprep.subr.mxu0 0.0
  %4051 = vmatpush1.msra.mxu0 0.0
  %4052 = vmatprep.subr.mxu0 0.0
  %4053 = vmatpush1.msra.mxu0 0.0
  %4054 = vmatprep.subr.mxu0 0.0
  %4055 = vmatpush1.msra.mxu0 0.0
  %4056 = vmatprep.subr.mxu0 0.0
  %4057 = vmatpush1.msra.mxu0 0.0
  %4058 = vmatprep.mubr.f32.mxu0 0.0
  %4059 = vmatmul.mubr.f32.gmra.mrb[0].mxu0 %v3980
  %v4060 = vpop.f32.mrb[0].mxu0
  %v4061 = vadd.f32 %v3977, %v4060
  %v4062 = vpop.f32.mrb[0].mxu0
  %4063 = vmatprep.mubr.f32.mxu0 0.0
  %4064 = vmatmul.mubr.f32.gmra.mrb[0].mxu0 %v3983
  %v4065 = vpop.f32.mrb[0].mxu0
  %v4066 = vadd.f32 %v3977, %v4065
  %v4067 = vpop.f32.mrb[0].mxu0
  %4068 = vmatprep.mubr.f32.mxu0 0.0
  %4069 = vmatmul.mubr.f32.gmra.mrb[0].mxu0 %v3986
  %v4070 = vpop.f32.mrb[0].mxu0
  %v4071 = vadd.f32 %v3977, %v4070
  %v4072 = vpop.f32.mrb[0].mxu0
  %4073 = vmatprep.mubr.f32.mxu0 0.0
  %4074 = vmatmul.mubr.f32.gmra.mrb[0].mxu0 %v3989
  %v4075 = vpop.f32.mrb[0].mxu0
  %v4076 = vadd.f32 %v3977, %v4075
  %v4077 = vpop.f32.mrb[0].mxu0
  %4078 = vmatprep.mubr.f32.mxu0 0.0
  %4079 = vmatmul.mubr.f32.gmra.mrb[0].mxu0 %v3992
  %v4080 = vpop.f32.mrb[0].mxu0
  %v4081 = vadd.f32 %v3977, %v4080
  %v4082 = vpop.f32.mrb[0].mxu0
  %4083 = vdwg.mxu0
  %v4084 = vmul.f32 %v4061, %v4061
  %v4085 = vmul.f32 %v4066, %v4066
  %v4086 = vmul.f32 %v4071, %v4071
  %v4087 = vmul.f32 %v4076, %v4076
  %v4088 = vmul.f32 %v4081, %v4081
  %v4089 = vmul.f32 %v4061, %v4084
  %v4090 = vmul.f32 %v4066, %v4085
  %v4091 = vmul.f32 %v4071, %v4086
  %v4092 = vmul.f32 %v4076, %v4087
  %v4093 = vmul.f32 %v4081, %v4088
  %v4094 = vmul.f32 %v4089, 0.044715
  %v4095 = vmul.f32 %v4090, 0.044715
  %v4096 = vmul.f32 %v4091, 0.044715
  %v4097 = vmul.f32 %v4092, 0.044715
  %v4098 = vmul.f32 %v4093, 0.044715
  %v4099 = vadd.f32 %v4061, %v4094
  %v4100 = vadd.f32 %v4066, %v4095
  %v4101 = vadd.f32 %v4071, %v4096
  %v4102 = vadd.f32 %v4076, %v4097
  %v4103 = vadd.f32 %v4081, %v4098
  %v4104 = vmul.f32 %v4099, 0.7978846
  %v4105 = vmul.f32 %v4100, 0.7978846
  %v4106 = vmul.f32 %v4101, 0.7978846
  %v4107 = vmul.f32 %v4102, 0.7978846
  %v4108 = vmul.f32 %v4103, 0.7978846
  %v4109 = vtanh.pop %v4104
  %v4110 = vtanh.pop %v4105
  %v4111 = vtanh.pop %v4106
  %v4112 = vtanh.pop %v4107
  %v4113 = vtanh.pop %v4108
  %v4114 = vadd.f32 %v4109, 1.0
  %v4115 = vadd.f32 %v4110, 1.0
  %v4116 = vadd.f32 %v4111, 1.0
  %v4117 = vadd.f32 %v4112, 1.0
  %v4118 = vadd.f32 %v4113, 1.0
  %v4119 = vmul.f32 %v4114, 0.5
  %v4120 = vmul.f32 %v4115, 0.5
  %v4121 = vmul.f32 %v4116, 0.5
  %v4122 = vmul.f32 %v4117, 0.5
  %v4123 = vmul.f32 %v4118, 0.5
  %v4124 = vmul.f32 %v4061, %v4119
  %v4125 = vmul.f32 %v4066, %v4120
  %v4126 = vmul.f32 %v4071, %v4121
  %v4127 = vmul.f32 %v4076, %v4122
  %v4128 = vmul.f32 %v4081, %v4123
  %s4129 = scalar_lea.vmem %s53, 128
  %v4130 = vld [vmem:[%s4129] sm:$0xff]
  %v4131 = vld [vmem:[%s4129 + $0x8] sm:$0xff]
  %v4132 = vld [vmem:[%s4129 + $0x10] sm:$0xff]
  %v4133 = vld [vmem:[%s4129 + $0x18] sm:$0xff]
  %v4134 = vld [vmem:[%s4129 + $0x20] sm:$0xff]
  %v4135 = vld [vmem:[%s4129 + $0x28] sm:$0xff]
  %v4136 = vld [vmem:[%s4129 + $0x30] sm:$0xff]
  %v4137 = vld [vmem:[%s4129 + $0x38] sm:$0xff]
  %v4138 = vld [vmem:[%s4129 + $0x40] sm:$0xff]
  %v4139 = vld [vmem:[%s4129 + $0x48] sm:$0xff]
  %v4140 = vld [vmem:[%s4129 + $0x50] sm:$0xff]
  %v4141 = vld [vmem:[%s4129 + $0x58] sm:$0xff]
  %v4142 = vld [vmem:[%s4129 + $0x60] sm:$0xff]
  %v4143 = vld [vmem:[%s4129 + $0x68] sm:$0xff]
  %v4144 = vld [vmem:[%s4129 + $0x70] sm:$0xff]
  %v4145 = vld [vmem:[%s4129 + $0x78] sm:$0xff]
  %4146 = vmatprep.subr.mxu0 0.0
  %4147 = vmatpush1.msra.mxu0 %v4130
  %4148 = vmatprep.subr.mxu0 0.0
  %4149 = vmatpush1.msra.mxu0 %v4131
  %4150 = vmatprep.subr.mxu0 0.0
  %4151 = vmatpush1.msra.mxu0 %v4132
  %4152 = vmatprep.subr.mxu0 0.0
  %4153 = vmatpush1.msra.mxu0 %v4133
  %4154 = vmatprep.subr.mxu0 0.0
  %4155 = vmatpush1.msra.mxu0 %v4134
  %4156 = vmatprep.subr.mxu0 0.0
  %4157 = vmatpush1.msra.mxu0 %v4135
  %4158 = vmatprep.subr.mxu0 0.0
  %4159 = vmatpush1.msra.mxu0 %v4136
  %4160 = vmatprep.subr.mxu0 0.0
  %4161 = vmatpush1.msra.mxu0 %v4137
  %4162 = vmatprep.subr.mxu0 0.0
  %4163 = vmatpush1.msra.mxu0 %v4138
  %4164 = vmatprep.subr.mxu0 0.0
  %4165 = vmatpush1.msra.mxu0 %v4139
  %4166 = vmatprep.subr.mxu0 0.0
  %4167 = vmatpush1.msra.mxu0 %v4140
  %4168 = vmatprep.subr.mxu0 0.0
  %4169 = vmatpush1.msra.mxu0 %v4141
  %4170 = vmatprep.subr.mxu0 0.0
  %4171 = vmatpush1.msra.mxu0 %v4142
  %4172 = vmatprep.subr.mxu0 0.0
  %4173 = vmatpush1.msra.mxu0 %v4143
  %4174 = vmatprep.subr.mxu0 0.0
  %4175 = vmatpush1.msra.mxu0 %v4144
  %4176 = vmatprep.subr.mxu0 0.0
  %4177 = vmatpush1.msra.mxu0 %v4145
  %4178 = vmatprep.subr.mxu0 0.0
  %4179 = vmatpush1.msra.mxu0 0.0
  %4180 = vmatprep.subr.mxu0 0.0
  %4181 = vmatpush1.msra.mxu0 0.0
  %4182 = vmatprep.subr.mxu0 0.0
  %4183 = vmatpush1.msra.mxu0 0.0
  %4184 = vmatprep.subr.mxu0 0.0
  %4185 = vmatpush1.msra.mxu0 0.0
  %4186 = vmatprep.subr.mxu0 0.0
  %4187 = vmatpush1.msra.mxu0 0.0
  %4188 = vmatprep.subr.mxu0 0.0
  %4189 = vmatpush1.msra.mxu0 0.0
  %4190 = vmatprep.subr.mxu0 0.0
  %4191 = vmatpush1.msra.mxu0 0.0
  %4192 = vmatprep.subr.mxu0 0.0
  %4193 = vmatpush1.msra.mxu0 0.0
  %4194 = vmatprep.subr.mxu0 0.0
  %4195 = vmatpush1.msra.mxu0 0.0
  %4196 = vmatprep.subr.mxu0 0.0
  %4197 = vmatpush1.msra.mxu0 0.0
  %4198 = vmatprep.subr.mxu0 0.0
  %4199 = vmatpush1.msra.mxu0 0.0
  %4200 = vmatprep.subr.mxu0 0.0
  %4201 = vmatpush1.msra.mxu0 0.0
  %4202 = vmatprep.subr.mxu0 0.0
  %4203 = vmatpush1.msra.mxu0 0.0
  %4204 = vmatprep.subr.mxu0 0.0
  %4205 = vmatpush1.msra.mxu0 0.0
  %4206 = vmatprep.subr.mxu0 0.0
  %4207 = vmatpush1.msra.mxu0 0.0
  %4208 = vmatprep.subr.mxu0 0.0
  %4209 = vmatpush1.msra.mxu0 0.0
  %4210 = vmatprep.mubr.f32.mxu0 0.0
  %4211 = vmatmul.mubr.f32.gmra.mrb[0].mxu0 %v4124
  %v4212 = vpop.f32.mrb[0].mxu0
  %v4213 = vadd.f32 0.0, %v4212
  %v4214 = vpop.f32.mrb[0].mxu0
  %4215 = vmatprep.mubr.f32.mxu0 0.0
  %4216 = vmatmul.mubr.f32.gmra.mrb[0].mxu0 %v4125
  %v4217 = vpop.f32.mrb[0].mxu0
  %v4218 = vadd.f32 0.0, %v4217
  %v4219 = vpop.f32.mrb[0].mxu0
  %4220 = vmatprep.mubr.f32.mxu0 0.0
  %4221 = vmatmul.mubr.f32.gmra.mrb[0].mxu0 %v4126
  %v4222 = vpop.f32.mrb[0].mxu0
  %v4223 = vadd.f32 0.0, %v4222
  %v4224 = vpop.f32.mrb[0].mxu0
  %4225 = vmatprep.mubr.f32.mxu0 0.0
  %4226 = vmatmul.mubr.f32.gmra.mrb[0].mxu0 %v4127
  %v4227 = vpop.f32.mrb[0].mxu0
  %v4228 = vadd.f32 0.0, %v4227
  %v4229 = vpop.f32.mrb[0].mxu0
  %4230 = vmatprep.mubr.f32.mxu0 0.0
  %4231 = vmatmul.mubr.f32.gmra.mrb[0].mxu0 %v4128
  %v4232 = vpop.f32.mrb[0].mxu0
  %v4233 = vadd.f32 0.0, %v4232
  %v4234 = vpop.f32.mrb[0].mxu0
  %4235 = vdwg.mxu0
  %v4236 = vadd.f32 %v3870, %v4213
  %v4237 = vadd.f32 %v3871, %v4218
  %v4238 = vadd.f32 %v3872, %v4223
  %v4239 = vadd.f32 %v3873, %v4228
  %v4240 = vadd.f32 %v3874, %v4233
  %s4241 = scalar_lea.vmem %s55, 1
  %v4242 = vld [vmem:[%s4241] sm:$0x1]
  %v4244 = vlaneseq
  %v4245 = vshrl.u32 %v4244, 7
  %v4246 = vsub.s32 0, %v4245
  %v4247 = vrot.slane %v4242, %v4246
  %v4249 = vadd.f32 %v4236, %v4247
  %v4250 = vadd.f32 %v4237, %v4247
  %v4251 = vadd.f32 %v4238, %v4247
  %v4252 = vadd.f32 %v4239, %v4247
  %v4253 = vadd.f32 %v4240, %v4247
  %v4254 = vld [vmem:[%s57] sm:$0x1]
  %v4255 = vld [vmem:[%s59] sm:$0x1]
  %v4256 = vsel %vm251, %v4249, 0.0
  %4257 = vadd.xlane.f32.xlu0 %v4256
  %v4258 = vpop.xlane.xlu0 %4257
  %v4259 = vsel %vm251, %v4250, 0.0
  %4260 = vadd.xlane.f32.xlu0 %v4259
  %v4261 = vpop.xlane.xlu0 %4260
  %v4262 = vsel %vm251, %v4251, 0.0
  %4263 = vadd.xlane.f32.xlu0 %v4262
  %v4264 = vpop.xlane.xlu0 %4263
  %v4265 = vsel %vm251, %v4252, 0.0
  %4266 = vadd.xlane.f32.xlu0 %v4265
  %v4267 = vpop.xlane.xlu0 %4266
  %v4268 = vsel %vm1369, %v4253, 0.0
  %4269 = vadd.xlane.f32.xlu0 %v4268
  %v4270 = vpop.xlane.xlu0 %4269
  %v4271 = vmul.f32 %v4258, %v264
  %v4272 = vmul.f32 %v4261, %v264
  %v4273 = vmul.f32 %v4264, %v264
  %v4274 = vmul.f32 %v4267, %v264
  %v4275 = vmul.f32 %v4270, %v264
  %v4276 = vsub.f32 %v4249, %v4271
  %v4277 = vsub.f32 %v4250, %v4272
  %v4278 = vsub.f32 %v4251, %v4273
  %v4279 = vsub.f32 %v4252, %v4274
  %v4280 = vsub.f32 %v4253, %v4275
  %v4281 = vmul.f32 %v4276, %v4276
  %v4282 = vmul.f32 %v4277, %v4277
  %v4283 = vmul.f32 %v4278, %v4278
  %v4284 = vmul.f32 %v4279, %v4279
  %v4285 = vmul.f32 %v4280, %v4280
  %v4286 = vsel %vm251, %v4281, 0.0
  %4287 = vadd.xlane.f32.xlu0 %v4286
  %v4288 = vpop.xlane.xlu0 %4287
  %v4289 = vsel %vm251, %v4282, 0.0
  %4290 = vadd.xlane.f32.xlu0 %v4289
  %v4291 = vpop.xlane.xlu0 %4290
  %v4292 = vsel %vm251, %v4283, 0.0
  %4293 = vadd.xlane.f32.xlu0 %v4292
  %v4294 = vpop.xlane.xlu0 %4293
  %v4295 = vsel %vm251, %v4284, 0.0
  %4296 = vadd.xlane.f32.xlu0 %v4295
  %v4297 = vpop.xlane.xlu0 %4296
  %v4298 = vsel %vm1369, %v4285, 0.0
  %4299 = vadd.xlane.f32.xlu0 %v4298
  %v4300 = vpop.xlane.xlu0 %4299
  %v4301 = vmul.f32 %v4288, %v264
  %v4302 = vmul.f32 %v4291, %v264
  %v4303 = vmul.f32 %v4294, %v264
  %v4304 = vmul.f32 %v4297, %v264
  %v4305 = vmul.f32 %v4300, %v264
  %v4306 = vadd.f32 %v4301, 1e-06
  %v4307 = vadd.f32 %v4302, 1e-06
  %v4308 = vadd.f32 %v4303, 1e-06
  %v4309 = vadd.f32 %v4304, 1e-06
  %v4310 = vadd.f32 %v4305, 1e-06
  %v4311 = vrsqrt.pop %v4306
  %v4312 = vrsqrt.pop %v4307
  %v4313 = vrsqrt.pop %v4308
  %v4314 = vrsqrt.pop %v4309
  %v4315 = vrsqrt.pop %v4310
  %v4316 = vmul.f32 %v4276, %v4311
  %v4317 = vmul.f32 %v4277, %v4312
  %v4318 = vmul.f32 %v4278, %v4313
  %v4319 = vmul.f32 %v4279, %v4314
  %v4320 = vmul.f32 %v4280, %v4315
  %v4322 = vlaneseq
  %v4323 = vshrl.u32 %v4322, 7
  %v4324 = vsub.s32 0, %v4323
  %v4325 = vrot.slane %v4254, %v4324
  %v4327 = vmul.f32 %v4316, %v4325
  %v4328 = vmul.f32 %v4317, %v4325
  %v4329 = vmul.f32 %v4318, %v4325
  %v4330 = vmul.f32 %v4319, %v4325
  %v4331 = vmul.f32 %v4320, %v4325
  %v4333 = vlaneseq
  %v4334 = vshrl.u32 %v4333, 7
  %v4335 = vsub.s32 0, %v4334
  %v4336 = vrot.slane %v4255, %v4335
  %v4338 = vadd.f32 %v4327, %v4336
  %v4339 = vadd.f32 %v4328, %v4336
  %v4340 = vadd.f32 %v4329, %v4336
  %v4341 = vadd.f32 %v4330, %v4336
  %v4342 = vadd.f32 %v4331, %v4336
  %v4343 = vld [vmem:[%s61] sm:$0x3]
  %v4345 = vsel %vm1697, %v4343, 0
  %v4348 = vsel %vm853, %v4342, 0
  %4350 = vmatprep.subr.mxu0 0.0
  %4351 = vmatpush1.msra.mxu0 %v4338
  %4352 = vmatprep.subr.mxu0 0.0
  %4353 = vmatpush1.msra.mxu0 %v4339
  %4354 = vmatprep.subr.mxu0 0.0
  %4355 = vmatpush1.msra.mxu0 %v4340
  %4356 = vmatprep.subr.mxu0 0.0
  %4357 = vmatpush1.msra.mxu0 %v4341
  %4358 = vmatprep.subr.mxu0 0.0
  %4359 = vmatpush1.msra.mxu0 %v4348
  %4360 = vmatprep.subr.mxu0 0.0
  %4361 = vmatpush1.msra.mxu0 0.0
  %4362 = vmatprep.subr.mxu0 0.0
  %4363 = vmatpush1.msra.mxu0 0.0
  %4364 = vmatprep.subr.mxu0 0.0
  %4365 = vmatpush1.msra.mxu0 0.0
  %4366 = vmatprep.subr.mxu0 0.0
  %4367 = vmatpush1.msra.mxu0 0.0
  %4368 = vmatprep.subr.mxu0 0.0
  %4369 = vmatpush1.msra.mxu0 0.0
  %4370 = vmatprep.subr.mxu0 0.0
  %4371 = vmatpush1.msra.mxu0 0.0
  %4372 = vmatprep.subr.mxu0 0.0
  %4373 = vmatpush1.msra.mxu0 0.0
  %4374 = vmatprep.subr.mxu0 0.0
  %4375 = vmatpush1.msra.mxu0 0.0
  %4376 = vmatprep.subr.mxu0 0.0
  %4377 = vmatpush1.msra.mxu0 0.0
  %4378 = vmatprep.subr.mxu0 0.0
  %4379 = vmatpush1.msra.mxu0 0.0
  %4380 = vmatprep.subr.mxu0 0.0
  %4381 = vmatpush1.msra.mxu0 0.0
  %4382 = vmatprep.subr.mxu0 0.0
  %4383 = vmatpush1.msra.mxu0 0.0
  %4384 = vmatprep.subr.mxu0 0.0
  %4385 = vmatpush1.msra.mxu0 0.0
  %4386 = vmatprep.subr.mxu0 0.0
  %4387 = vmatpush1.msra.mxu0 0.0
  %4388 = vmatprep.subr.mxu0 0.0
  %4389 = vmatpush1.msra.mxu0 0.0
  %4390 = vmatprep.subr.mxu0 0.0
  %4391 = vmatpush1.msra.mxu0 0.0
  %4392 = vmatprep.subr.mxu0 0.0
  %4393 = vmatpush1.msra.mxu0 0.0
  %4394 = vmatprep.subr.mxu0 0.0
  %4395 = vmatpush1.msra.mxu0 0.0
  %4396 = vmatprep.subr.mxu0 0.0
  %4397 = vmatpush1.msra.mxu0 0.0
  %4398 = vmatprep.subr.mxu0 0.0
  %4399 = vmatpush1.msra.mxu0 0.0
  %4400 = vmatprep.subr.mxu0 0.0
  %4401 = vmatpush1.msra.mxu0 0.0
  %4402 = vmatprep.subr.mxu0 0.0
  %4403 = vmatpush1.msra.mxu0 0.0
  %4404 = vmatprep.subr.mxu0 0.0
  %4405 = vmatpush1.msra.mxu0 0.0
  %4406 = vmatprep.subr.mxu0 0.0
  %4407 = vmatpush1.msra.mxu0 0.0
  %4408 = vmatprep.subr.mxu0 0.0
  %4409 = vmatpush1.msra.mxu0 0.0
  %4410 = vmatprep.subr.mxu0 0.0
  %4411 = vmatpush1.msra.mxu0 0.0
  %4412 = vmatprep.subr.mxu0 0.0
  %4413 = vmatpush1.msra.mxu0 0.0
  %4414 = vmatprep.mubr.f32.mxu0 0.0
  %4415 = vmatmul.mubr.f32.gmra.mrb[0].mxu0 %v4345
  %v4416 = vpop.f32.mrb[0].mxu0
  %v4417 = vadd.f32 0.0, %v4416
  %v4418 = vpop.f32.mrb[0].mxu0
  %4419 = vdwg.mxu0
  %v4420 = vld [vmem:[%s63] sm:$0xff]
  %v4421 = vld [vmem:[%s63 + $0x8] sm:$0xff]
  %v4422 = vld [vmem:[%s63 + $0x10] sm:$0xff]
  %v4423 = vld [vmem:[%s63 + $0x18] sm:$0xff]
  %v4424 = vld [vmem:[%s65] sm:$0x1]
  %v4426 = vlaneseq
  %v4427 = vshrl.u32 %v4426, 7
  %v4428 = vsub.s32 0, %v4427
  %v4429 = vrot.slane %v4424, %v4428
  %v4432 = vsel %vm251, %v4417, 0
  %4434 = vmatprep.subr.mxu0 0.0
  %4435 = vmatpush1.msra.mxu0 %v4420
  %4436 = vmatprep.subr.mxu0 0.0
  %4437 = vmatpush1.msra.mxu0 %v4421
  %4438 = vmatprep.subr.mxu0 0.0
  %4439 = vmatpush1.msra.mxu0 %v4422
  %4440 = vmatprep.subr.mxu0 0.0
  %4441 = vmatpush1.msra.mxu0 %v4423
  %4442 = vmatprep.subr.mxu0 0.0
  %4443 = vmatpush1.msra.mxu0 0.0
  %4444 = vmatprep.subr.mxu0 0.0
  %4445 = vmatpush1.msra.mxu0 0.0
  %4446 = vmatprep.subr.mxu0 0.0
  %4447 = vmatpush1.msra.mxu0 0.0
  %4448 = vmatprep.subr.mxu0 0.0
  %4449 = vmatpush1.msra.mxu0 0.0
  %4450 = vmatprep.subr.mxu0 0.0
  %4451 = vmatpush1.msra.mxu0 0.0
  %4452 = vmatprep.subr.mxu0 0.0
  %4453 = vmatpush1.msra.mxu0 0.0
  %4454 = vmatprep.subr.mxu0 0.0
  %4455 = vmatpush1.msra.mxu0 0.0
  %4456 = vmatprep.subr.mxu0 0.0
  %4457 = vmatpush1.msra.mxu0 0.0
  %4458 = vmatprep.subr.mxu0 0.0
  %4459 = vmatpush1.msra.mxu0 0.0
  %4460 = vmatprep.subr.mxu0 0.0
  %4461 = vmatpush1.msra.mxu0 0.0
  %4462 = vmatprep.subr.mxu0 0.0
  %4463 = vmatpush1.msra.mxu0 0.0
  %4464 = vmatprep.subr.mxu0 0.0
  %4465 = vmatpush1.msra.mxu0 0.0
  %4466 = vmatprep.subr.mxu0 0.0
  %4467 = vmatpush1.msra.mxu0 0.0
  %4468 = vmatprep.subr.mxu0 0.0
  %4469 = vmatpush1.msra.mxu0 0.0
  %4470 = vmatprep.subr.mxu0 0.0
  %4471 = vmatpush1.msra.mxu0 0.0
  %4472 = vmatprep.subr.mxu0 0.0
  %4473 = vmatpush1.msra.mxu0 0.0
  %4474 = vmatprep.subr.mxu0 0.0
  %4475 = vmatpush1.msra.mxu0 0.0
  %4476 = vmatprep.subr.mxu0 0.0
  %4477 = vmatpush1.msra.mxu0 0.0
  %4478 = vmatprep.subr.mxu0 0.0
  %4479 = vmatpush1.msra.mxu0 0.0
  %4480 = vmatprep.subr.mxu0 0.0
  %4481 = vmatpush1.msra.mxu0 0.0
  %4482 = vmatprep.subr.mxu0 0.0
  %4483 = vmatpush1.msra.mxu0 0.0
  %4484 = vmatprep.subr.mxu0 0.0
  %4485 = vmatpush1.msra.mxu0 0.0
  %4486 = vmatprep.subr.mxu0 0.0
  %4487 = vmatpush1.msra.mxu0 0.0
  %4488 = vmatprep.subr.mxu0 0.0
  %4489 = vmatpush1.msra.mxu0 0.0
  %4490 = vmatprep.subr.mxu0 0.0
  %4491 = vmatpush1.msra.mxu0 0.0
  %4492 = vmatprep.subr.mxu0 0.0
  %4493 = vmatpush1.msra.mxu0 0.0
  %4494 = vmatprep.subr.mxu0 0.0
  %4495 = vmatpush1.msra.mxu0 0.0
  %4496 = vmatprep.subr.mxu0 0.0
  %4497 = vmatpush1.msra.mxu0 0.0
  %4498 = vmatprep.mubr.f32.mxu0 0.0
  %4499 = vmatmul.mubr.f32.gmra.mrb[0].mxu0 %v4432
  %v4500 = vpop.f32.mrb[0].mxu0
  %v4501 = vadd.f32 %v4429, %v4500
  %v4502 = vpop.f32.mrb[0].mxu0
  %4503 = vdwg.mxu0
  %4504 = vst [vmem:[%s67] sm:$0x3] %v4501
  // Predicated region
  $region134: #{forward.1} parent=0 // pred_check
    _
  $region135: #{forward.1} parent=0 // pred_check_branch
    %4506 = sbr.rel (0) target = $region137
  $region136: #{forward.1} parent=0 // pred_region
    _
  $region137: #{forward.1} parent=0 // pred_fallthru
    _
  // Predicated region
  $region138: #{forward.1} parent=0 // pred_check
    _
  $region139: #{forward.1} parent=0 // pred_check_branch
    %4508 = sbr.rel (0) target = $region141
  $region140: #{forward.1} parent=0 // pred_region
    _
  $region141: #{forward.1} parent=0 // pred_fallthru
    _

</llo_original>
